<compile_context>
chip_gen: v7x
topology: tpu7x:2x2x1
jax: 0.10.0
libtpu: 0.0.40
codegen_flags: <defaults>
</compile_context>

<pallas_src>
import functools

import jax
import jax.numpy as jnp
from jax.experimental import pallas as pl
from jax.experimental.pallas import tpu as pltpu


def _round_up(a, b):
    return (a + b - 1) // b * b


# ----------------------------- Pallas kernel ---------------------------------
def _conv_bn_lrelu_kernel(x_ref, w_ref, b_ref, o_ref, *, offsets, tm, cin_p,
                          cout_p, negative_slope):
    # x_ref : (M_in, Cin_p)        f32  whole padded+flattened image of batch b
    # w_ref : (K*K*Cin_p, Cout_p)  bf16 BN-scale-folded weights
    # b_ref : (1, Cout_p)          f32  folded BN bias
    # o_ref : (TM, Cout_p)         f32  one row tile of the flattened output
    t = pl.program_id(1)
    base = pl.multiple_of(t * tm, 8)

    acc = jnp.zeros((tm, cout_p), jnp.float32)
    for s, off in enumerate(offsets):          # unrolled K*K shifted matmuls (MXU)
        xs = x_ref[pl.ds(base + off, tm), :].astype(jnp.bfloat16)
        ws = w_ref[s * cin_p:(s + 1) * cin_p, :]
        acc = acc + jnp.dot(xs, ws, preferred_element_type=jnp.float32)

    y = acc + b_ref[...]
    o_ref[...] = jnp.where(y > 0, y, negative_slope * y).astype(o_ref.dtype)


def _conv_bn_lrelu_pallas(x_flat, w_mat, bias, *, tm, m_out_p, offsets,
                          negative_slope, vmem_limit_bytes):
    n, m_in, cin_p = x_flat.shape
    kkc, cout_p = w_mat.shape

    kernel = functools.partial(
        _conv_bn_lrelu_kernel, offsets=offsets, tm=tm, cin_p=cin_p,
        cout_p=cout_p, negative_slope=negative_slope)

    return pl.pallas_call(
        kernel,
        out_shape=jax.ShapeDtypeStruct((n, m_out_p, cout_p), jnp.float32),
        grid_spec=pltpu.PrefetchScalarGridSpec(
            num_scalar_prefetch=0,
            grid=(n, m_out_p // tm),
            in_specs=[
                # Whole (padded) image of batch b stays resident across row tiles.
                pl.BlockSpec((None, m_in, cin_p), lambda b, t: (b, 0, 0)),
                pl.BlockSpec((kkc, cout_p), lambda b, t: (0, 0)),
                pl.BlockSpec((1, cout_p), lambda b, t: (0, 0)),
            ],
            out_specs=pl.BlockSpec((None, tm, cout_p), lambda b, t: (b, t, 0)),
        ),
        compiler_params=pltpu.CompilerParams(
            dimension_semantics=("parallel", "parallel"),
            vmem_limit_bytes=vmem_limit_bytes,
        ),
    )(x_flat, w_mat, bias)


# ------------------------------ glue (plain JAX) ------------------------------
def cnn_block_forward(x_nchw, conv_w, gamma, beta, run_mean, run_var,
                      *, padding=1, eps=1e-5, negative_slope=0.1, tm_target=512):
    """CNNBlock.forward with bn_act=True. x: NCHW f32, conv_w: (Cout, Cin, K, K)."""
    n, cin, h, w = x_nchw.shape
    cout, _, kh, kw = conv_w.shape
    assert kh == kw, "square kernels only"
    k = kh
    h_out = h + 2 * padding - k + 1
    w_out = w + 2 * padding - k + 1
    wp = w + 2 * padding
    hp = h + 2 * padding

    cin_p = _round_up(cin, 8)          # friendly sublane size for the weight rows
    cout_p = _round_up(cout, 128)      # lane-dense output / MXU N dimension

    # ---- input: NCHW -> NHWC, zero-pad spatial + channels, flatten spatial ----
    x_nhwc = jnp.transpose(x_nchw, (0, 2, 3, 1)).astype(jnp.float32)
    xp = jnp.pad(x_nhwc, ((0, 0), (padding, padding), (padding, padding),
                          (0, cin_p - cin)))
    x_flat = xp.reshape(n, hp * wp, cin_p)

    # Flattened-output geometry: output row p = h*wp + w (the wp-wide pad columns
    # are computed too and sliced away afterwards); shift (di, dj) is the
    # contiguous offset di*wp + dj in the flattened padded input.
    m_valid = h_out * wp
    tm = min(_round_up(tm_target, 8), _round_up(m_valid, 8))
    m_out_p = _round_up(m_valid, tm)                 # ragged tail handled by padding
    max_off = (k - 1) * wp + (k - 1)
    m_in = _round_up(m_out_p + max_off, 8)
    x_flat = jnp.pad(x_flat, ((0, 0), (0, m_in - hp * wp), (0, 0)))

    # ---- weights: (Cout,Cin,K,K) -> (K,K,Cin,Cout), fold BN scale, pad, bf16 ----
    scale = gamma / jnp.sqrt(run_var + eps)
    w_hwio = jnp.transpose(conv_w, (2, 3, 1, 0)).astype(jnp.float32)
    w_hwio = w_hwio * scale[None, None, None, :]                 # fold BN scale
    w_hwio = jnp.pad(w_hwio, ((0, 0), (0, 0), (0, cin_p - cin),
                              (0, cout_p - cout)))
    w_mat = w_hwio.reshape(k * k * cin_p, cout_p).astype(jnp.bfloat16)

    bias = beta - run_mean * scale
    bias = jnp.pad(bias, (0, cout_p - cout)).reshape(1, cout_p).astype(jnp.float32)

    offsets = tuple(di * wp + dj for di in range(k) for dj in range(k))

    # VMEM budget: double-buffered x / w / out blocks + f32 accumulator + slack.
    est = (2 * m_in * cin_p * 4 + 2 * k * k * cin_p * cout_p * 2
           + 2 * tm * cout_p * 4 + tm * cout_p * 4 + (1 << 20))
    vmem_limit = int(min(48 * 2**20, max(32 * 2**20, 2 * est)))

    out = _conv_bn_lrelu_pallas(
        x_flat, w_mat, bias, tm=tm, m_out_p=m_out_p, offsets=offsets,
        negative_slope=negative_slope, vmem_limit_bytes=vmem_limit)

    out = out[:, :m_valid, :cout].reshape(n, h_out, wp, cout)[:, :, :w_out, :]
    return jnp.transpose(out, (0, 3, 1, 2))                       # NHWC -> NCHW


# ---------------------------------- main --------------------------------------
if __name__ == "__main__":
    key = jax.random.PRNGKey(0)
    k_x, k_w, k_g, k_b, k_m, k_v = jax.random.split(key, 6)

    N, Cin, H, W = 2, 4, 16, 16
    Cout, K = 8, 3

    x = jax.random.normal(k_x, (N, Cin, H, W), dtype=jnp.float32)
    conv_w = jax.random.normal(k_w, (Cout, Cin, K, K), dtype=jnp.float32) * 0.1
    gamma = jax.random.normal(k_g, (Cout,), dtype=jnp.float32) * 0.1 + 1.0
    beta = jax.random.normal(k_b, (Cout,), dtype=jnp.float32) * 0.1
    run_mean = jax.random.normal(k_m, (Cout,), dtype=jnp.float32) * 0.1
    run_var = jnp.abs(jax.random.normal(k_v, (Cout,), dtype=jnp.float32)) * 0.1 + 1.0

    out = cnn_block_forward(x, conv_w, gamma, beta, run_mean, run_var)
    out = jax.block_until_ready(out)

    # Reference (pure JAX f32 conv + BN + LeakyReLU) for sanity.
    ref_conv = jax.lax.conv_general_dilated(
        x, conv_w, window_strides=(1, 1), padding=((1, 1), (1, 1)),
        dimension_numbers=("NCHW", "OIHW", "NCHW"))
    s = gamma / jnp.sqrt(run_var + 1e-5)
    ref = ref_conv * s[None, :, None, None] + (beta - run_mean * s)[None, :, None, None]
    ref = jnp.where(ref > 0, ref, 0.1 * ref)

    assert out.shape == (N, Cout, H, W)
    # bf16 MXU inputs (f32 accumulation) -> loosened tolerance vs the f32 reference.
    assert jnp.allclose(out, ref, atol=5e-2, rtol=5e-2), \
        float(jnp.max(jnp.abs(out - ref)))

    print("KERNEL_OK")
</pallas_src>

<mosaic_0001>
module attributes {stable_mosaic.version = 11 : i64} {
  func.func @_conv_bn_lrelu_kernel(%arg0: i32, %arg1: i32, %arg2: memref<1x328x8xf32, #tpu.memory_space<vmem>>, %arg3: memref<72x128xbf16, #tpu.memory_space<vmem>>, %arg4: memref<1x128xf32, #tpu.memory_space<vmem>>, %arg5: memref<1x288x128xf32, #tpu.memory_space<vmem>>) attributes {dimension_semantics = [#tpu.dimension_semantics<parallel>, #tpu.dimension_semantics<parallel>], iteration_bounds = array<i64: 2, 1>, scalar_prefetch = 0 : i64, scratch_operands = 0 : i64, tpu.core_type = #tpu.core_type<tc>, window_params = [{transform_indices = @transform_0, window_bounds = array<i64: 1, 328, 8>}, {pipeline_mode = #tpu.pipeline_mode<synchronous>, transform_indices = @transform_1, window_bounds = array<i64: 72, 128>}, {pipeline_mode = #tpu.pipeline_mode<synchronous>, transform_indices = @transform_2, window_bounds = array<i64: 1, 128>}, {transform_indices = @transform_3, window_bounds = array<i64: 1, 288, 128>}]} {
    %c288_i32 = arith.constant 288 : i32
    %0 = arith.muli %arg1, %c288_i32 : i32
    %1 = tpu.assume_multiple %0, 8 : i32
    %cst = arith.constant 0.000000e+00 : f32
    %2 = vector.broadcast %cst : f32 to vector<288x128xf32>
    %c0_i32 = arith.constant 0 : i32
    %3 = arith.addi %1, %c0_i32 : i32
    %c0 = arith.constant 0 : index
    %4 = arith.index_cast %3 : i32 to index
    %c0_0 = arith.constant 0 : index
    %5 = vector.load %arg2[%c0, %4, %c0_0] : memref<1x328x8xf32, #tpu.memory_space<vmem>>, vector<1x288x8xf32>
    %6 = vector.shape_cast %5 : vector<1x288x8xf32> to vector<288x8xf32>
    %7 = arith.truncf %6 : vector<288x8xf32> to vector<288x8xbf16>
    %c0_1 = arith.constant 0 : index
    %c0_2 = arith.constant 0 : index
    %8 = vector.load %arg3[%c0_1, %c0_2] : memref<72x128xbf16, #tpu.memory_space<vmem>>, vector<8x128xbf16>
    %cst_3 = arith.constant dense<0.000000e+00> : vector<288x128xf32>
    %9 = tpu.matmul %7, %8, %cst_3 {dimension_numbers = #tpu.dot_dimension_numbers<[1], [0], [0], [1], [0, 0, 1, 1], [], []>} : vector<288x8xbf16>, vector<8x128xbf16>, vector<288x128xf32> -> vector<288x128xf32>
    %10 = arith.addf %2, %9 : vector<288x128xf32>
    %c1_i32 = arith.constant 1 : i32
    %11 = arith.addi %1, %c1_i32 : i32
    %c0_4 = arith.constant 0 : index
    %12 = arith.index_cast %11 : i32 to index
    %c0_5 = arith.constant 0 : index
    %13 = vector.load %arg2[%c0_4, %12, %c0_5] : memref<1x328x8xf32, #tpu.memory_space<vmem>>, vector<1x288x8xf32>
    %14 = vector.shape_cast %13 : vector<1x288x8xf32> to vector<288x8xf32>
    %15 = arith.truncf %14 : vector<288x8xf32> to vector<288x8xbf16>
    %c8 = arith.constant 8 : index
    %c0_6 = arith.constant 0 : index
    %16 = vector.load %arg3[%c8, %c0_6] : memref<72x128xbf16, #tpu.memory_space<vmem>>, vector<8x128xbf16>
    %cst_7 = arith.constant dense<0.000000e+00> : vector<288x128xf32>
    %17 = tpu.matmul %15, %16, %cst_7 {dimension_numbers = #tpu.dot_dimension_numbers<[1], [0], [0], [1], [0, 0, 1, 1], [], []>} : vector<288x8xbf16>, vector<8x128xbf16>, vector<288x128xf32> -> vector<288x128xf32>
    %18 = arith.addf %10, %17 : vector<288x128xf32>
    %c2_i32 = arith.constant 2 : i32
    %19 = arith.addi %1, %c2_i32 : i32
    %c0_8 = arith.constant 0 : index
    %20 = arith.index_cast %19 : i32 to index
    %c0_9 = arith.constant 0 : index
    %21 = vector.load %arg2[%c0_8, %20, %c0_9] : memref<1x328x8xf32, #tpu.memory_space<vmem>>, vector<1x288x8xf32>
    %22 = vector.shape_cast %21 : vector<1x288x8xf32> to vector<288x8xf32>
    %23 = arith.truncf %22 : vector<288x8xf32> to vector<288x8xbf16>
    %c16 = arith.constant 16 : index
    %c0_10 = arith.constant 0 : index
    %24 = vector.load %arg3[%c16, %c0_10] : memref<72x128xbf16, #tpu.memory_space<vmem>>, vector<8x128xbf16>
    %cst_11 = arith.constant dense<0.000000e+00> : vector<288x128xf32>
    %25 = tpu.matmul %23, %24, %cst_11 {dimension_numbers = #tpu.dot_dimension_numbers<[1], [0], [0], [1], [0, 0, 1, 1], [], []>} : vector<288x8xbf16>, vector<8x128xbf16>, vector<288x128xf32> -> vector<288x128xf32>
    %26 = arith.addf %18, %25 : vector<288x128xf32>
    %c18_i32 = arith.constant 18 : i32
    %27 = arith.addi %1, %c18_i32 : i32
    %c0_12 = arith.constant 0 : index
    %28 = arith.index_cast %27 : i32 to index
    %c0_13 = arith.constant 0 : index
    %29 = vector.load %arg2[%c0_12, %28, %c0_13] : memref<1x328x8xf32, #tpu.memory_space<vmem>>, vector<1x288x8xf32>
    %30 = vector.shape_cast %29 : vector<1x288x8xf32> to vector<288x8xf32>
    %31 = arith.truncf %30 : vector<288x8xf32> to vector<288x8xbf16>
    %c24 = arith.constant 24 : index
    %c0_14 = arith.constant 0 : index
    %32 = vector.load %arg3[%c24, %c0_14] : memref<72x128xbf16, #tpu.memory_space<vmem>>, vector<8x128xbf16>
    %cst_15 = arith.constant dense<0.000000e+00> : vector<288x128xf32>
    %33 = tpu.matmul %31, %32, %cst_15 {dimension_numbers = #tpu.dot_dimension_numbers<[1], [0], [0], [1], [0, 0, 1, 1], [], []>} : vector<288x8xbf16>, vector<8x128xbf16>, vector<288x128xf32> -> vector<288x128xf32>
    %34 = arith.addf %26, %33 : vector<288x128xf32>
    %c19_i32 = arith.constant 19 : i32
    %35 = arith.addi %1, %c19_i32 : i32
    %c0_16 = arith.constant 0 : index
    %36 = arith.index_cast %35 : i32 to index
    %c0_17 = arith.constant 0 : index
    %37 = vector.load %arg2[%c0_16, %36, %c0_17] : memref<1x328x8xf32, #tpu.memory_space<vmem>>, vector<1x288x8xf32>
    %38 = vector.shape_cast %37 : vector<1x288x8xf32> to vector<288x8xf32>
    %39 = arith.truncf %38 : vector<288x8xf32> to vector<288x8xbf16>
    %c32 = arith.constant 32 : index
    %c0_18 = arith.constant 0 : index
    %40 = vector.load %arg3[%c32, %c0_18] : memref<72x128xbf16, #tpu.memory_space<vmem>>, vector<8x128xbf16>
    %cst_19 = arith.constant dense<0.000000e+00> : vector<288x128xf32>
    %41 = tpu.matmul %39, %40, %cst_19 {dimension_numbers = #tpu.dot_dimension_numbers<[1], [0], [0], [1], [0, 0, 1, 1], [], []>} : vector<288x8xbf16>, vector<8x128xbf16>, vector<288x128xf32> -> vector<288x128xf32>
    %42 = arith.addf %34, %41 : vector<288x128xf32>
    %c20_i32 = arith.constant 20 : i32
    %43 = arith.addi %1, %c20_i32 : i32
    %c0_20 = arith.constant 0 : index
    %44 = arith.index_cast %43 : i32 to index
    %c0_21 = arith.constant 0 : index
    %45 = vector.load %arg2[%c0_20, %44, %c0_21] : memref<1x328x8xf32, #tpu.memory_space<vmem>>, vector<1x288x8xf32>
    %46 = vector.shape_cast %45 : vector<1x288x8xf32> to vector<288x8xf32>
    %47 = arith.truncf %46 : vector<288x8xf32> to vector<288x8xbf16>
    %c40 = arith.constant 40 : index
    %c0_22 = arith.constant 0 : index
    %48 = vector.load %arg3[%c40, %c0_22] : memref<72x128xbf16, #tpu.memory_space<vmem>>, vector<8x128xbf16>
    %cst_23 = arith.constant dense<0.000000e+00> : vector<288x128xf32>
    %49 = tpu.matmul %47, %48, %cst_23 {dimension_numbers = #tpu.dot_dimension_numbers<[1], [0], [0], [1], [0, 0, 1, 1], [], []>} : vector<288x8xbf16>, vector<8x128xbf16>, vector<288x128xf32> -> vector<288x128xf32>
    %50 = arith.addf %42, %49 : vector<288x128xf32>
    %c36_i32 = arith.constant 36 : i32
    %51 = arith.addi %1, %c36_i32 : i32
    %c0_24 = arith.constant 0 : index
    %52 = arith.index_cast %51 : i32 to index
    %c0_25 = arith.constant 0 : index
    %53 = vector.load %arg2[%c0_24, %52, %c0_25] : memref<1x328x8xf32, #tpu.memory_space<vmem>>, vector<1x288x8xf32>
    %54 = vector.shape_cast %53 : vector<1x288x8xf32> to vector<288x8xf32>
    %55 = arith.truncf %54 : vector<288x8xf32> to vector<288x8xbf16>
    %c48 = arith.constant 48 : index
    %c0_26 = arith.constant 0 : index
    %56 = vector.load %arg3[%c48, %c0_26] : memref<72x128xbf16, #tpu.memory_space<vmem>>, vector<8x128xbf16>
    %cst_27 = arith.constant dense<0.000000e+00> : vector<288x128xf32>
    %57 = tpu.matmul %55, %56, %cst_27 {dimension_numbers = #tpu.dot_dimension_numbers<[1], [0], [0], [1], [0, 0, 1, 1], [], []>} : vector<288x8xbf16>, vector<8x128xbf16>, vector<288x128xf32> -> vector<288x128xf32>
    %58 = arith.addf %50, %57 : vector<288x128xf32>
    %c37_i32 = arith.constant 37 : i32
    %59 = arith.addi %1, %c37_i32 : i32
    %c0_28 = arith.constant 0 : index
    %60 = arith.index_cast %59 : i32 to index
    %c0_29 = arith.constant 0 : index
    %61 = vector.load %arg2[%c0_28, %60, %c0_29] : memref<1x328x8xf32, #tpu.memory_space<vmem>>, vector<1x288x8xf32>
    %62 = vector.shape_cast %61 : vector<1x288x8xf32> to vector<288x8xf32>
    %63 = arith.truncf %62 : vector<288x8xf32> to vector<288x8xbf16>
    %c56 = arith.constant 56 : index
    %c0_30 = arith.constant 0 : index
    %64 = vector.load %arg3[%c56, %c0_30] : memref<72x128xbf16, #tpu.memory_space<vmem>>, vector<8x128xbf16>
    %cst_31 = arith.constant dense<0.000000e+00> : vector<288x128xf32>
    %65 = tpu.matmul %63, %64, %cst_31 {dimension_numbers = #tpu.dot_dimension_numbers<[1], [0], [0], [1], [0, 0, 1, 1], [], []>} : vector<288x8xbf16>, vector<8x128xbf16>, vector<288x128xf32> -> vector<288x128xf32>
    %66 = arith.addf %58, %65 : vector<288x128xf32>
    %c38_i32 = arith.constant 38 : i32
    %67 = arith.addi %1, %c38_i32 : i32
    %c0_32 = arith.constant 0 : index
    %68 = arith.index_cast %67 : i32 to index
    %c0_33 = arith.constant 0 : index
    %69 = vector.load %arg2[%c0_32, %68, %c0_33] : memref<1x328x8xf32, #tpu.memory_space<vmem>>, vector<1x288x8xf32>
    %70 = vector.shape_cast %69 : vector<1x288x8xf32> to vector<288x8xf32>
    %71 = arith.truncf %70 : vector<288x8xf32> to vector<288x8xbf16>
    %c64 = arith.constant 64 : index
    %c0_34 = arith.constant 0 : index
    %72 = vector.load %arg3[%c64, %c0_34] : memref<72x128xbf16, #tpu.memory_space<vmem>>, vector<8x128xbf16>
    %cst_35 = arith.constant dense<0.000000e+00> : vector<288x128xf32>
    %73 = tpu.matmul %71, %72, %cst_35 {dimension_numbers = #tpu.dot_dimension_numbers<[1], [0], [0], [1], [0, 0, 1, 1], [], []>} : vector<288x8xbf16>, vector<8x128xbf16>, vector<288x128xf32> -> vector<288x128xf32>
    %74 = arith.addf %66, %73 : vector<288x128xf32>
    %c0_36 = arith.constant 0 : index
    %c0_37 = arith.constant 0 : index
    %75 = vector.load %arg4[%c0_36, %c0_37] : memref<1x128xf32, #tpu.memory_space<vmem>>, vector<1x128xf32>
    %76 = vector.broadcast %75 : vector<1x128xf32> to vector<288x128xf32>
    %77 = arith.addf %74, %76 : vector<288x128xf32>
    %cst_38 = arith.constant 0.000000e+00 : f32
    %78 = vector.broadcast %cst_38 : f32 to vector<288x128xf32>
    %79 = arith.cmpf ogt, %77, %78 : vector<288x128xf32>
    %cst_39 = arith.constant 1.000000e-01 : f32
    %80 = vector.broadcast %cst_39 : f32 to vector<288x128xf32>
    %81 = arith.mulf %80, %77 : vector<288x128xf32>
    %82 = arith.select %79, %77, %81 : vector<288x128xi1>, vector<288x128xf32>
    %c0_40 = arith.constant 0 : index
    %c0_41 = arith.constant 0 : index
    %c0_42 = arith.constant 0 : index
    %83 = vector.load %arg5[%c0_40, %c0_41, %c0_42] : memref<1x288x128xf32, #tpu.memory_space<vmem>>, vector<1x288x128xf32>
    %84 = vector.shape_cast %83 : vector<1x288x128xf32> to vector<288x128xf32>
    %85 = vector.shape_cast %82 : vector<288x128xf32> to vector<1x288x128xf32>
    tpu.vector_store %arg5[%c0_40, %c0_41, %c0_42], %85 {strides = array<i32>} : memref<1x288x128xf32, #tpu.memory_space<vmem>>, vector<1x288x128xf32>,
    return
  }
  func.func @transform_0(%arg0: i32, %arg1: i32) -> (i32, i32, i32) {
    %c0_i32 = arith.constant 0 : i32
    %c0_i32_0 = arith.constant 0 : i32
    %c0_i32_1 = arith.constant 0 : i32
    return %arg0, %c0_i32, %c0_i32_0 : i32, i32, i32
  }
  func.func @transform_1(%arg0: i32, %arg1: i32) -> (i32, i32) {
    %c0_i32 = arith.constant 0 : i32
    %c0_i32_0 = arith.constant 0 : i32
    %c0_i32_1 = arith.constant 0 : i32
    return %c0_i32, %c0_i32_0 : i32, i32
  }
  func.func @transform_2(%arg0: i32, %arg1: i32) -> (i32, i32) {
    %c0_i32 = arith.constant 0 : i32
    %c0_i32_0 = arith.constant 0 : i32
    %c0_i32_1 = arith.constant 0 : i32
    return %c0_i32, %c0_i32_0 : i32, i32
  }
  func.func @transform_3(%arg0: i32, %arg1: i32) -> (i32, i32, i32) {
    %c0_i32 = arith.constant 0 : i32
    %c0_i32_0 = arith.constant 0 : i32
    return %arg0, %arg1, %c0_i32 : i32, i32, i32
  }
}

</mosaic_0001>

<llo_original>
// kernel: tpu_custom_call.1
$region0: #{tpu_custom_call.1}
  #allocation0 [shape = 'u32[]', space=smem, size = 0x4, offset = 0x4, fixed_abs, tag = 'smem constant byte address 0x4 - core index']
  #allocation1 [shape = 'u32[144,128]{1,0:T(1,128)}', space=vmem, size = 0x12000, scoped, tag = 'internal scratch']
  %s0 = inlined_call_operand.vmem [shape: f32[2,328,8], index: 0, kind: input, shape index: {}]
  %s1 = inlined_call_operand.vmem [shape: bf16[72,128], index: 1, kind: input, shape index: {}]
  %s2 = inlined_call_operand.vmem [shape: f32[1,128], index: 2, kind: input, shape index: {}]
  %s3 = inlined_call_operand.hbm [shape: f32[2,288,128], index: 3, kind: output, shape index: {}]
  %s4 = sld [smem:[#allocation0]]
  $region45: #{tpu_custom_call.1} parent=0
    _
  %s6 = ssub.s32 1, %s4
  %s7 = scalar_select 0, %s6, %s4
  $region1: #{tpu_custom_call.1} parent=0
    #allocation2 [shape = 'u8[294912]{0}', space=vmem, size = 0x48000, scoped, tag = 'output window, operand 0']
    #allocation3 [shape = 's32[2]{0}', space=sflag, size = 0x8, scoped, tag = 'scoped memory for tpu_custom_call.1']
    %8 = vsyncpa [#allocation3], 0
    %s9 = scalar_lea.sflag [#allocation3], 1
    %10 = vsyncpa %s9, 0
    loop: start=0, step=1, limit=4
    $region2: #{tpu_custom_call.1} parent=1 // loop_pre_header
      _
    $region3: #{tpu_custom_call.1} parent=1 // loop_header
      %s12 = sphi 0, %s16
      %p13 = scmp.ge.s32.totalorder %s12, 4
      %s19 = sphi 0, %s31
      %s20 = sphi 0, %s27
      %s21 = sphi 0, %s19
      %s22 = sphi 0, %s20
      %s23 = sphi 0, %s21
      %s24 = sphi 0, %s22
      %s34 = sphi 0, %s36
      %s37 = sphi 0, %s34
      %s38 = sphi 0, %s37
      %s54 = sphi 0, %s38
      %s58 = sphi 0, %s58
      %s60 = sphi 0, %s58
      %s61 = sphi 0, %s60
      %s75 = sphi 0, %s61
      %s79 = sphi 0, %s79
      %s81 = sphi 0, %s79
      %s82 = sphi 0, %s81
      %s96 = sphi 0, %s82
      %s104 = sphi 0, %s106
      %s107 = sphi 0, %s104
      %s108 = sphi 0, %s107
      %s124 = sphi 0, %s108
    $region4: #{tpu_custom_call.1} parent=1 // loop_header_branch
      %15 = sbr.rel (%p13) target = $region8
    $region5: #{tpu_custom_call.1} parent=1 // loop_body
      %s17 = ssub.s32 %s12, 1
      %s18 = ssub.s32 %s12, 2
      %s25 = sadd.s32 1, %s20
      %p26 = scmp.ge.s32.totalorder %s25, 1
      %s27 = scalar_select %p26, 0, %s25
      %s28 = sadd.s32 1, %s19
      %s29 = scalar_select %p26, %s28, %s19
      %p30 = scmp.ge.s32.totalorder %s29, 2
      %s31 = scalar_select %p30, 0, %s29
      %s32 = ssub.s32 %s19, %s31
      %p33 = scmp.eq.s32.totalorder %s32, 0
      %s35 = sadd.s32 %s34, 1
      %s36 = scalar_select %p33, %s34, %s35
      %p39 = pneg %p33
      %p40 = scmp.eq.s32.totalorder %s12, 1
      %p41 = por %p39, %p40
      %p42 = scmp.ne.s32.totalorder %s34, %s37
      %p43 = scmp.eq.s32.totalorder %s12, 0
      %p44 = por %p42, %p43
      %p45 = scmp.ne.s32.totalorder %s34, %s37
      %p46 = scmp.eq.s32.totalorder %s17, 1
      %p47 = por %p45, %p46
      %p48 = scmp.ne.s32.totalorder %s37, %s38
      %p49 = scmp.eq.s32.totalorder %s17, 0
      %p50 = por %p48, %p49
      %p51 = scmp.ne.s32.totalorder %s37, %s38
      %p52 = scmp.eq.s32.totalorder %s18, 1
      %p53 = por %p51, %p52
      %p55 = scmp.ne.s32.totalorder %s38, %s54
      %p56 = scmp.eq.s32.totalorder %s18, 0
      %p57 = por %p55, %p56
      %s59 = sadd.s32 %s58, 1
      %p62 = scmp.eq.s32.totalorder %s12, 1
      %p63 = scmp.ne.s32.totalorder %s58, %s60
      %p64 = scmp.eq.s32.totalorder %s12, 0
      %p65 = por %p63, %p64
      %p66 = scmp.ne.s32.totalorder %s58, %s60
      %p67 = scmp.eq.s32.totalorder %s17, 1
      %p68 = por %p66, %p67
      %p69 = scmp.ne.s32.totalorder %s60, %s61
      %p70 = scmp.eq.s32.totalorder %s17, 0
      %p71 = por %p69, %p70
      %p72 = scmp.ne.s32.totalorder %s60, %s61
      %p73 = scmp.eq.s32.totalorder %s18, 1
      %p74 = por %p72, %p73
      %p76 = scmp.ne.s32.totalorder %s61, %s75
      %p77 = scmp.eq.s32.totalorder %s18, 0
      %p78 = por %p76, %p77
      %s80 = sadd.s32 %s79, 1
      %p83 = scmp.eq.s32.totalorder %s12, 1
      %p84 = scmp.ne.s32.totalorder %s79, %s81
      %p85 = scmp.eq.s32.totalorder %s12, 0
      %p86 = por %p84, %p85
      %p87 = scmp.ne.s32.totalorder %s79, %s81
      %p88 = scmp.eq.s32.totalorder %s17, 1
      %p89 = por %p87, %p88
      %p90 = scmp.ne.s32.totalorder %s81, %s82
      %p91 = scmp.eq.s32.totalorder %s17, 0
      %p92 = por %p90, %p91
      %p93 = scmp.ne.s32.totalorder %s81, %s82
      %p94 = scmp.eq.s32.totalorder %s18, 1
      %p95 = por %p93, %p94
      %p97 = scmp.ne.s32.totalorder %s82, %s96
      %p98 = scmp.eq.s32.totalorder %s18, 0
      %p99 = por %p97, %p98
      %s100 = ssub.s32 %s19, %s31
      %s101 = ssub.s32 %s20, %s27
      %s102 = sor.u32 %s100, %s101
      %p103 = scmp.eq.s32.totalorder %s102, 0
      %s105 = sadd.s32 %s104, 1
      %s106 = scalar_select %p103, %s104, %s105
      %p109 = pneg %p103
      %p110 = scmp.eq.s32.totalorder %s12, 1
      %p111 = por %p109, %p110
      %p112 = scmp.ne.s32.totalorder %s104, %s107
      %p113 = scmp.eq.s32.totalorder %s12, 0
      %p114 = por %p112, %p113
      %p115 = scmp.ne.s32.totalorder %s104, %s107
      %p116 = scmp.eq.s32.totalorder %s17, 1
      %p117 = por %p115, %p116
      %p118 = scmp.ne.s32.totalorder %s107, %s108
      %p119 = scmp.eq.s32.totalorder %s17, 0
      %p120 = por %p118, %p119
      %p121 = scmp.ne.s32.totalorder %s107, %s108
      %p122 = scmp.eq.s32.totalorder %s18, 1
      %p123 = por %p121, %p122
      %p125 = scmp.ne.s32.totalorder %s108, %s124
      %p126 = scmp.eq.s32.totalorder %s18, 0
      %p127 = por %p125, %p126
      %p128 = scmp.le.s32.totalorder 1, %s12
      %p129 = scmp.lt.s32.totalorder %s12, 3
      %p130 = pnand %p128, %p129
      %p131 = pneg %p130
      // Predicated region
      $region9: #{tpu_custom_call.1} parent=5 // pred_check
        _
      $region10: #{tpu_custom_call.1} parent=5 // pred_check_branch
        %133 = sbr.rel (%p130) target = $region12
      $region11: #{tpu_custom_call.1} parent=5 // pred_region
        %s134 = ssub.s32 %s12, 1
        // Predicated region
        $region13: #{tpu_custom_call.1} parent=11 // pred_check
          %p135 = pneg %p71
        $region14: #{tpu_custom_call.1} parent=11 // pred_check_branch
          %137 = sbr.rel (%p135) target = $region16
        $region15: #{tpu_custom_call.1} parent=11 // pred_region
          _
        $region16: #{tpu_custom_call.1} parent=11 // pred_fallthru
          _
        // Predicated region
        $region17: #{tpu_custom_call.1} parent=11 // pred_check
          %p138 = pneg %p92
        $region18: #{tpu_custom_call.1} parent=11 // pred_check_branch
          %140 = sbr.rel (%p138) target = $region20
        $region19: #{tpu_custom_call.1} parent=11 // pred_region
          _
        $region20: #{tpu_custom_call.1} parent=11 // pred_fallthru
          _
      $region12: #{tpu_custom_call.1} parent=5 // pred_fallthru
        _
      %p141 = scmp.lt.s32.totalorder %s12, 2
      // Predicated region
      $region21: #{tpu_custom_call.1} parent=5 // pred_check
        %p142 = pneg %p141
      $region22: #{tpu_custom_call.1} parent=5 // pred_check_branch
        %144 = sbr.rel (%p142) target = $region24
      $region23: #{tpu_custom_call.1} parent=5 // pred_region
        // Predicated region
        $region25: #{tpu_custom_call.1} parent=23 // pred_check
          %p145 = pneg %p44
        $region26: #{tpu_custom_call.1} parent=23 // pred_check_branch
          %147 = sbr.rel (%p145) target = $region28
        $region27: #{tpu_custom_call.1} parent=23 // pred_region
          %p148 = scmp.lt.s32.totalorder %s19, 1
          %s149 = scalar_select %p148, %s19, 1
          %s150 = smul.addr %s149, 41
          %s151 = smul.addr %s150, 8
          %s152 = scalar_lea.vmem %s0, %s151
        $region28: #{tpu_custom_call.1} parent=23 // pred_fallthru
          _
      $region24: #{tpu_custom_call.1} parent=5 // pred_fallthru
        _
      %p153 = scmp.le.s32.totalorder 1, %s12
      %p154 = scmp.lt.s32.totalorder %s12, 3
      %p155 = pnand %p153, %p154
      %p156 = pneg %p155
      // Predicated region
      $region29: #{tpu_custom_call.1} parent=5 // pred_check
        _
      $region30: #{tpu_custom_call.1} parent=5 // pred_check_branch
        %158 = sbr.rel (%p155) target = $region32
      $region31: #{tpu_custom_call.1} parent=5 // pred_region
        %s159 = ssub.s32 %s12, 1
        %p160 = scmp.lt.s32.totalorder %s21, 1
        %s161 = scalar_select %p160, %s21, 1
        %s162 = smul.addr %s161, 41
        %s163 = smul.addr %s162, 8
        %s164 = scalar_lea.vmem %s0, %s163
        %p165 = pneg %p50
        %p166 = pneg %p47
        %p167 = pneg %p71
        %p168 = pneg %p68
        %p169 = pneg %p92
        %p170 = pneg %p89
        %p171 = pneg %p120
        %p172 = pneg %p117
        %s173 = sand.u32 %s107, 1
        %s174 = scalar_lea.sflag [#allocation3], %s173
        %s175 = sand.u32 %s107, 1
        %s176 = smul.addr %s175, 288
        %s177 = scalar_lea.vmem [#allocation2], %s176
        %p178 = scmp.lt.s32.totalorder %s21, 1
        %s179 = scalar_select %p178, %s21, 1
        %s180 = smul.addr %s179, 41
        %s181 = smul.addr %s180, 8
        %s182 = scalar_lea.vmem %s0, %s181
        %s183 = smul.u32 36, %s22
        %s185 = smul.u32 %s22, 288
        %s186 = scalar_lea.vmem %s182, %s185
        %v187 = vld [vmem:[%s186] sm:$0xff]
        %v188 = vld [vmem:[%s186 + $0x8] sm:$0xff]
        %v189 = vld [vmem:[%s186 + $0x10] sm:$0xff]
        %v190 = vld [vmem:[%s186 + $0x18] sm:$0xff]
        %v191 = vld [vmem:[%s186 + $0x20] sm:$0xff]
        %v192 = vld [vmem:[%s186 + $0x28] sm:$0xff]
        %v193 = vld [vmem:[%s186 + $0x30] sm:$0xff]
        %v194 = vld [vmem:[%s186 + $0x38] sm:$0xff]
        %v195 = vld [vmem:[%s186 + $0x40] sm:$0xff]
        %v196 = vld [vmem:[%s186 + $0x48] sm:$0xff]
        %v197 = vld [vmem:[%s186 + $0x50] sm:$0xff]
        %v198 = vld [vmem:[%s186 + $0x58] sm:$0xff]
        %v199 = vld [vmem:[%s186 + $0x60] sm:$0xff]
        %v200 = vld [vmem:[%s186 + $0x68] sm:$0xff]
        %v201 = vld [vmem:[%s186 + $0x70] sm:$0xff]
        %v202 = vld [vmem:[%s186 + $0x78] sm:$0xff]
        %v203 = vld [vmem:[%s186 + $0x80] sm:$0xff]
        %v204 = vld [vmem:[%s186 + $0x88] sm:$0xff]
        %v205 = vld [vmem:[%s186 + $0x90] sm:$0xff]
        %v206 = vld [vmem:[%s186 + $0x98] sm:$0xff]
        %v207 = vld [vmem:[%s186 + $0xa0] sm:$0xff]
        %v208 = vld [vmem:[%s186 + $0xa8] sm:$0xff]
        %v209 = vld [vmem:[%s186 + $0xb0] sm:$0xff]
        %v210 = vld [vmem:[%s186 + $0xb8] sm:$0xff]
        %v211 = vld [vmem:[%s186 + $0xc0] sm:$0xff]
        %v212 = vld [vmem:[%s186 + $0xc8] sm:$0xff]
        %v213 = vld [vmem:[%s186 + $0xd0] sm:$0xff]
        %v214 = vld [vmem:[%s186 + $0xd8] sm:$0xff]
        %v215 = vld [vmem:[%s186 + $0xe0] sm:$0xff]
        %v216 = vld [vmem:[%s186 + $0xe8] sm:$0xff]
        %v217 = vld [vmem:[%s186 + $0xf0] sm:$0xff]
        %v218 = vld [vmem:[%s186 + $0xf8] sm:$0xff]
        %v219 = vld [vmem:[%s186 + $0x100] sm:$0xff]
        %v220 = vld [vmem:[%s186 + $0x108] sm:$0xff]
        %v221 = vld [vmem:[%s186 + $0x110] sm:$0xff]
        %v222 = vld [vmem:[%s186 + $0x118] sm:$0xff]
        %v223 = vpack.c.bf16 %v188, %v187
        %v224 = vpack.c.bf16 %v190, %v189
        %v225 = vpack.c.bf16 %v192, %v191
        %v226 = vpack.c.bf16 %v194, %v193
        %v227 = vpack.c.bf16 %v196, %v195
        %v228 = vpack.c.bf16 %v198, %v197
        %v229 = vpack.c.bf16 %v200, %v199
        %v230 = vpack.c.bf16 %v202, %v201
        %v231 = vpack.c.bf16 %v204, %v203
        %v232 = vpack.c.bf16 %v206, %v205
        %v233 = vpack.c.bf16 %v208, %v207
        %v234 = vpack.c.bf16 %v210, %v209
        %v235 = vpack.c.bf16 %v212, %v211
        %v236 = vpack.c.bf16 %v214, %v213
        %v237 = vpack.c.bf16 %v216, %v215
        %v238 = vpack.c.bf16 %v218, %v217
        %v239 = vpack.c.bf16 %v220, %v219
        %v240 = vpack.c.bf16 %v222, %v221
        %v241 = vld [vmem:[%s1] sm:$0xf]
        %s242 = sadd.s32 %s185, 1
        %s243 = scalar_lea.vmem %s182, %s242
        %v244 = vld [vmem:[%s243] sm:$0xff]
        %v245 = vld [vmem:[%s243 + $0x8] sm:$0xff]
        %v246 = vld [vmem:[%s243 + $0x10] sm:$0xff]
        %v247 = vld [vmem:[%s243 + $0x18] sm:$0xff]
        %v248 = vld [vmem:[%s243 + $0x20] sm:$0xff]
        %v249 = vld [vmem:[%s243 + $0x28] sm:$0xff]
        %v250 = vld [vmem:[%s243 + $0x30] sm:$0xff]
        %v251 = vld [vmem:[%s243 + $0x38] sm:$0xff]
        %v252 = vld [vmem:[%s243 + $0x40] sm:$0xff]
        %v253 = vld [vmem:[%s243 + $0x48] sm:$0xff]
        %v254 = vld [vmem:[%s243 + $0x50] sm:$0xff]
        %v255 = vld [vmem:[%s243 + $0x58] sm:$0xff]
        %v256 = vld [vmem:[%s243 + $0x60] sm:$0xff]
        %v257 = vld [vmem:[%s243 + $0x68] sm:$0xff]
        %v258 = vld [vmem:[%s243 + $0x70] sm:$0xff]
        %v259 = vld [vmem:[%s243 + $0x78] sm:$0xff]
        %v260 = vld [vmem:[%s243 + $0x80] sm:$0xff]
        %v261 = vld [vmem:[%s243 + $0x88] sm:$0xff]
        %v262 = vld [vmem:[%s243 + $0x90] sm:$0xff]
        %v263 = vld [vmem:[%s243 + $0x98] sm:$0xff]
        %v264 = vld [vmem:[%s243 + $0xa0] sm:$0xff]
        %v265 = vld [vmem:[%s243 + $0xa8] sm:$0xff]
        %v266 = vld [vmem:[%s243 + $0xb0] sm:$0xff]
        %v267 = vld [vmem:[%s243 + $0xb8] sm:$0xff]
        %v268 = vld [vmem:[%s243 + $0xc0] sm:$0xff]
        %v269 = vld [vmem:[%s243 + $0xc8] sm:$0xff]
        %v270 = vld [vmem:[%s243 + $0xd0] sm:$0xff]
        %v271 = vld [vmem:[%s243 + $0xd8] sm:$0xff]
        %v272 = vld [vmem:[%s243 + $0xe0] sm:$0xff]
        %v273 = vld [vmem:[%s243 + $0xe8] sm:$0xff]
        %v274 = vld [vmem:[%s243 + $0xf0] sm:$0xff]
        %v275 = vld [vmem:[%s243 + $0xf8] sm:$0xff]
        %v276 = vld [vmem:[%s243 + $0x100] sm:$0xff]
        %v277 = vld [vmem:[%s243 + $0x108] sm:$0xff]
        %v278 = vld [vmem:[%s243 + $0x110] sm:$0xff]
        %v279 = vld [vmem:[%s243 + $0x118] sm:$0xff]
        %v280 = vpack.c.bf16 %v245, %v244
        %v281 = vpack.c.bf16 %v247, %v246
        %v282 = vpack.c.bf16 %v249, %v248
        %v283 = vpack.c.bf16 %v251, %v250
        %v284 = vpack.c.bf16 %v253, %v252
        %v285 = vpack.c.bf16 %v255, %v254
        %v286 = vpack.c.bf16 %v257, %v256
        %v287 = vpack.c.bf16 %v259, %v258
        %v288 = vpack.c.bf16 %v261, %v260
        %v289 = vpack.c.bf16 %v263, %v262
        %v290 = vpack.c.bf16 %v265, %v264
        %v291 = vpack.c.bf16 %v267, %v266
        %v292 = vpack.c.bf16 %v269, %v268
        %v293 = vpack.c.bf16 %v271, %v270
        %v294 = vpack.c.bf16 %v273, %v272
        %v295 = vpack.c.bf16 %v275, %v274
        %v296 = vpack.c.bf16 %v277, %v276
        %v297 = vpack.c.bf16 %v279, %v278
        %v298 = vld [vmem:[%s1 + $0x4] sm:$0xf]
        %vm299 = vcmask 64512
        %v301 = vsel %vm299, %v280, 0
        %v304 = vsel %vm299, %v281, 0
        %v307 = vsel %vm299, %v282, 0
        %v310 = vsel %vm299, %v283, 0
        %v313 = vsel %vm299, %v284, 0
        %v316 = vsel %vm299, %v285, 0
        %v319 = vsel %vm299, %v286, 0
        %v322 = vsel %vm299, %v287, 0
        %v325 = vsel %vm299, %v288, 0
        %v328 = vsel %vm299, %v289, 0
        %v331 = vsel %vm299, %v290, 0
        %v334 = vsel %vm299, %v291, 0
        %v337 = vsel %vm299, %v292, 0
        %v340 = vsel %vm299, %v293, 0
        %v343 = vsel %vm299, %v294, 0
        %v346 = vsel %vm299, %v295, 0
        %v349 = vsel %vm299, %v296, 0
        %v352 = vsel %vm299, %v297, 0
        %vm354 = vcmask 1043456
        %v356 = vsel %vm354, %v298, 0
        %358 = vmatprep.subr.bf16.mxu0 0
        %359 = vmatpush1.bf16.msra.mxu0 %v356
        %360 = vmatprep.subr.bf16.mxu0 0
        %361 = vmatpush1.bf16.msra.mxu0 0
        %362 = vmatprep.subr.bf16.mxu0 0
        %363 = vmatpush1.bf16.msra.mxu0 0
        %364 = vmatprep.subr.bf16.mxu0 0
        %365 = vmatpush1.bf16.msra.mxu0 0
        %366 = vmatprep.subr.bf16.mxu0 0
        %367 = vmatpush1.bf16.msra.mxu0 0
        %368 = vmatprep.subr.bf16.mxu0 0
        %369 = vmatpush1.bf16.msra.mxu0 0
        %370 = vmatprep.subr.bf16.mxu0 0
        %371 = vmatpush1.bf16.msra.mxu0 0
        %372 = vmatprep.subr.bf16.mxu0 0
        %373 = vmatpush1.bf16.msra.mxu0 0
        %374 = vmatprep.subr.bf16.mxu0 0
        %375 = vmatpush1.bf16.msra.mxu0 0
        %376 = vmatprep.subr.bf16.mxu0 0
        %377 = vmatpush1.bf16.msra.mxu0 0
        %378 = vmatprep.subr.bf16.mxu0 0
        %379 = vmatpush1.bf16.msra.mxu0 0
        %380 = vmatprep.subr.bf16.mxu0 0
        %381 = vmatpush1.bf16.msra.mxu0 0
        %382 = vmatprep.subr.bf16.mxu0 0
        %383 = vmatpush1.bf16.msra.mxu0 0
        %384 = vmatprep.subr.bf16.mxu0 0
        %385 = vmatpush1.bf16.msra.mxu0 0
        %386 = vmatprep.subr.bf16.mxu0 0
        %387 = vmatpush1.bf16.msra.mxu0 0
        %388 = vmatprep.subr.bf16.mxu0 0
        %389 = vmatpush1.bf16.msra.mxu0 0
        %390 = vmatprep.mubr.bf16.mxu0 0
        %391 = vmatmul.mubr.bf16.gmra.mrb[0].mxu0 %v301
        %v392 = vpop.f32.mrb[0].mxu0
        %v393 = vadd.f32 0.0, %v392
        %v394 = vpop.f32.mrb[0].mxu0
        %v395 = vpop.f32.mrb[0].mxu0
        %v396 = vadd.f32 0.0, %v395
        %v397 = vpop.f32.mrb[0].mxu0
        %398 = vmatprep.mubr.bf16.mxu0 0
        %399 = vmatmul.mubr.bf16.gmra.mrb[0].mxu0 %v304
        %v400 = vpop.f32.mrb[0].mxu0
        %v401 = vadd.f32 0.0, %v400
        %v402 = vpop.f32.mrb[0].mxu0
        %v403 = vpop.f32.mrb[0].mxu0
        %v404 = vadd.f32 0.0, %v403
        %v405 = vpop.f32.mrb[0].mxu0
        %406 = vmatprep.mubr.bf16.mxu0 0
        %407 = vmatmul.mubr.bf16.gmra.mrb[0].mxu0 %v307
        %v408 = vpop.f32.mrb[0].mxu0
        %v409 = vadd.f32 0.0, %v408
        %v410 = vpop.f32.mrb[0].mxu0
        %v411 = vpop.f32.mrb[0].mxu0
        %v412 = vadd.f32 0.0, %v411
        %v413 = vpop.f32.mrb[0].mxu0
        %414 = vmatprep.mubr.bf16.mxu0 0
        %415 = vmatmul.mubr.bf16.gmra.mrb[0].mxu0 %v310
        %v416 = vpop.f32.mrb[0].mxu0
        %v417 = vadd.f32 0.0, %v416
        %v418 = vpop.f32.mrb[0].mxu0
        %v419 = vpop.f32.mrb[0].mxu0
        %v420 = vadd.f32 0.0, %v419
        %v421 = vpop.f32.mrb[0].mxu0
        %422 = vmatprep.mubr.bf16.mxu0 0
        %423 = vmatmul.mubr.bf16.gmra.mrb[0].mxu0 %v313
        %v424 = vpop.f32.mrb[0].mxu0
        %v425 = vadd.f32 0.0, %v424
        %v426 = vpop.f32.mrb[0].mxu0
        %v427 = vpop.f32.mrb[0].mxu0
        %v428 = vadd.f32 0.0, %v427
        %v429 = vpop.f32.mrb[0].mxu0
        %430 = vmatprep.mubr.bf16.mxu0 0
        %431 = vmatmul.mubr.bf16.gmra.mrb[0].mxu0 %v316
        %v432 = vpop.f32.mrb[0].mxu0
        %v433 = vadd.f32 0.0, %v432
        %v434 = vpop.f32.mrb[0].mxu0
        %v435 = vpop.f32.mrb[0].mxu0
        %v436 = vadd.f32 0.0, %v435
        %v437 = vpop.f32.mrb[0].mxu0
        %438 = vmatprep.mubr.bf16.mxu0 0
        %439 = vmatmul.mubr.bf16.gmra.mrb[0].mxu0 %v319
        %v440 = vpop.f32.mrb[0].mxu0
        %v441 = vadd.f32 0.0, %v440
        %v442 = vpop.f32.mrb[0].mxu0
        %v443 = vpop.f32.mrb[0].mxu0
        %v444 = vadd.f32 0.0, %v443
        %v445 = vpop.f32.mrb[0].mxu0
        %446 = vmatprep.mubr.bf16.mxu0 0
        %447 = vmatmul.mubr.bf16.gmra.mrb[0].mxu0 %v322
        %v448 = vpop.f32.mrb[0].mxu0
        %v449 = vadd.f32 0.0, %v448
        %v450 = vpop.f32.mrb[0].mxu0
        %v451 = vpop.f32.mrb[0].mxu0
        %v452 = vadd.f32 0.0, %v451
        %v453 = vpop.f32.mrb[0].mxu0
        %454 = vmatprep.mubr.bf16.mxu0 0
        %455 = vmatmul.mubr.bf16.gmra.mrb[0].mxu0 %v325
        %v456 = vpop.f32.mrb[0].mxu0
        %v457 = vadd.f32 0.0, %v456
        %v458 = vpop.f32.mrb[0].mxu0
        %v459 = vpop.f32.mrb[0].mxu0
        %v460 = vadd.f32 0.0, %v459
        %v461 = vpop.f32.mrb[0].mxu0
        %462 = vmatprep.mubr.bf16.mxu0 0
        %463 = vmatmul.mubr.bf16.gmra.mrb[0].mxu0 %v328
        %v464 = vpop.f32.mrb[0].mxu0
        %v465 = vadd.f32 0.0, %v464
        %v466 = vpop.f32.mrb[0].mxu0
        %v467 = vpop.f32.mrb[0].mxu0
        %v468 = vadd.f32 0.0, %v467
        %v469 = vpop.f32.mrb[0].mxu0
        %470 = vmatprep.mubr.bf16.mxu0 0
        %471 = vmatmul.mubr.bf16.gmra.mrb[0].mxu0 %v331
        %v472 = vpop.f32.mrb[0].mxu0
        %v473 = vadd.f32 0.0, %v472
        %v474 = vpop.f32.mrb[0].mxu0
        %v475 = vpop.f32.mrb[0].mxu0
        %v476 = vadd.f32 0.0, %v475
        %v477 = vpop.f32.mrb[0].mxu0
        %478 = vmatprep.mubr.bf16.mxu0 0
        %479 = vmatmul.mubr.bf16.gmra.mrb[0].mxu0 %v334
        %v480 = vpop.f32.mrb[0].mxu0
        %v481 = vadd.f32 0.0, %v480
        %v482 = vpop.f32.mrb[0].mxu0
        %v483 = vpop.f32.mrb[0].mxu0
        %v484 = vadd.f32 0.0, %v483
        %v485 = vpop.f32.mrb[0].mxu0
        %486 = vmatprep.mubr.bf16.mxu0 0
        %487 = vmatmul.mubr.bf16.gmra.mrb[0].mxu0 %v337
        %v488 = vpop.f32.mrb[0].mxu0
        %v489 = vadd.f32 0.0, %v488
        %v490 = vpop.f32.mrb[0].mxu0
        %v491 = vpop.f32.mrb[0].mxu0
        %v492 = vadd.f32 0.0, %v491
        %v493 = vpop.f32.mrb[0].mxu0
        %494 = vmatprep.mubr.bf16.mxu0 0
        %495 = vmatmul.mubr.bf16.gmra.mrb[0].mxu0 %v340
        %v496 = vpop.f32.mrb[0].mxu0
        %v497 = vadd.f32 0.0, %v496
        %v498 = vpop.f32.mrb[0].mxu0
        %v499 = vpop.f32.mrb[0].mxu0
        %v500 = vadd.f32 0.0, %v499
        %v501 = vpop.f32.mrb[0].mxu0
        %502 = vmatprep.mubr.bf16.mxu0 0
        %503 = vmatmul.mubr.bf16.gmra.mrb[0].mxu0 %v343
        %v504 = vpop.f32.mrb[0].mxu0
        %v505 = vadd.f32 0.0, %v504
        %v506 = vpop.f32.mrb[0].mxu0
        %v507 = vpop.f32.mrb[0].mxu0
        %v508 = vadd.f32 0.0, %v507
        %v509 = vpop.f32.mrb[0].mxu0
        %510 = vmatprep.mubr.bf16.mxu0 0
        %511 = vmatmul.mubr.bf16.gmra.mrb[0].mxu0 %v346
        %v512 = vpop.f32.mrb[0].mxu0
        %v513 = vadd.f32 0.0, %v512
        %v514 = vpop.f32.mrb[0].mxu0
        %v515 = vpop.f32.mrb[0].mxu0
        %v516 = vadd.f32 0.0, %v515
        %v517 = vpop.f32.mrb[0].mxu0
        %518 = vmatprep.mubr.bf16.mxu0 0
        %519 = vmatmul.mubr.bf16.gmra.mrb[0].mxu0 %v349
        %v520 = vpop.f32.mrb[0].mxu0
        %v521 = vadd.f32 0.0, %v520
        %v522 = vpop.f32.mrb[0].mxu0
        %v523 = vpop.f32.mrb[0].mxu0
        %v524 = vadd.f32 0.0, %v523
        %v525 = vpop.f32.mrb[0].mxu0
        %526 = vmatprep.mubr.bf16.mxu0 0
        %527 = vmatmul.mubr.bf16.gmra.mrb[0].mxu0 %v352
        %v528 = vpop.f32.mrb[0].mxu0
        %v529 = vadd.f32 0.0, %v528
        %v530 = vpop.f32.mrb[0].mxu0
        %v531 = vpop.f32.mrb[0].mxu0
        %v532 = vadd.f32 0.0, %v531
        %v533 = vpop.f32.mrb[0].mxu0
        %534 = vdwg.mxu0
        %v536 = vsel %vm299, %v223, 0
        %v539 = vsel %vm299, %v224, 0
        %v542 = vsel %vm299, %v225, 0
        %v545 = vsel %vm299, %v226, 0
        %v548 = vsel %vm299, %v227, 0
        %v551 = vsel %vm299, %v228, 0
        %v554 = vsel %vm299, %v229, 0
        %v557 = vsel %vm299, %v230, 0
        %v560 = vsel %vm299, %v231, 0
        %v563 = vsel %vm299, %v232, 0
        %v566 = vsel %vm299, %v233, 0
        %v569 = vsel %vm299, %v234, 0
        %v572 = vsel %vm299, %v235, 0
        %v575 = vsel %vm299, %v236, 0
        %v578 = vsel %vm299, %v237, 0
        %v581 = vsel %vm299, %v238, 0
        %v584 = vsel %vm299, %v239, 0
        %v587 = vsel %vm299, %v240, 0
        %v590 = vsel %vm354, %v241, 0
        %592 = vmatprep.subr.bf16.mxu0 0
        %593 = vmatpush1.bf16.msra.mxu0 %v590
        %594 = vmatprep.subr.bf16.mxu0 0
        %595 = vmatpush1.bf16.msra.mxu0 0
        %596 = vmatprep.subr.bf16.mxu0 0
        %597 = vmatpush1.bf16.msra.mxu0 0
        %598 = vmatprep.subr.bf16.mxu0 0
        %599 = vmatpush1.bf16.msra.mxu0 0
        %600 = vmatprep.subr.bf16.mxu0 0
        %601 = vmatpush1.bf16.msra.mxu0 0
        %602 = vmatprep.subr.bf16.mxu0 0
        %603 = vmatpush1.bf16.msra.mxu0 0
        %604 = vmatprep.subr.bf16.mxu0 0
        %605 = vmatpush1.bf16.msra.mxu0 0
        %606 = vmatprep.subr.bf16.mxu0 0
        %607 = vmatpush1.bf16.msra.mxu0 0
        %608 = vmatprep.subr.bf16.mxu0 0
        %609 = vmatpush1.bf16.msra.mxu0 0
        %610 = vmatprep.subr.bf16.mxu0 0
        %611 = vmatpush1.bf16.msra.mxu0 0
        %612 = vmatprep.subr.bf16.mxu0 0
        %613 = vmatpush1.bf16.msra.mxu0 0
        %614 = vmatprep.subr.bf16.mxu0 0
        %615 = vmatpush1.bf16.msra.mxu0 0
        %616 = vmatprep.subr.bf16.mxu0 0
        %617 = vmatpush1.bf16.msra.mxu0 0
        %618 = vmatprep.subr.bf16.mxu0 0
        %619 = vmatpush1.bf16.msra.mxu0 0
        %620 = vmatprep.subr.bf16.mxu0 0
        %621 = vmatpush1.bf16.msra.mxu0 0
        %622 = vmatprep.subr.bf16.mxu0 0
        %623 = vmatpush1.bf16.msra.mxu0 0
        %624 = vmatprep.mubr.bf16.mxu0 0
        %625 = vmatmul.mubr.bf16.gmra.mrb[0].mxu0 %v536
        %v626 = vpop.f32.mrb[0].mxu0
        %v627 = vadd.f32 %v393, %v626
        %v628 = vpop.f32.mrb[0].mxu0
        %v629 = vpop.f32.mrb[0].mxu0
        %v630 = vadd.f32 %v396, %v629
        %v631 = vpop.f32.mrb[0].mxu0
        %632 = vmatprep.mubr.bf16.mxu0 0
        %633 = vmatmul.mubr.bf16.gmra.mrb[0].mxu0 %v539
        %v634 = vpop.f32.mrb[0].mxu0
        %v635 = vadd.f32 %v401, %v634
        %v636 = vpop.f32.mrb[0].mxu0
        %v637 = vpop.f32.mrb[0].mxu0
        %v638 = vadd.f32 %v404, %v637
        %v639 = vpop.f32.mrb[0].mxu0
        %640 = vmatprep.mubr.bf16.mxu0 0
        %641 = vmatmul.mubr.bf16.gmra.mrb[0].mxu0 %v542
        %v642 = vpop.f32.mrb[0].mxu0
        %v643 = vadd.f32 %v409, %v642
        %v644 = vpop.f32.mrb[0].mxu0
        %v645 = vpop.f32.mrb[0].mxu0
        %v646 = vadd.f32 %v412, %v645
        %v647 = vpop.f32.mrb[0].mxu0
        %648 = vmatprep.mubr.bf16.mxu0 0
        %649 = vmatmul.mubr.bf16.gmra.mrb[0].mxu0 %v545
        %v650 = vpop.f32.mrb[0].mxu0
        %v651 = vadd.f32 %v417, %v650
        %v652 = vpop.f32.mrb[0].mxu0
        %v653 = vpop.f32.mrb[0].mxu0
        %v654 = vadd.f32 %v420, %v653
        %v655 = vpop.f32.mrb[0].mxu0
        %656 = vmatprep.mubr.bf16.mxu0 0
        %657 = vmatmul.mubr.bf16.gmra.mrb[0].mxu0 %v548
        %v658 = vpop.f32.mrb[0].mxu0
        %v659 = vadd.f32 %v425, %v658
        %v660 = vpop.f32.mrb[0].mxu0
        %v661 = vpop.f32.mrb[0].mxu0
        %v662 = vadd.f32 %v428, %v661
        %v663 = vpop.f32.mrb[0].mxu0
        %664 = vmatprep.mubr.bf16.mxu0 0
        %665 = vmatmul.mubr.bf16.gmra.mrb[0].mxu0 %v551
        %v666 = vpop.f32.mrb[0].mxu0
        %v667 = vadd.f32 %v433, %v666
        %v668 = vpop.f32.mrb[0].mxu0
        %v669 = vpop.f32.mrb[0].mxu0
        %v670 = vadd.f32 %v436, %v669
        %v671 = vpop.f32.mrb[0].mxu0
        %672 = vmatprep.mubr.bf16.mxu0 0
        %673 = vmatmul.mubr.bf16.gmra.mrb[0].mxu0 %v554
        %v674 = vpop.f32.mrb[0].mxu0
        %v675 = vadd.f32 %v441, %v674
        %v676 = vpop.f32.mrb[0].mxu0
        %v677 = vpop.f32.mrb[0].mxu0
        %v678 = vadd.f32 %v444, %v677
        %v679 = vpop.f32.mrb[0].mxu0
        %680 = vmatprep.mubr.bf16.mxu0 0
        %681 = vmatmul.mubr.bf16.gmra.mrb[0].mxu0 %v557
        %v682 = vpop.f32.mrb[0].mxu0
        %v683 = vadd.f32 %v449, %v682
        %v684 = vpop.f32.mrb[0].mxu0
        %v685 = vpop.f32.mrb[0].mxu0
        %v686 = vadd.f32 %v452, %v685
        %v687 = vpop.f32.mrb[0].mxu0
        %688 = vmatprep.mubr.bf16.mxu0 0
        %689 = vmatmul.mubr.bf16.gmra.mrb[0].mxu0 %v560
        %v690 = vpop.f32.mrb[0].mxu0
        %v691 = vadd.f32 %v457, %v690
        %v692 = vpop.f32.mrb[0].mxu0
        %v693 = vpop.f32.mrb[0].mxu0
        %v694 = vadd.f32 %v460, %v693
        %v695 = vpop.f32.mrb[0].mxu0
        %696 = vmatprep.mubr.bf16.mxu0 0
        %697 = vmatmul.mubr.bf16.gmra.mrb[0].mxu0 %v563
        %v698 = vpop.f32.mrb[0].mxu0
        %v699 = vadd.f32 %v465, %v698
        %v700 = vpop.f32.mrb[0].mxu0
        %v701 = vpop.f32.mrb[0].mxu0
        %v702 = vadd.f32 %v468, %v701
        %v703 = vpop.f32.mrb[0].mxu0
        %704 = vmatprep.mubr.bf16.mxu0 0
        %705 = vmatmul.mubr.bf16.gmra.mrb[0].mxu0 %v566
        %v706 = vpop.f32.mrb[0].mxu0
        %v707 = vadd.f32 %v473, %v706
        %v708 = vpop.f32.mrb[0].mxu0
        %v709 = vpop.f32.mrb[0].mxu0
        %v710 = vadd.f32 %v476, %v709
        %v711 = vpop.f32.mrb[0].mxu0
        %712 = vmatprep.mubr.bf16.mxu0 0
        %713 = vmatmul.mubr.bf16.gmra.mrb[0].mxu0 %v569
        %v714 = vpop.f32.mrb[0].mxu0
        %v715 = vadd.f32 %v481, %v714
        %v716 = vpop.f32.mrb[0].mxu0
        %v717 = vpop.f32.mrb[0].mxu0
        %v718 = vadd.f32 %v484, %v717
        %v719 = vpop.f32.mrb[0].mxu0
        %720 = vmatprep.mubr.bf16.mxu0 0
        %721 = vmatmul.mubr.bf16.gmra.mrb[0].mxu0 %v572
        %v722 = vpop.f32.mrb[0].mxu0
        %v723 = vadd.f32 %v489, %v722
        %v724 = vpop.f32.mrb[0].mxu0
        %v725 = vpop.f32.mrb[0].mxu0
        %v726 = vadd.f32 %v492, %v725
        %v727 = vpop.f32.mrb[0].mxu0
        %728 = vmatprep.mubr.bf16.mxu0 0
        %729 = vmatmul.mubr.bf16.gmra.mrb[0].mxu0 %v575
        %v730 = vpop.f32.mrb[0].mxu0
        %v731 = vadd.f32 %v497, %v730
        %v732 = vpop.f32.mrb[0].mxu0
        %v733 = vpop.f32.mrb[0].mxu0
        %v734 = vadd.f32 %v500, %v733
        %v735 = vpop.f32.mrb[0].mxu0
        %736 = vmatprep.mubr.bf16.mxu0 0
        %737 = vmatmul.mubr.bf16.gmra.mrb[0].mxu0 %v578
        %v738 = vpop.f32.mrb[0].mxu0
        %v739 = vadd.f32 %v505, %v738
        %v740 = vpop.f32.mrb[0].mxu0
        %v741 = vpop.f32.mrb[0].mxu0
        %v742 = vadd.f32 %v508, %v741
        %v743 = vpop.f32.mrb[0].mxu0
        %744 = vmatprep.mubr.bf16.mxu0 0
        %745 = vmatmul.mubr.bf16.gmra.mrb[0].mxu0 %v581
        %v746 = vpop.f32.mrb[0].mxu0
        %v747 = vadd.f32 %v513, %v746
        %v748 = vpop.f32.mrb[0].mxu0
        %v749 = vpop.f32.mrb[0].mxu0
        %v750 = vadd.f32 %v516, %v749
        %v751 = vpop.f32.mrb[0].mxu0
        %752 = vmatprep.mubr.bf16.mxu0 0
        %753 = vmatmul.mubr.bf16.gmra.mrb[0].mxu0 %v584
        %v754 = vpop.f32.mrb[0].mxu0
        %v755 = vadd.f32 %v521, %v754
        %v756 = vpop.f32.mrb[0].mxu0
        %v757 = vpop.f32.mrb[0].mxu0
        %v758 = vadd.f32 %v524, %v757
        %v759 = vpop.f32.mrb[0].mxu0
        %760 = vmatprep.mubr.bf16.mxu0 0
        %761 = vmatmul.mubr.bf16.gmra.mrb[0].mxu0 %v587
        %v762 = vpop.f32.mrb[0].mxu0
        %v763 = vadd.f32 %v529, %v762
        %v764 = vpop.f32.mrb[0].mxu0
        %v765 = vpop.f32.mrb[0].mxu0
        %v766 = vadd.f32 %v532, %v765
        %v767 = vpop.f32.mrb[0].mxu0
        %768 = vdwg.mxu0
        %s769 = sadd.s32 %s185, 2
        %s770 = scalar_lea.vmem %s182, %s769
        %v771 = vld [vmem:[%s770] sm:$0xff]
        %v772 = vld [vmem:[%s770 + $0x8] sm:$0xff]
        %v773 = vld [vmem:[%s770 + $0x10] sm:$0xff]
        %v774 = vld [vmem:[%s770 + $0x18] sm:$0xff]
        %v775 = vld [vmem:[%s770 + $0x20] sm:$0xff]
        %v776 = vld [vmem:[%s770 + $0x28] sm:$0xff]
        %v777 = vld [vmem:[%s770 + $0x30] sm:$0xff]
        %v778 = vld [vmem:[%s770 + $0x38] sm:$0xff]
        %v779 = vld [vmem:[%s770 + $0x40] sm:$0xff]
        %v780 = vld [vmem:[%s770 + $0x48] sm:$0xff]
        %v781 = vld [vmem:[%s770 + $0x50] sm:$0xff]
        %v782 = vld [vmem:[%s770 + $0x58] sm:$0xff]
        %v783 = vld [vmem:[%s770 + $0x60] sm:$0xff]
        %v784 = vld [vmem:[%s770 + $0x68] sm:$0xff]
        %v785 = vld [vmem:[%s770 + $0x70] sm:$0xff]
        %v786 = vld [vmem:[%s770 + $0x78] sm:$0xff]
        %v787 = vld [vmem:[%s770 + $0x80] sm:$0xff]
        %v788 = vld [vmem:[%s770 + $0x88] sm:$0xff]
        %v789 = vld [vmem:[%s770 + $0x90] sm:$0xff]
        %v790 = vld [vmem:[%s770 + $0x98] sm:$0xff]
        %v791 = vld [vmem:[%s770 + $0xa0] sm:$0xff]
        %v792 = vld [vmem:[%s770 + $0xa8] sm:$0xff]
        %v793 = vld [vmem:[%s770 + $0xb0] sm:$0xff]
        %v794 = vld [vmem:[%s770 + $0xb8] sm:$0xff]
        %v795 = vld [vmem:[%s770 + $0xc0] sm:$0xff]
        %v796 = vld [vmem:[%s770 + $0xc8] sm:$0xff]
        %v797 = vld [vmem:[%s770 + $0xd0] sm:$0xff]
        %v798 = vld [vmem:[%s770 + $0xd8] sm:$0xff]
        %v799 = vld [vmem:[%s770 + $0xe0] sm:$0xff]
        %v800 = vld [vmem:[%s770 + $0xe8] sm:$0xff]
        %v801 = vld [vmem:[%s770 + $0xf0] sm:$0xff]
        %v802 = vld [vmem:[%s770 + $0xf8] sm:$0xff]
        %v803 = vld [vmem:[%s770 + $0x100] sm:$0xff]
        %v804 = vld [vmem:[%s770 + $0x108] sm:$0xff]
        %v805 = vld [vmem:[%s770 + $0x110] sm:$0xff]
        %v806 = vld [vmem:[%s770 + $0x118] sm:$0xff]
        %v807 = vpack.c.bf16 %v772, %v771
        %v808 = vpack.c.bf16 %v774, %v773
        %v809 = vpack.c.bf16 %v776, %v775
        %v810 = vpack.c.bf16 %v778, %v777
        %v811 = vpack.c.bf16 %v780, %v779
        %v812 = vpack.c.bf16 %v782, %v781
        %v813 = vpack.c.bf16 %v784, %v783
        %v814 = vpack.c.bf16 %v786, %v785
        %v815 = vpack.c.bf16 %v788, %v787
        %v816 = vpack.c.bf16 %v790, %v789
        %v817 = vpack.c.bf16 %v792, %v791
        %v818 = vpack.c.bf16 %v794, %v793
        %v819 = vpack.c.bf16 %v796, %v795
        %v820 = vpack.c.bf16 %v798, %v797
        %v821 = vpack.c.bf16 %v800, %v799
        %v822 = vpack.c.bf16 %v802, %v801
        %v823 = vpack.c.bf16 %v804, %v803
        %v824 = vpack.c.bf16 %v806, %v805
        %v825 = vld [vmem:[%s1 + $0x8] sm:$0xf]
        %v827 = vsel %vm299, %v807, 0
        %v830 = vsel %vm299, %v808, 0
        %v833 = vsel %vm299, %v809, 0
        %v836 = vsel %vm299, %v810, 0
        %v839 = vsel %vm299, %v811, 0
        %v842 = vsel %vm299, %v812, 0
        %v845 = vsel %vm299, %v813, 0
        %v848 = vsel %vm299, %v814, 0
        %v851 = vsel %vm299, %v815, 0
        %v854 = vsel %vm299, %v816, 0
        %v857 = vsel %vm299, %v817, 0
        %v860 = vsel %vm299, %v818, 0
        %v863 = vsel %vm299, %v819, 0
        %v866 = vsel %vm299, %v820, 0
        %v869 = vsel %vm299, %v821, 0
        %v872 = vsel %vm299, %v822, 0
        %v875 = vsel %vm299, %v823, 0
        %v878 = vsel %vm299, %v824, 0
        %v881 = vsel %vm354, %v825, 0
        %883 = vmatprep.subr.bf16.mxu0 0
        %884 = vmatpush1.bf16.msra.mxu0 %v881
        %885 = vmatprep.subr.bf16.mxu0 0
        %886 = vmatpush1.bf16.msra.mxu0 0
        %887 = vmatprep.subr.bf16.mxu0 0
        %888 = vmatpush1.bf16.msra.mxu0 0
        %889 = vmatprep.subr.bf16.mxu0 0
        %890 = vmatpush1.bf16.msra.mxu0 0
        %891 = vmatprep.subr.bf16.mxu0 0
        %892 = vmatpush1.bf16.msra.mxu0 0
        %893 = vmatprep.subr.bf16.mxu0 0
        %894 = vmatpush1.bf16.msra.mxu0 0
        %895 = vmatprep.subr.bf16.mxu0 0
        %896 = vmatpush1.bf16.msra.mxu0 0
        %897 = vmatprep.subr.bf16.mxu0 0
        %898 = vmatpush1.bf16.msra.mxu0 0
        %899 = vmatprep.subr.bf16.mxu0 0
        %900 = vmatpush1.bf16.msra.mxu0 0
        %901 = vmatprep.subr.bf16.mxu0 0
        %902 = vmatpush1.bf16.msra.mxu0 0
        %903 = vmatprep.subr.bf16.mxu0 0
        %904 = vmatpush1.bf16.msra.mxu0 0
        %905 = vmatprep.subr.bf16.mxu0 0
        %906 = vmatpush1.bf16.msra.mxu0 0
        %907 = vmatprep.subr.bf16.mxu0 0
        %908 = vmatpush1.bf16.msra.mxu0 0
        %909 = vmatprep.subr.bf16.mxu0 0
        %910 = vmatpush1.bf16.msra.mxu0 0
        %911 = vmatprep.subr.bf16.mxu0 0
        %912 = vmatpush1.bf16.msra.mxu0 0
        %913 = vmatprep.subr.bf16.mxu0 0
        %914 = vmatpush1.bf16.msra.mxu0 0
        %915 = vmatprep.mubr.bf16.mxu0 0
        %916 = vmatmul.mubr.bf16.gmra.mrb[0].mxu0 %v827
        %v917 = vpop.f32.mrb[0].mxu0
        %v918 = vadd.f32 0.0, %v917
        %v919 = vpop.f32.mrb[0].mxu0
        %v920 = vpop.f32.mrb[0].mxu0
        %v921 = vadd.f32 0.0, %v920
        %v922 = vpop.f32.mrb[0].mxu0
        %923 = vmatprep.mubr.bf16.mxu0 0
        %924 = vmatmul.mubr.bf16.gmra.mrb[0].mxu0 %v830
        %v925 = vpop.f32.mrb[0].mxu0
        %v926 = vadd.f32 0.0, %v925
        %v927 = vpop.f32.mrb[0].mxu0
        %v928 = vpop.f32.mrb[0].mxu0
        %v929 = vadd.f32 0.0, %v928
        %v930 = vpop.f32.mrb[0].mxu0
        %931 = vmatprep.mubr.bf16.mxu0 0
        %932 = vmatmul.mubr.bf16.gmra.mrb[0].mxu0 %v833
        %v933 = vpop.f32.mrb[0].mxu0
        %v934 = vadd.f32 0.0, %v933
        %v935 = vpop.f32.mrb[0].mxu0
        %v936 = vpop.f32.mrb[0].mxu0
        %v937 = vadd.f32 0.0, %v936
        %v938 = vpop.f32.mrb[0].mxu0
        %939 = vmatprep.mubr.bf16.mxu0 0
        %940 = vmatmul.mubr.bf16.gmra.mrb[0].mxu0 %v836
        %v941 = vpop.f32.mrb[0].mxu0
        %v942 = vadd.f32 0.0, %v941
        %v943 = vpop.f32.mrb[0].mxu0
        %v944 = vpop.f32.mrb[0].mxu0
        %v945 = vadd.f32 0.0, %v944
        %v946 = vpop.f32.mrb[0].mxu0
        %947 = vmatprep.mubr.bf16.mxu0 0
        %948 = vmatmul.mubr.bf16.gmra.mrb[0].mxu0 %v839
        %v949 = vpop.f32.mrb[0].mxu0
        %v950 = vadd.f32 0.0, %v949
        %v951 = vpop.f32.mrb[0].mxu0
        %v952 = vpop.f32.mrb[0].mxu0
        %v953 = vadd.f32 0.0, %v952
        %v954 = vpop.f32.mrb[0].mxu0
        %955 = vmatprep.mubr.bf16.mxu0 0
        %956 = vmatmul.mubr.bf16.gmra.mrb[0].mxu0 %v842
        %v957 = vpop.f32.mrb[0].mxu0
        %v958 = vadd.f32 0.0, %v957
        %v959 = vpop.f32.mrb[0].mxu0
        %v960 = vpop.f32.mrb[0].mxu0
        %v961 = vadd.f32 0.0, %v960
        %v962 = vpop.f32.mrb[0].mxu0
        %963 = vmatprep.mubr.bf16.mxu0 0
        %964 = vmatmul.mubr.bf16.gmra.mrb[0].mxu0 %v845
        %v965 = vpop.f32.mrb[0].mxu0
        %v966 = vadd.f32 0.0, %v965
        %v967 = vpop.f32.mrb[0].mxu0
        %v968 = vpop.f32.mrb[0].mxu0
        %v969 = vadd.f32 0.0, %v968
        %v970 = vpop.f32.mrb[0].mxu0
        %971 = vmatprep.mubr.bf16.mxu0 0
        %972 = vmatmul.mubr.bf16.gmra.mrb[0].mxu0 %v848
        %v973 = vpop.f32.mrb[0].mxu0
        %v974 = vadd.f32 0.0, %v973
        %v975 = vpop.f32.mrb[0].mxu0
        %v976 = vpop.f32.mrb[0].mxu0
        %v977 = vadd.f32 0.0, %v976
        %v978 = vpop.f32.mrb[0].mxu0
        %979 = vmatprep.mubr.bf16.mxu0 0
        %980 = vmatmul.mubr.bf16.gmra.mrb[0].mxu0 %v851
        %v981 = vpop.f32.mrb[0].mxu0
        %v982 = vadd.f32 0.0, %v981
        %v983 = vpop.f32.mrb[0].mxu0
        %v984 = vpop.f32.mrb[0].mxu0
        %v985 = vadd.f32 0.0, %v984
        %v986 = vpop.f32.mrb[0].mxu0
        %987 = vmatprep.mubr.bf16.mxu0 0
        %988 = vmatmul.mubr.bf16.gmra.mrb[0].mxu0 %v854
        %v989 = vpop.f32.mrb[0].mxu0
        %v990 = vadd.f32 0.0, %v989
        %v991 = vpop.f32.mrb[0].mxu0
        %v992 = vpop.f32.mrb[0].mxu0
        %v993 = vadd.f32 0.0, %v992
        %v994 = vpop.f32.mrb[0].mxu0
        %995 = vmatprep.mubr.bf16.mxu0 0
        %996 = vmatmul.mubr.bf16.gmra.mrb[0].mxu0 %v857
        %v997 = vpop.f32.mrb[0].mxu0
        %v998 = vadd.f32 0.0, %v997
        %v999 = vpop.f32.mrb[0].mxu0
        %v1000 = vpop.f32.mrb[0].mxu0
        %v1001 = vadd.f32 0.0, %v1000
        %v1002 = vpop.f32.mrb[0].mxu0
        %1003 = vmatprep.mubr.bf16.mxu0 0
        %1004 = vmatmul.mubr.bf16.gmra.mrb[0].mxu0 %v860
        %v1005 = vpop.f32.mrb[0].mxu0
        %v1006 = vadd.f32 0.0, %v1005
        %v1007 = vpop.f32.mrb[0].mxu0
        %v1008 = vpop.f32.mrb[0].mxu0
        %v1009 = vadd.f32 0.0, %v1008
        %v1010 = vpop.f32.mrb[0].mxu0
        %1011 = vmatprep.mubr.bf16.mxu0 0
        %1012 = vmatmul.mubr.bf16.gmra.mrb[0].mxu0 %v863
        %v1013 = vpop.f32.mrb[0].mxu0
        %v1014 = vadd.f32 0.0, %v1013
        %v1015 = vpop.f32.mrb[0].mxu0
        %v1016 = vpop.f32.mrb[0].mxu0
        %v1017 = vadd.f32 0.0, %v1016
        %v1018 = vpop.f32.mrb[0].mxu0
        %1019 = vmatprep.mubr.bf16.mxu0 0
        %1020 = vmatmul.mubr.bf16.gmra.mrb[0].mxu0 %v866
        %v1021 = vpop.f32.mrb[0].mxu0
        %v1022 = vadd.f32 0.0, %v1021
        %v1023 = vpop.f32.mrb[0].mxu0
        %v1024 = vpop.f32.mrb[0].mxu0
        %v1025 = vadd.f32 0.0, %v1024
        %v1026 = vpop.f32.mrb[0].mxu0
        %1027 = vmatprep.mubr.bf16.mxu0 0
        %1028 = vmatmul.mubr.bf16.gmra.mrb[0].mxu0 %v869
        %v1029 = vpop.f32.mrb[0].mxu0
        %v1030 = vadd.f32 0.0, %v1029
        %v1031 = vpop.f32.mrb[0].mxu0
        %v1032 = vpop.f32.mrb[0].mxu0
        %v1033 = vadd.f32 0.0, %v1032
        %v1034 = vpop.f32.mrb[0].mxu0
        %1035 = vmatprep.mubr.bf16.mxu0 0
        %1036 = vmatmul.mubr.bf16.gmra.mrb[0].mxu0 %v872
        %v1037 = vpop.f32.mrb[0].mxu0
        %v1038 = vadd.f32 0.0, %v1037
        %v1039 = vpop.f32.mrb[0].mxu0
        %v1040 = vpop.f32.mrb[0].mxu0
        %v1041 = vadd.f32 0.0, %v1040
        %v1042 = vpop.f32.mrb[0].mxu0
        %1043 = vmatprep.mubr.bf16.mxu0 0
        %1044 = vmatmul.mubr.bf16.gmra.mrb[0].mxu0 %v875
        %v1045 = vpop.f32.mrb[0].mxu0
        %v1046 = vadd.f32 0.0, %v1045
        %v1047 = vpop.f32.mrb[0].mxu0
        %v1048 = vpop.f32.mrb[0].mxu0
        %v1049 = vadd.f32 0.0, %v1048
        %v1050 = vpop.f32.mrb[0].mxu0
        %1051 = vmatprep.mubr.bf16.mxu0 0
        %1052 = vmatmul.mubr.bf16.gmra.mrb[0].mxu0 %v878
        %v1053 = vpop.f32.mrb[0].mxu0
        %v1054 = vadd.f32 0.0, %v1053
        %v1055 = vpop.f32.mrb[0].mxu0
        %v1056 = vpop.f32.mrb[0].mxu0
        %v1057 = vadd.f32 0.0, %v1056
        %v1058 = vpop.f32.mrb[0].mxu0
        %1059 = vdwg.mxu0
        %v1060 = vadd.f32 %v627, %v918
        %v1061 = vadd.f32 %v630, %v921
        %v1062 = vadd.f32 %v635, %v926
        %v1063 = vadd.f32 %v638, %v929
        %v1064 = vadd.f32 %v643, %v934
        %v1065 = vadd.f32 %v646, %v937
        %v1066 = vadd.f32 %v651, %v942
        %v1067 = vadd.f32 %v654, %v945
        %v1068 = vadd.f32 %v659, %v950
        %v1069 = vadd.f32 %v662, %v953
        %v1070 = vadd.f32 %v667, %v958
        %v1071 = vadd.f32 %v670, %v961
        %v1072 = vadd.f32 %v675, %v966
        %v1073 = vadd.f32 %v678, %v969
        %v1074 = vadd.f32 %v683, %v974
        %v1075 = vadd.f32 %v686, %v977
        %v1076 = vadd.f32 %v691, %v982
        %v1077 = vadd.f32 %v694, %v985
        %v1078 = vadd.f32 %v699, %v990
        %v1079 = vadd.f32 %v702, %v993
        %v1080 = vadd.f32 %v707, %v998
        %v1081 = vadd.f32 %v710, %v1001
        %v1082 = vadd.f32 %v715, %v1006
        %v1083 = vadd.f32 %v718, %v1009
        %v1084 = vadd.f32 %v723, %v1014
        %v1085 = vadd.f32 %v726, %v1017
        %v1086 = vadd.f32 %v731, %v1022
        %v1087 = vadd.f32 %v734, %v1025
        %v1088 = vadd.f32 %v739, %v1030
        %v1089 = vadd.f32 %v742, %v1033
        %v1090 = vadd.f32 %v747, %v1038
        %v1091 = vadd.f32 %v750, %v1041
        %v1092 = vadd.f32 %v755, %v1046
        %v1093 = vadd.f32 %v758, %v1049
        %v1094 = vadd.f32 %v763, %v1054
        %v1095 = vadd.f32 %v766, %v1057
        %s1096 = sadd.s32 %s185, 18
        %s1097 = scalar_lea.vmem %s182, %s1096
        %v1098 = vld [vmem:[%s1097] sm:$0xff]
        %v1099 = vld [vmem:[%s1097 + $0x8] sm:$0xff]
        %v1100 = vld [vmem:[%s1097 + $0x10] sm:$0xff]
        %v1101 = vld [vmem:[%s1097 + $0x18] sm:$0xff]
        %v1102 = vld [vmem:[%s1097 + $0x20] sm:$0xff]
        %v1103 = vld [vmem:[%s1097 + $0x28] sm:$0xff]
        %v1104 = vld [vmem:[%s1097 + $0x30] sm:$0xff]
        %v1105 = vld [vmem:[%s1097 + $0x38] sm:$0xff]
        %v1106 = vld [vmem:[%s1097 + $0x40] sm:$0xff]
        %v1107 = vld [vmem:[%s1097 + $0x48] sm:$0xff]
        %v1108 = vld [vmem:[%s1097 + $0x50] sm:$0xff]
        %v1109 = vld [vmem:[%s1097 + $0x58] sm:$0xff]
        %v1110 = vld [vmem:[%s1097 + $0x60] sm:$0xff]
        %v1111 = vld [vmem:[%s1097 + $0x68] sm:$0xff]
        %v1112 = vld [vmem:[%s1097 + $0x70] sm:$0xff]
        %v1113 = vld [vmem:[%s1097 + $0x78] sm:$0xff]
        %v1114 = vld [vmem:[%s1097 + $0x80] sm:$0xff]
        %v1115 = vld [vmem:[%s1097 + $0x88] sm:$0xff]
        %v1116 = vld [vmem:[%s1097 + $0x90] sm:$0xff]
        %v1117 = vld [vmem:[%s1097 + $0x98] sm:$0xff]
        %v1118 = vld [vmem:[%s1097 + $0xa0] sm:$0xff]
        %v1119 = vld [vmem:[%s1097 + $0xa8] sm:$0xff]
        %v1120 = vld [vmem:[%s1097 + $0xb0] sm:$0xff]
        %v1121 = vld [vmem:[%s1097 + $0xb8] sm:$0xff]
        %v1122 = vld [vmem:[%s1097 + $0xc0] sm:$0xff]
        %v1123 = vld [vmem:[%s1097 + $0xc8] sm:$0xff]
        %v1124 = vld [vmem:[%s1097 + $0xd0] sm:$0xff]
        %v1125 = vld [vmem:[%s1097 + $0xd8] sm:$0xff]
        %v1126 = vld [vmem:[%s1097 + $0xe0] sm:$0xff]
        %v1127 = vld [vmem:[%s1097 + $0xe8] sm:$0xff]
        %v1128 = vld [vmem:[%s1097 + $0xf0] sm:$0xff]
        %v1129 = vld [vmem:[%s1097 + $0xf8] sm:$0xff]
        %v1130 = vld [vmem:[%s1097 + $0x100] sm:$0xff]
        %v1131 = vld [vmem:[%s1097 + $0x108] sm:$0xff]
        %v1132 = vld [vmem:[%s1097 + $0x110] sm:$0xff]
        %v1133 = vld [vmem:[%s1097 + $0x118] sm:$0xff]
        %v1134 = vpack.c.bf16 %v1099, %v1098
        %v1135 = vpack.c.bf16 %v1101, %v1100
        %v1136 = vpack.c.bf16 %v1103, %v1102
        %v1137 = vpack.c.bf16 %v1105, %v1104
        %v1138 = vpack.c.bf16 %v1107, %v1106
        %v1139 = vpack.c.bf16 %v1109, %v1108
        %v1140 = vpack.c.bf16 %v1111, %v1110
        %v1141 = vpack.c.bf16 %v1113, %v1112
        %v1142 = vpack.c.bf16 %v1115, %v1114
        %v1143 = vpack.c.bf16 %v1117, %v1116
        %v1144 = vpack.c.bf16 %v1119, %v1118
        %v1145 = vpack.c.bf16 %v1121, %v1120
        %v1146 = vpack.c.bf16 %v1123, %v1122
        %v1147 = vpack.c.bf16 %v1125, %v1124
        %v1148 = vpack.c.bf16 %v1127, %v1126
        %v1149 = vpack.c.bf16 %v1129, %v1128
        %v1150 = vpack.c.bf16 %v1131, %v1130
        %v1151 = vpack.c.bf16 %v1133, %v1132
        %v1152 = vld [vmem:[%s1 + $0xc] sm:$0xf]
        %v1154 = vsel %vm299, %v1134, 0
        %v1157 = vsel %vm299, %v1135, 0
        %v1160 = vsel %vm299, %v1136, 0
        %v1163 = vsel %vm299, %v1137, 0
        %v1166 = vsel %vm299, %v1138, 0
        %v1169 = vsel %vm299, %v1139, 0
        %v1172 = vsel %vm299, %v1140, 0
        %v1175 = vsel %vm299, %v1141, 0
        %v1178 = vsel %vm299, %v1142, 0
        %v1181 = vsel %vm299, %v1143, 0
        %v1184 = vsel %vm299, %v1144, 0
        %v1187 = vsel %vm299, %v1145, 0
        %v1190 = vsel %vm299, %v1146, 0
        %v1193 = vsel %vm299, %v1147, 0
        %v1196 = vsel %vm299, %v1148, 0
        %v1199 = vsel %vm299, %v1149, 0
        %v1202 = vsel %vm299, %v1150, 0
        %v1205 = vsel %vm299, %v1151, 0
        %v1208 = vsel %vm354, %v1152, 0
        %1210 = vmatprep.subr.bf16.mxu0 0
        %1211 = vmatpush1.bf16.msra.mxu0 %v1208
        %1212 = vmatprep.subr.bf16.mxu0 0
        %1213 = vmatpush1.bf16.msra.mxu0 0
        %1214 = vmatprep.subr.bf16.mxu0 0
        %1215 = vmatpush1.bf16.msra.mxu0 0
        %1216 = vmatprep.subr.bf16.mxu0 0
        %1217 = vmatpush1.bf16.msra.mxu0 0
        %1218 = vmatprep.subr.bf16.mxu0 0
        %1219 = vmatpush1.bf16.msra.mxu0 0
        %1220 = vmatprep.subr.bf16.mxu0 0
        %1221 = vmatpush1.bf16.msra.mxu0 0
        %1222 = vmatprep.subr.bf16.mxu0 0
        %1223 = vmatpush1.bf16.msra.mxu0 0
        %1224 = vmatprep.subr.bf16.mxu0 0
        %1225 = vmatpush1.bf16.msra.mxu0 0
        %1226 = vmatprep.subr.bf16.mxu0 0
        %1227 = vmatpush1.bf16.msra.mxu0 0
        %1228 = vmatprep.subr.bf16.mxu0 0
        %1229 = vmatpush1.bf16.msra.mxu0 0
        %1230 = vmatprep.subr.bf16.mxu0 0
        %1231 = vmatpush1.bf16.msra.mxu0 0
        %1232 = vmatprep.subr.bf16.mxu0 0
        %1233 = vmatpush1.bf16.msra.mxu0 0
        %1234 = vmatprep.subr.bf16.mxu0 0
        %1235 = vmatpush1.bf16.msra.mxu0 0
        %1236 = vmatprep.subr.bf16.mxu0 0
        %1237 = vmatpush1.bf16.msra.mxu0 0
        %1238 = vmatprep.subr.bf16.mxu0 0
        %1239 = vmatpush1.bf16.msra.mxu0 0
        %1240 = vmatprep.subr.bf16.mxu0 0
        %1241 = vmatpush1.bf16.msra.mxu0 0
        %1242 = vmatprep.mubr.bf16.mxu0 0
        %1243 = vmatmul.mubr.bf16.gmra.mrb[0].mxu0 %v1154
        %v1244 = vpop.f32.mrb[0].mxu0
        %v1245 = vadd.f32 0.0, %v1244
        %v1246 = vpop.f32.mrb[0].mxu0
        %v1247 = vpop.f32.mrb[0].mxu0
        %v1248 = vadd.f32 0.0, %v1247
        %v1249 = vpop.f32.mrb[0].mxu0
        %1250 = vmatprep.mubr.bf16.mxu0 0
        %1251 = vmatmul.mubr.bf16.gmra.mrb[0].mxu0 %v1157
        %v1252 = vpop.f32.mrb[0].mxu0
        %v1253 = vadd.f32 0.0, %v1252
        %v1254 = vpop.f32.mrb[0].mxu0
        %v1255 = vpop.f32.mrb[0].mxu0
        %v1256 = vadd.f32 0.0, %v1255
        %v1257 = vpop.f32.mrb[0].mxu0
        %1258 = vmatprep.mubr.bf16.mxu0 0
        %1259 = vmatmul.mubr.bf16.gmra.mrb[0].mxu0 %v1160
        %v1260 = vpop.f32.mrb[0].mxu0
        %v1261 = vadd.f32 0.0, %v1260
        %v1262 = vpop.f32.mrb[0].mxu0
        %v1263 = vpop.f32.mrb[0].mxu0
        %v1264 = vadd.f32 0.0, %v1263
        %v1265 = vpop.f32.mrb[0].mxu0
        %1266 = vmatprep.mubr.bf16.mxu0 0
        %1267 = vmatmul.mubr.bf16.gmra.mrb[0].mxu0 %v1163
        %v1268 = vpop.f32.mrb[0].mxu0
        %v1269 = vadd.f32 0.0, %v1268
        %v1270 = vpop.f32.mrb[0].mxu0
        %v1271 = vpop.f32.mrb[0].mxu0
        %v1272 = vadd.f32 0.0, %v1271
        %v1273 = vpop.f32.mrb[0].mxu0
        %1274 = vmatprep.mubr.bf16.mxu0 0
        %1275 = vmatmul.mubr.bf16.gmra.mrb[0].mxu0 %v1166
        %v1276 = vpop.f32.mrb[0].mxu0
        %v1277 = vadd.f32 0.0, %v1276
        %v1278 = vpop.f32.mrb[0].mxu0
        %v1279 = vpop.f32.mrb[0].mxu0
        %v1280 = vadd.f32 0.0, %v1279
        %v1281 = vpop.f32.mrb[0].mxu0
        %1282 = vmatprep.mubr.bf16.mxu0 0
        %1283 = vmatmul.mubr.bf16.gmra.mrb[0].mxu0 %v1169
        %v1284 = vpop.f32.mrb[0].mxu0
        %v1285 = vadd.f32 0.0, %v1284
        %v1286 = vpop.f32.mrb[0].mxu0
        %v1287 = vpop.f32.mrb[0].mxu0
        %v1288 = vadd.f32 0.0, %v1287
        %v1289 = vpop.f32.mrb[0].mxu0
        %1290 = vmatprep.mubr.bf16.mxu0 0
        %1291 = vmatmul.mubr.bf16.gmra.mrb[0].mxu0 %v1172
        %v1292 = vpop.f32.mrb[0].mxu0
        %v1293 = vadd.f32 0.0, %v1292
        %v1294 = vpop.f32.mrb[0].mxu0
        %v1295 = vpop.f32.mrb[0].mxu0
        %v1296 = vadd.f32 0.0, %v1295
        %v1297 = vpop.f32.mrb[0].mxu0
        %1298 = vmatprep.mubr.bf16.mxu0 0
        %1299 = vmatmul.mubr.bf16.gmra.mrb[0].mxu0 %v1175
        %v1300 = vpop.f32.mrb[0].mxu0
        %v1301 = vadd.f32 0.0, %v1300
        %v1302 = vpop.f32.mrb[0].mxu0
        %v1303 = vpop.f32.mrb[0].mxu0
        %v1304 = vadd.f32 0.0, %v1303
        %v1305 = vpop.f32.mrb[0].mxu0
        %1306 = vmatprep.mubr.bf16.mxu0 0
        %1307 = vmatmul.mubr.bf16.gmra.mrb[0].mxu0 %v1178
        %v1308 = vpop.f32.mrb[0].mxu0
        %v1309 = vadd.f32 0.0, %v1308
        %v1310 = vpop.f32.mrb[0].mxu0
        %v1311 = vpop.f32.mrb[0].mxu0
        %v1312 = vadd.f32 0.0, %v1311
        %v1313 = vpop.f32.mrb[0].mxu0
        %1314 = vmatprep.mubr.bf16.mxu0 0
        %1315 = vmatmul.mubr.bf16.gmra.mrb[0].mxu0 %v1181
        %v1316 = vpop.f32.mrb[0].mxu0
        %v1317 = vadd.f32 0.0, %v1316
        %v1318 = vpop.f32.mrb[0].mxu0
        %v1319 = vpop.f32.mrb[0].mxu0
        %v1320 = vadd.f32 0.0, %v1319
        %v1321 = vpop.f32.mrb[0].mxu0
        %1322 = vmatprep.mubr.bf16.mxu0 0
        %1323 = vmatmul.mubr.bf16.gmra.mrb[0].mxu0 %v1184
        %v1324 = vpop.f32.mrb[0].mxu0
        %v1325 = vadd.f32 0.0, %v1324
        %v1326 = vpop.f32.mrb[0].mxu0
        %v1327 = vpop.f32.mrb[0].mxu0
        %v1328 = vadd.f32 0.0, %v1327
        %v1329 = vpop.f32.mrb[0].mxu0
        %1330 = vmatprep.mubr.bf16.mxu0 0
        %1331 = vmatmul.mubr.bf16.gmra.mrb[0].mxu0 %v1187
        %v1332 = vpop.f32.mrb[0].mxu0
        %v1333 = vadd.f32 0.0, %v1332
        %v1334 = vpop.f32.mrb[0].mxu0
        %v1335 = vpop.f32.mrb[0].mxu0
        %v1336 = vadd.f32 0.0, %v1335
        %v1337 = vpop.f32.mrb[0].mxu0
        %1338 = vmatprep.mubr.bf16.mxu0 0
        %1339 = vmatmul.mubr.bf16.gmra.mrb[0].mxu0 %v1190
        %v1340 = vpop.f32.mrb[0].mxu0
        %v1341 = vadd.f32 0.0, %v1340
        %v1342 = vpop.f32.mrb[0].mxu0
        %v1343 = vpop.f32.mrb[0].mxu0
        %v1344 = vadd.f32 0.0, %v1343
        %v1345 = vpop.f32.mrb[0].mxu0
        %1346 = vmatprep.mubr.bf16.mxu0 0
        %1347 = vmatmul.mubr.bf16.gmra.mrb[0].mxu0 %v1193
        %v1348 = vpop.f32.mrb[0].mxu0
        %v1349 = vadd.f32 0.0, %v1348
        %v1350 = vpop.f32.mrb[0].mxu0
        %v1351 = vpop.f32.mrb[0].mxu0
        %v1352 = vadd.f32 0.0, %v1351
        %v1353 = vpop.f32.mrb[0].mxu0
        %1354 = vmatprep.mubr.bf16.mxu0 0
        %1355 = vmatmul.mubr.bf16.gmra.mrb[0].mxu0 %v1196
        %v1356 = vpop.f32.mrb[0].mxu0
        %v1357 = vadd.f32 0.0, %v1356
        %v1358 = vpop.f32.mrb[0].mxu0
        %v1359 = vpop.f32.mrb[0].mxu0
        %v1360 = vadd.f32 0.0, %v1359
        %v1361 = vpop.f32.mrb[0].mxu0
        %1362 = vmatprep.mubr.bf16.mxu0 0
        %1363 = vmatmul.mubr.bf16.gmra.mrb[0].mxu0 %v1199
        %v1364 = vpop.f32.mrb[0].mxu0
        %v1365 = vadd.f32 0.0, %v1364
        %v1366 = vpop.f32.mrb[0].mxu0
        %v1367 = vpop.f32.mrb[0].mxu0
        %v1368 = vadd.f32 0.0, %v1367
        %v1369 = vpop.f32.mrb[0].mxu0
        %1370 = vmatprep.mubr.bf16.mxu0 0
        %1371 = vmatmul.mubr.bf16.gmra.mrb[0].mxu0 %v1202
        %v1372 = vpop.f32.mrb[0].mxu0
        %v1373 = vadd.f32 0.0, %v1372
        %v1374 = vpop.f32.mrb[0].mxu0
        %v1375 = vpop.f32.mrb[0].mxu0
        %v1376 = vadd.f32 0.0, %v1375
        %v1377 = vpop.f32.mrb[0].mxu0
        %1378 = vmatprep.mubr.bf16.mxu0 0
        %1379 = vmatmul.mubr.bf16.gmra.mrb[0].mxu0 %v1205
        %v1380 = vpop.f32.mrb[0].mxu0
        %v1381 = vadd.f32 0.0, %v1380
        %v1382 = vpop.f32.mrb[0].mxu0
        %v1383 = vpop.f32.mrb[0].mxu0
        %v1384 = vadd.f32 0.0, %v1383
        %v1385 = vpop.f32.mrb[0].mxu0
        %1386 = vdwg.mxu0
        %v1387 = vadd.f32 %v1060, %v1245
        %v1388 = vadd.f32 %v1061, %v1248
        %v1389 = vadd.f32 %v1062, %v1253
        %v1390 = vadd.f32 %v1063, %v1256
        %v1391 = vadd.f32 %v1064, %v1261
        %v1392 = vadd.f32 %v1065, %v1264
        %v1393 = vadd.f32 %v1066, %v1269
        %v1394 = vadd.f32 %v1067, %v1272
        %v1395 = vadd.f32 %v1068, %v1277
        %v1396 = vadd.f32 %v1069, %v1280
        %v1397 = vadd.f32 %v1070, %v1285
        %v1398 = vadd.f32 %v1071, %v1288
        %v1399 = vadd.f32 %v1072, %v1293
        %v1400 = vadd.f32 %v1073, %v1296
        %v1401 = vadd.f32 %v1074, %v1301
        %v1402 = vadd.f32 %v1075, %v1304
        %v1403 = vadd.f32 %v1076, %v1309
        %v1404 = vadd.f32 %v1077, %v1312
        %v1405 = vadd.f32 %v1078, %v1317
        %v1406 = vadd.f32 %v1079, %v1320
        %v1407 = vadd.f32 %v1080, %v1325
        %v1408 = vadd.f32 %v1081, %v1328
        %v1409 = vadd.f32 %v1082, %v1333
        %v1410 = vadd.f32 %v1083, %v1336
        %v1411 = vadd.f32 %v1084, %v1341
        %v1412 = vadd.f32 %v1085, %v1344
        %v1413 = vadd.f32 %v1086, %v1349
        %v1414 = vadd.f32 %v1087, %v1352
        %v1415 = vadd.f32 %v1088, %v1357
        %v1416 = vadd.f32 %v1089, %v1360
        %v1417 = vadd.f32 %v1090, %v1365
        %v1418 = vadd.f32 %v1091, %v1368
        %v1419 = vadd.f32 %v1092, %v1373
        %v1420 = vadd.f32 %v1093, %v1376
        %v1421 = vadd.f32 %v1094, %v1381
        %v1422 = vadd.f32 %v1095, %v1384
        %s1423 = sadd.s32 %s185, 19
        %s1424 = scalar_lea.vmem %s182, %s1423
        %v1425 = vld [vmem:[%s1424] sm:$0xff]
        %v1426 = vld [vmem:[%s1424 + $0x8] sm:$0xff]
        %v1427 = vld [vmem:[%s1424 + $0x10] sm:$0xff]
        %v1428 = vld [vmem:[%s1424 + $0x18] sm:$0xff]
        %v1429 = vld [vmem:[%s1424 + $0x20] sm:$0xff]
        %v1430 = vld [vmem:[%s1424 + $0x28] sm:$0xff]
        %v1431 = vld [vmem:[%s1424 + $0x30] sm:$0xff]
        %v1432 = vld [vmem:[%s1424 + $0x38] sm:$0xff]
        %v1433 = vld [vmem:[%s1424 + $0x40] sm:$0xff]
        %v1434 = vld [vmem:[%s1424 + $0x48] sm:$0xff]
        %v1435 = vld [vmem:[%s1424 + $0x50] sm:$0xff]
        %v1436 = vld [vmem:[%s1424 + $0x58] sm:$0xff]
        %v1437 = vld [vmem:[%s1424 + $0x60] sm:$0xff]
        %v1438 = vld [vmem:[%s1424 + $0x68] sm:$0xff]
        %v1439 = vld [vmem:[%s1424 + $0x70] sm:$0xff]
        %v1440 = vld [vmem:[%s1424 + $0x78] sm:$0xff]
        %v1441 = vld [vmem:[%s1424 + $0x80] sm:$0xff]
        %v1442 = vld [vmem:[%s1424 + $0x88] sm:$0xff]
        %v1443 = vld [vmem:[%s1424 + $0x90] sm:$0xff]
        %v1444 = vld [vmem:[%s1424 + $0x98] sm:$0xff]
        %v1445 = vld [vmem:[%s1424 + $0xa0] sm:$0xff]
        %v1446 = vld [vmem:[%s1424 + $0xa8] sm:$0xff]
        %v1447 = vld [vmem:[%s1424 + $0xb0] sm:$0xff]
        %v1448 = vld [vmem:[%s1424 + $0xb8] sm:$0xff]
        %v1449 = vld [vmem:[%s1424 + $0xc0] sm:$0xff]
        %v1450 = vld [vmem:[%s1424 + $0xc8] sm:$0xff]
        %v1451 = vld [vmem:[%s1424 + $0xd0] sm:$0xff]
        %v1452 = vld [vmem:[%s1424 + $0xd8] sm:$0xff]
        %v1453 = vld [vmem:[%s1424 + $0xe0] sm:$0xff]
        %v1454 = vld [vmem:[%s1424 + $0xe8] sm:$0xff]
        %v1455 = vld [vmem:[%s1424 + $0xf0] sm:$0xff]
        %v1456 = vld [vmem:[%s1424 + $0xf8] sm:$0xff]
        %v1457 = vld [vmem:[%s1424 + $0x100] sm:$0xff]
        %v1458 = vld [vmem:[%s1424 + $0x108] sm:$0xff]
        %v1459 = vld [vmem:[%s1424 + $0x110] sm:$0xff]
        %v1460 = vld [vmem:[%s1424 + $0x118] sm:$0xff]
        %v1461 = vpack.c.bf16 %v1426, %v1425
        %v1462 = vpack.c.bf16 %v1428, %v1427
        %v1463 = vpack.c.bf16 %v1430, %v1429
        %v1464 = vpack.c.bf16 %v1432, %v1431
        %v1465 = vpack.c.bf16 %v1434, %v1433
        %v1466 = vpack.c.bf16 %v1436, %v1435
        %v1467 = vpack.c.bf16 %v1438, %v1437
        %v1468 = vpack.c.bf16 %v1440, %v1439
        %v1469 = vpack.c.bf16 %v1442, %v1441
        %v1470 = vpack.c.bf16 %v1444, %v1443
        %v1471 = vpack.c.bf16 %v1446, %v1445
        %v1472 = vpack.c.bf16 %v1448, %v1447
        %v1473 = vpack.c.bf16 %v1450, %v1449
        %v1474 = vpack.c.bf16 %v1452, %v1451
        %v1475 = vpack.c.bf16 %v1454, %v1453
        %v1476 = vpack.c.bf16 %v1456, %v1455
        %v1477 = vpack.c.bf16 %v1458, %v1457
        %v1478 = vpack.c.bf16 %v1460, %v1459
        %v1479 = vld [vmem:[%s1 + $0x10] sm:$0xf]
        %v1481 = vsel %vm299, %v1461, 0
        %v1484 = vsel %vm299, %v1462, 0
        %v1487 = vsel %vm299, %v1463, 0
        %v1490 = vsel %vm299, %v1464, 0
        %v1493 = vsel %vm299, %v1465, 0
        %v1496 = vsel %vm299, %v1466, 0
        %v1499 = vsel %vm299, %v1467, 0
        %v1502 = vsel %vm299, %v1468, 0
        %v1505 = vsel %vm299, %v1469, 0
        %v1508 = vsel %vm299, %v1470, 0
        %v1511 = vsel %vm299, %v1471, 0
        %v1514 = vsel %vm299, %v1472, 0
        %v1517 = vsel %vm299, %v1473, 0
        %v1520 = vsel %vm299, %v1474, 0
        %v1523 = vsel %vm299, %v1475, 0
        %v1526 = vsel %vm299, %v1476, 0
        %v1529 = vsel %vm299, %v1477, 0
        %v1532 = vsel %vm299, %v1478, 0
        %v1535 = vsel %vm354, %v1479, 0
        %1537 = vmatprep.subr.bf16.mxu0 0
        %1538 = vmatpush1.bf16.msra.mxu0 %v1535
        %1539 = vmatprep.subr.bf16.mxu0 0
        %1540 = vmatpush1.bf16.msra.mxu0 0
        %1541 = vmatprep.subr.bf16.mxu0 0
        %1542 = vmatpush1.bf16.msra.mxu0 0
        %1543 = vmatprep.subr.bf16.mxu0 0
        %1544 = vmatpush1.bf16.msra.mxu0 0
        %1545 = vmatprep.subr.bf16.mxu0 0
        %1546 = vmatpush1.bf16.msra.mxu0 0
        %1547 = vmatprep.subr.bf16.mxu0 0
        %1548 = vmatpush1.bf16.msra.mxu0 0
        %1549 = vmatprep.subr.bf16.mxu0 0
        %1550 = vmatpush1.bf16.msra.mxu0 0
        %1551 = vmatprep.subr.bf16.mxu0 0
        %1552 = vmatpush1.bf16.msra.mxu0 0
        %1553 = vmatprep.subr.bf16.mxu0 0
        %1554 = vmatpush1.bf16.msra.mxu0 0
        %1555 = vmatprep.subr.bf16.mxu0 0
        %1556 = vmatpush1.bf16.msra.mxu0 0
        %1557 = vmatprep.subr.bf16.mxu0 0
        %1558 = vmatpush1.bf16.msra.mxu0 0
        %1559 = vmatprep.subr.bf16.mxu0 0
        %1560 = vmatpush1.bf16.msra.mxu0 0
        %1561 = vmatprep.subr.bf16.mxu0 0
        %1562 = vmatpush1.bf16.msra.mxu0 0
        %1563 = vmatprep.subr.bf16.mxu0 0
        %1564 = vmatpush1.bf16.msra.mxu0 0
        %1565 = vmatprep.subr.bf16.mxu0 0
        %1566 = vmatpush1.bf16.msra.mxu0 0
        %1567 = vmatprep.subr.bf16.mxu0 0
        %1568 = vmatpush1.bf16.msra.mxu0 0
        %1569 = vmatprep.mubr.bf16.mxu0 0
        %1570 = vmatmul.mubr.bf16.gmra.mrb[0].mxu0 %v1481
        %v1571 = vpop.f32.mrb[0].mxu0
        %v1572 = vadd.f32 0.0, %v1571
        %v1573 = vpop.f32.mrb[0].mxu0
        %v1574 = vpop.f32.mrb[0].mxu0
        %v1575 = vadd.f32 0.0, %v1574
        %v1576 = vpop.f32.mrb[0].mxu0
        %1577 = vmatprep.mubr.bf16.mxu0 0
        %1578 = vmatmul.mubr.bf16.gmra.mrb[0].mxu0 %v1484
        %v1579 = vpop.f32.mrb[0].mxu0
        %v1580 = vadd.f32 0.0, %v1579
        %v1581 = vpop.f32.mrb[0].mxu0
        %v1582 = vpop.f32.mrb[0].mxu0
        %v1583 = vadd.f32 0.0, %v1582
        %v1584 = vpop.f32.mrb[0].mxu0
        %1585 = vmatprep.mubr.bf16.mxu0 0
        %1586 = vmatmul.mubr.bf16.gmra.mrb[0].mxu0 %v1487
        %v1587 = vpop.f32.mrb[0].mxu0
        %v1588 = vadd.f32 0.0, %v1587
        %v1589 = vpop.f32.mrb[0].mxu0
        %v1590 = vpop.f32.mrb[0].mxu0
        %v1591 = vadd.f32 0.0, %v1590
        %v1592 = vpop.f32.mrb[0].mxu0
        %1593 = vmatprep.mubr.bf16.mxu0 0
        %1594 = vmatmul.mubr.bf16.gmra.mrb[0].mxu0 %v1490
        %v1595 = vpop.f32.mrb[0].mxu0
        %v1596 = vadd.f32 0.0, %v1595
        %v1597 = vpop.f32.mrb[0].mxu0
        %v1598 = vpop.f32.mrb[0].mxu0
        %v1599 = vadd.f32 0.0, %v1598
        %v1600 = vpop.f32.mrb[0].mxu0
        %1601 = vmatprep.mubr.bf16.mxu0 0
        %1602 = vmatmul.mubr.bf16.gmra.mrb[0].mxu0 %v1493
        %v1603 = vpop.f32.mrb[0].mxu0
        %v1604 = vadd.f32 0.0, %v1603
        %v1605 = vpop.f32.mrb[0].mxu0
        %v1606 = vpop.f32.mrb[0].mxu0
        %v1607 = vadd.f32 0.0, %v1606
        %v1608 = vpop.f32.mrb[0].mxu0
        %1609 = vmatprep.mubr.bf16.mxu0 0
        %1610 = vmatmul.mubr.bf16.gmra.mrb[0].mxu0 %v1496
        %v1611 = vpop.f32.mrb[0].mxu0
        %v1612 = vadd.f32 0.0, %v1611
        %v1613 = vpop.f32.mrb[0].mxu0
        %v1614 = vpop.f32.mrb[0].mxu0
        %v1615 = vadd.f32 0.0, %v1614
        %v1616 = vpop.f32.mrb[0].mxu0
        %1617 = vmatprep.mubr.bf16.mxu0 0
        %1618 = vmatmul.mubr.bf16.gmra.mrb[0].mxu0 %v1499
        %v1619 = vpop.f32.mrb[0].mxu0
        %v1620 = vadd.f32 0.0, %v1619
        %v1621 = vpop.f32.mrb[0].mxu0
        %v1622 = vpop.f32.mrb[0].mxu0
        %v1623 = vadd.f32 0.0, %v1622
        %v1624 = vpop.f32.mrb[0].mxu0
        %1625 = vmatprep.mubr.bf16.mxu0 0
        %1626 = vmatmul.mubr.bf16.gmra.mrb[0].mxu0 %v1502
        %v1627 = vpop.f32.mrb[0].mxu0
        %v1628 = vadd.f32 0.0, %v1627
        %v1629 = vpop.f32.mrb[0].mxu0
        %v1630 = vpop.f32.mrb[0].mxu0
        %v1631 = vadd.f32 0.0, %v1630
        %v1632 = vpop.f32.mrb[0].mxu0
        %1633 = vmatprep.mubr.bf16.mxu0 0
        %1634 = vmatmul.mubr.bf16.gmra.mrb[0].mxu0 %v1505
        %v1635 = vpop.f32.mrb[0].mxu0
        %v1636 = vadd.f32 0.0, %v1635
        %v1637 = vpop.f32.mrb[0].mxu0
        %v1638 = vpop.f32.mrb[0].mxu0
        %v1639 = vadd.f32 0.0, %v1638
        %v1640 = vpop.f32.mrb[0].mxu0
        %1641 = vmatprep.mubr.bf16.mxu0 0
        %1642 = vmatmul.mubr.bf16.gmra.mrb[0].mxu0 %v1508
        %v1643 = vpop.f32.mrb[0].mxu0
        %v1644 = vadd.f32 0.0, %v1643
        %v1645 = vpop.f32.mrb[0].mxu0
        %v1646 = vpop.f32.mrb[0].mxu0
        %v1647 = vadd.f32 0.0, %v1646
        %v1648 = vpop.f32.mrb[0].mxu0
        %1649 = vmatprep.mubr.bf16.mxu0 0
        %1650 = vmatmul.mubr.bf16.gmra.mrb[0].mxu0 %v1511
        %v1651 = vpop.f32.mrb[0].mxu0
        %v1652 = vadd.f32 0.0, %v1651
        %v1653 = vpop.f32.mrb[0].mxu0
        %v1654 = vpop.f32.mrb[0].mxu0
        %v1655 = vadd.f32 0.0, %v1654
        %v1656 = vpop.f32.mrb[0].mxu0
        %1657 = vmatprep.mubr.bf16.mxu0 0
        %1658 = vmatmul.mubr.bf16.gmra.mrb[0].mxu0 %v1514
        %v1659 = vpop.f32.mrb[0].mxu0
        %v1660 = vadd.f32 0.0, %v1659
        %v1661 = vpop.f32.mrb[0].mxu0
        %v1662 = vpop.f32.mrb[0].mxu0
        %v1663 = vadd.f32 0.0, %v1662
        %v1664 = vpop.f32.mrb[0].mxu0
        %1665 = vmatprep.mubr.bf16.mxu0 0
        %1666 = vmatmul.mubr.bf16.gmra.mrb[0].mxu0 %v1517
        %v1667 = vpop.f32.mrb[0].mxu0
        %v1668 = vadd.f32 0.0, %v1667
        %v1669 = vpop.f32.mrb[0].mxu0
        %v1670 = vpop.f32.mrb[0].mxu0
        %v1671 = vadd.f32 0.0, %v1670
        %v1672 = vpop.f32.mrb[0].mxu0
        %1673 = vmatprep.mubr.bf16.mxu0 0
        %1674 = vmatmul.mubr.bf16.gmra.mrb[0].mxu0 %v1520
        %v1675 = vpop.f32.mrb[0].mxu0
        %v1676 = vadd.f32 0.0, %v1675
        %v1677 = vpop.f32.mrb[0].mxu0
        %v1678 = vpop.f32.mrb[0].mxu0
        %v1679 = vadd.f32 0.0, %v1678
        %v1680 = vpop.f32.mrb[0].mxu0
        %1681 = vmatprep.mubr.bf16.mxu0 0
        %1682 = vmatmul.mubr.bf16.gmra.mrb[0].mxu0 %v1523
        %v1683 = vpop.f32.mrb[0].mxu0
        %v1684 = vadd.f32 0.0, %v1683
        %v1685 = vpop.f32.mrb[0].mxu0
        %v1686 = vpop.f32.mrb[0].mxu0
        %v1687 = vadd.f32 0.0, %v1686
        %v1688 = vpop.f32.mrb[0].mxu0
        %1689 = vmatprep.mubr.bf16.mxu0 0
        %1690 = vmatmul.mubr.bf16.gmra.mrb[0].mxu0 %v1526
        %v1691 = vpop.f32.mrb[0].mxu0
        %v1692 = vadd.f32 0.0, %v1691
        %v1693 = vpop.f32.mrb[0].mxu0
        %v1694 = vpop.f32.mrb[0].mxu0
        %v1695 = vadd.f32 0.0, %v1694
        %v1696 = vpop.f32.mrb[0].mxu0
        %1697 = vmatprep.mubr.bf16.mxu0 0
        %1698 = vmatmul.mubr.bf16.gmra.mrb[0].mxu0 %v1529
        %v1699 = vpop.f32.mrb[0].mxu0
        %v1700 = vadd.f32 0.0, %v1699
        %v1701 = vpop.f32.mrb[0].mxu0
        %v1702 = vpop.f32.mrb[0].mxu0
        %v1703 = vadd.f32 0.0, %v1702
        %v1704 = vpop.f32.mrb[0].mxu0
        %1705 = vmatprep.mubr.bf16.mxu0 0
        %1706 = vmatmul.mubr.bf16.gmra.mrb[0].mxu0 %v1532
        %v1707 = vpop.f32.mrb[0].mxu0
        %v1708 = vadd.f32 0.0, %v1707
        %v1709 = vpop.f32.mrb[0].mxu0
        %v1710 = vpop.f32.mrb[0].mxu0
        %v1711 = vadd.f32 0.0, %v1710
        %v1712 = vpop.f32.mrb[0].mxu0
        %1713 = vdwg.mxu0
        %v1714 = vadd.f32 %v1387, %v1572
        %v1715 = vadd.f32 %v1388, %v1575
        %v1716 = vadd.f32 %v1389, %v1580
        %v1717 = vadd.f32 %v1390, %v1583
        %v1718 = vadd.f32 %v1391, %v1588
        %v1719 = vadd.f32 %v1392, %v1591
        %v1720 = vadd.f32 %v1393, %v1596
        %v1721 = vadd.f32 %v1394, %v1599
        %v1722 = vadd.f32 %v1395, %v1604
        %v1723 = vadd.f32 %v1396, %v1607
        %v1724 = vadd.f32 %v1397, %v1612
        %v1725 = vadd.f32 %v1398, %v1615
        %v1726 = vadd.f32 %v1399, %v1620
        %v1727 = vadd.f32 %v1400, %v1623
        %v1728 = vadd.f32 %v1401, %v1628
        %v1729 = vadd.f32 %v1402, %v1631
        %v1730 = vadd.f32 %v1403, %v1636
        %v1731 = vadd.f32 %v1404, %v1639
        %v1732 = vadd.f32 %v1405, %v1644
        %v1733 = vadd.f32 %v1406, %v1647
        %v1734 = vadd.f32 %v1407, %v1652
        %v1735 = vadd.f32 %v1408, %v1655
        %v1736 = vadd.f32 %v1409, %v1660
        %v1737 = vadd.f32 %v1410, %v1663
        %v1738 = vadd.f32 %v1411, %v1668
        %v1739 = vadd.f32 %v1412, %v1671
        %v1740 = vadd.f32 %v1413, %v1676
        %v1741 = vadd.f32 %v1414, %v1679
        %v1742 = vadd.f32 %v1415, %v1684
        %v1743 = vadd.f32 %v1416, %v1687
        %v1744 = vadd.f32 %v1417, %v1692
        %v1745 = vadd.f32 %v1418, %v1695
        %v1746 = vadd.f32 %v1419, %v1700
        %v1747 = vadd.f32 %v1420, %v1703
        %v1748 = vadd.f32 %v1421, %v1708
        %v1749 = vadd.f32 %v1422, %v1711
        %s1750 = sadd.s32 %s185, 20
        %s1751 = scalar_lea.vmem %s182, %s1750
        %v1752 = vld [vmem:[%s1751] sm:$0xff]
        %v1753 = vld [vmem:[%s1751 + $0x8] sm:$0xff]
        %v1754 = vld [vmem:[%s1751 + $0x10] sm:$0xff]
        %v1755 = vld [vmem:[%s1751 + $0x18] sm:$0xff]
        %v1756 = vld [vmem:[%s1751 + $0x20] sm:$0xff]
        %v1757 = vld [vmem:[%s1751 + $0x28] sm:$0xff]
        %v1758 = vld [vmem:[%s1751 + $0x30] sm:$0xff]
        %v1759 = vld [vmem:[%s1751 + $0x38] sm:$0xff]
        %v1760 = vld [vmem:[%s1751 + $0x40] sm:$0xff]
        %v1761 = vld [vmem:[%s1751 + $0x48] sm:$0xff]
        %v1762 = vld [vmem:[%s1751 + $0x50] sm:$0xff]
        %v1763 = vld [vmem:[%s1751 + $0x58] sm:$0xff]
        %v1764 = vld [vmem:[%s1751 + $0x60] sm:$0xff]
        %v1765 = vld [vmem:[%s1751 + $0x68] sm:$0xff]
        %v1766 = vld [vmem:[%s1751 + $0x70] sm:$0xff]
        %v1767 = vld [vmem:[%s1751 + $0x78] sm:$0xff]
        %v1768 = vld [vmem:[%s1751 + $0x80] sm:$0xff]
        %v1769 = vld [vmem:[%s1751 + $0x88] sm:$0xff]
        %v1770 = vld [vmem:[%s1751 + $0x90] sm:$0xff]
        %v1771 = vld [vmem:[%s1751 + $0x98] sm:$0xff]
        %v1772 = vld [vmem:[%s1751 + $0xa0] sm:$0xff]
        %v1773 = vld [vmem:[%s1751 + $0xa8] sm:$0xff]
        %v1774 = vld [vmem:[%s1751 + $0xb0] sm:$0xff]
        %v1775 = vld [vmem:[%s1751 + $0xb8] sm:$0xff]
        %v1776 = vld [vmem:[%s1751 + $0xc0] sm:$0xff]
        %v1777 = vld [vmem:[%s1751 + $0xc8] sm:$0xff]
        %v1778 = vld [vmem:[%s1751 + $0xd0] sm:$0xff]
        %v1779 = vld [vmem:[%s1751 + $0xd8] sm:$0xff]
        %v1780 = vld [vmem:[%s1751 + $0xe0] sm:$0xff]
        %v1781 = vld [vmem:[%s1751 + $0xe8] sm:$0xff]
        %v1782 = vld [vmem:[%s1751 + $0xf0] sm:$0xff]
        %v1783 = vld [vmem:[%s1751 + $0xf8] sm:$0xff]
        %v1784 = vld [vmem:[%s1751 + $0x100] sm:$0xff]
        %v1785 = vld [vmem:[%s1751 + $0x108] sm:$0xff]
        %v1786 = vld [vmem:[%s1751 + $0x110] sm:$0xff]
        %v1787 = vld [vmem:[%s1751 + $0x118] sm:$0xff]
        %v1788 = vpack.c.bf16 %v1753, %v1752
        %v1789 = vpack.c.bf16 %v1755, %v1754
        %v1790 = vpack.c.bf16 %v1757, %v1756
        %v1791 = vpack.c.bf16 %v1759, %v1758
        %v1792 = vpack.c.bf16 %v1761, %v1760
        %v1793 = vpack.c.bf16 %v1763, %v1762
        %v1794 = vpack.c.bf16 %v1765, %v1764
        %v1795 = vpack.c.bf16 %v1767, %v1766
        %v1796 = vpack.c.bf16 %v1769, %v1768
        %v1797 = vpack.c.bf16 %v1771, %v1770
        %v1798 = vpack.c.bf16 %v1773, %v1772
        %v1799 = vpack.c.bf16 %v1775, %v1774
        %v1800 = vpack.c.bf16 %v1777, %v1776
        %v1801 = vpack.c.bf16 %v1779, %v1778
        %v1802 = vpack.c.bf16 %v1781, %v1780
        %v1803 = vpack.c.bf16 %v1783, %v1782
        %v1804 = vpack.c.bf16 %v1785, %v1784
        %v1805 = vpack.c.bf16 %v1787, %v1786
        %v1806 = vld [vmem:[%s1 + $0x14] sm:$0xf]
        %v1808 = vsel %vm299, %v1788, 0
        %v1811 = vsel %vm299, %v1789, 0
        %v1814 = vsel %vm299, %v1790, 0
        %v1817 = vsel %vm299, %v1791, 0
        %v1820 = vsel %vm299, %v1792, 0
        %v1823 = vsel %vm299, %v1793, 0
        %v1826 = vsel %vm299, %v1794, 0
        %v1829 = vsel %vm299, %v1795, 0
        %v1832 = vsel %vm299, %v1796, 0
        %v1835 = vsel %vm299, %v1797, 0
        %v1838 = vsel %vm299, %v1798, 0
        %v1841 = vsel %vm299, %v1799, 0
        %v1844 = vsel %vm299, %v1800, 0
        %v1847 = vsel %vm299, %v1801, 0
        %v1850 = vsel %vm299, %v1802, 0
        %v1853 = vsel %vm299, %v1803, 0
        %v1856 = vsel %vm299, %v1804, 0
        %v1859 = vsel %vm299, %v1805, 0
        %v1862 = vsel %vm354, %v1806, 0
        %1864 = vmatprep.subr.bf16.mxu0 0
        %1865 = vmatpush1.bf16.msra.mxu0 %v1862
        %1866 = vmatprep.subr.bf16.mxu0 0
        %1867 = vmatpush1.bf16.msra.mxu0 0
        %1868 = vmatprep.subr.bf16.mxu0 0
        %1869 = vmatpush1.bf16.msra.mxu0 0
        %1870 = vmatprep.subr.bf16.mxu0 0
        %1871 = vmatpush1.bf16.msra.mxu0 0
        %1872 = vmatprep.subr.bf16.mxu0 0
        %1873 = vmatpush1.bf16.msra.mxu0 0
        %1874 = vmatprep.subr.bf16.mxu0 0
        %1875 = vmatpush1.bf16.msra.mxu0 0
        %1876 = vmatprep.subr.bf16.mxu0 0
        %1877 = vmatpush1.bf16.msra.mxu0 0
        %1878 = vmatprep.subr.bf16.mxu0 0
        %1879 = vmatpush1.bf16.msra.mxu0 0
        %1880 = vmatprep.subr.bf16.mxu0 0
        %1881 = vmatpush1.bf16.msra.mxu0 0
        %1882 = vmatprep.subr.bf16.mxu0 0
        %1883 = vmatpush1.bf16.msra.mxu0 0
        %1884 = vmatprep.subr.bf16.mxu0 0
        %1885 = vmatpush1.bf16.msra.mxu0 0
        %1886 = vmatprep.subr.bf16.mxu0 0
        %1887 = vmatpush1.bf16.msra.mxu0 0
        %1888 = vmatprep.subr.bf16.mxu0 0
        %1889 = vmatpush1.bf16.msra.mxu0 0
        %1890 = vmatprep.subr.bf16.mxu0 0
        %1891 = vmatpush1.bf16.msra.mxu0 0
        %1892 = vmatprep.subr.bf16.mxu0 0
        %1893 = vmatpush1.bf16.msra.mxu0 0
        %1894 = vmatprep.subr.bf16.mxu0 0
        %1895 = vmatpush1.bf16.msra.mxu0 0
        %1896 = vmatprep.mubr.bf16.mxu0 0
        %1897 = vmatmul.mubr.bf16.gmra.mrb[0].mxu0 %v1808
        %v1898 = vpop.f32.mrb[0].mxu0
        %v1899 = vadd.f32 0.0, %v1898
        %v1900 = vpop.f32.mrb[0].mxu0
        %v1901 = vpop.f32.mrb[0].mxu0
        %v1902 = vadd.f32 0.0, %v1901
        %v1903 = vpop.f32.mrb[0].mxu0
        %1904 = vmatprep.mubr.bf16.mxu0 0
        %1905 = vmatmul.mubr.bf16.gmra.mrb[0].mxu0 %v1811
        %v1906 = vpop.f32.mrb[0].mxu0
        %v1907 = vadd.f32 0.0, %v1906
        %v1908 = vpop.f32.mrb[0].mxu0
        %v1909 = vpop.f32.mrb[0].mxu0
        %v1910 = vadd.f32 0.0, %v1909
        %v1911 = vpop.f32.mrb[0].mxu0
        %1912 = vmatprep.mubr.bf16.mxu0 0
        %1913 = vmatmul.mubr.bf16.gmra.mrb[0].mxu0 %v1814
        %v1914 = vpop.f32.mrb[0].mxu0
        %v1915 = vadd.f32 0.0, %v1914
        %v1916 = vpop.f32.mrb[0].mxu0
        %v1917 = vpop.f32.mrb[0].mxu0
        %v1918 = vadd.f32 0.0, %v1917
        %v1919 = vpop.f32.mrb[0].mxu0
        %1920 = vmatprep.mubr.bf16.mxu0 0
        %1921 = vmatmul.mubr.bf16.gmra.mrb[0].mxu0 %v1817
        %v1922 = vpop.f32.mrb[0].mxu0
        %v1923 = vadd.f32 0.0, %v1922
        %v1924 = vpop.f32.mrb[0].mxu0
        %v1925 = vpop.f32.mrb[0].mxu0
        %v1926 = vadd.f32 0.0, %v1925
        %v1927 = vpop.f32.mrb[0].mxu0
        %1928 = vmatprep.mubr.bf16.mxu0 0
        %1929 = vmatmul.mubr.bf16.gmra.mrb[0].mxu0 %v1820
        %v1930 = vpop.f32.mrb[0].mxu0
        %v1931 = vadd.f32 0.0, %v1930
        %v1932 = vpop.f32.mrb[0].mxu0
        %v1933 = vpop.f32.mrb[0].mxu0
        %v1934 = vadd.f32 0.0, %v1933
        %v1935 = vpop.f32.mrb[0].mxu0
        %1936 = vmatprep.mubr.bf16.mxu0 0
        %1937 = vmatmul.mubr.bf16.gmra.mrb[0].mxu0 %v1823
        %v1938 = vpop.f32.mrb[0].mxu0
        %v1939 = vadd.f32 0.0, %v1938
        %v1940 = vpop.f32.mrb[0].mxu0
        %v1941 = vpop.f32.mrb[0].mxu0
        %v1942 = vadd.f32 0.0, %v1941
        %v1943 = vpop.f32.mrb[0].mxu0
        %1944 = vmatprep.mubr.bf16.mxu0 0
        %1945 = vmatmul.mubr.bf16.gmra.mrb[0].mxu0 %v1826
        %v1946 = vpop.f32.mrb[0].mxu0
        %v1947 = vadd.f32 0.0, %v1946
        %v1948 = vpop.f32.mrb[0].mxu0
        %v1949 = vpop.f32.mrb[0].mxu0
        %v1950 = vadd.f32 0.0, %v1949
        %v1951 = vpop.f32.mrb[0].mxu0
        %1952 = vmatprep.mubr.bf16.mxu0 0
        %1953 = vmatmul.mubr.bf16.gmra.mrb[0].mxu0 %v1829
        %v1954 = vpop.f32.mrb[0].mxu0
        %v1955 = vadd.f32 0.0, %v1954
        %v1956 = vpop.f32.mrb[0].mxu0
        %v1957 = vpop.f32.mrb[0].mxu0
        %v1958 = vadd.f32 0.0, %v1957
        %v1959 = vpop.f32.mrb[0].mxu0
        %1960 = vmatprep.mubr.bf16.mxu0 0
        %1961 = vmatmul.mubr.bf16.gmra.mrb[0].mxu0 %v1832
        %v1962 = vpop.f32.mrb[0].mxu0
        %v1963 = vadd.f32 0.0, %v1962
        %v1964 = vpop.f32.mrb[0].mxu0
        %v1965 = vpop.f32.mrb[0].mxu0
        %v1966 = vadd.f32 0.0, %v1965
        %v1967 = vpop.f32.mrb[0].mxu0
        %1968 = vmatprep.mubr.bf16.mxu0 0
        %1969 = vmatmul.mubr.bf16.gmra.mrb[0].mxu0 %v1835
        %v1970 = vpop.f32.mrb[0].mxu0
        %v1971 = vadd.f32 0.0, %v1970
        %v1972 = vpop.f32.mrb[0].mxu0
        %v1973 = vpop.f32.mrb[0].mxu0
        %v1974 = vadd.f32 0.0, %v1973
        %v1975 = vpop.f32.mrb[0].mxu0
        %1976 = vmatprep.mubr.bf16.mxu0 0
        %1977 = vmatmul.mubr.bf16.gmra.mrb[0].mxu0 %v1838
        %v1978 = vpop.f32.mrb[0].mxu0
        %v1979 = vadd.f32 0.0, %v1978
        %v1980 = vpop.f32.mrb[0].mxu0
        %v1981 = vpop.f32.mrb[0].mxu0
        %v1982 = vadd.f32 0.0, %v1981
        %v1983 = vpop.f32.mrb[0].mxu0
        %1984 = vmatprep.mubr.bf16.mxu0 0
        %1985 = vmatmul.mubr.bf16.gmra.mrb[0].mxu0 %v1841
        %v1986 = vpop.f32.mrb[0].mxu0
        %v1987 = vadd.f32 0.0, %v1986
        %v1988 = vpop.f32.mrb[0].mxu0
        %v1989 = vpop.f32.mrb[0].mxu0
        %v1990 = vadd.f32 0.0, %v1989
        %v1991 = vpop.f32.mrb[0].mxu0
        %1992 = vmatprep.mubr.bf16.mxu0 0
        %1993 = vmatmul.mubr.bf16.gmra.mrb[0].mxu0 %v1844
        %v1994 = vpop.f32.mrb[0].mxu0
        %v1995 = vadd.f32 0.0, %v1994
        %v1996 = vpop.f32.mrb[0].mxu0
        %v1997 = vpop.f32.mrb[0].mxu0
        %v1998 = vadd.f32 0.0, %v1997
        %v1999 = vpop.f32.mrb[0].mxu0
        %2000 = vmatprep.mubr.bf16.mxu0 0
        %2001 = vmatmul.mubr.bf16.gmra.mrb[0].mxu0 %v1847
        %v2002 = vpop.f32.mrb[0].mxu0
        %v2003 = vadd.f32 0.0, %v2002
        %v2004 = vpop.f32.mrb[0].mxu0
        %v2005 = vpop.f32.mrb[0].mxu0
        %v2006 = vadd.f32 0.0, %v2005
        %v2007 = vpop.f32.mrb[0].mxu0
        %2008 = vmatprep.mubr.bf16.mxu0 0
        %2009 = vmatmul.mubr.bf16.gmra.mrb[0].mxu0 %v1850
        %v2010 = vpop.f32.mrb[0].mxu0
        %v2011 = vadd.f32 0.0, %v2010
        %v2012 = vpop.f32.mrb[0].mxu0
        %v2013 = vpop.f32.mrb[0].mxu0
        %v2014 = vadd.f32 0.0, %v2013
        %v2015 = vpop.f32.mrb[0].mxu0
        %2016 = vmatprep.mubr.bf16.mxu0 0
        %2017 = vmatmul.mubr.bf16.gmra.mrb[0].mxu0 %v1853
        %v2018 = vpop.f32.mrb[0].mxu0
        %v2019 = vadd.f32 0.0, %v2018
        %v2020 = vpop.f32.mrb[0].mxu0
        %v2021 = vpop.f32.mrb[0].mxu0
        %v2022 = vadd.f32 0.0, %v2021
        %v2023 = vpop.f32.mrb[0].mxu0
        %2024 = vmatprep.mubr.bf16.mxu0 0
        %2025 = vmatmul.mubr.bf16.gmra.mrb[0].mxu0 %v1856
        %v2026 = vpop.f32.mrb[0].mxu0
        %v2027 = vadd.f32 0.0, %v2026
        %v2028 = vpop.f32.mrb[0].mxu0
        %v2029 = vpop.f32.mrb[0].mxu0
        %v2030 = vadd.f32 0.0, %v2029
        %v2031 = vpop.f32.mrb[0].mxu0
        %2032 = vmatprep.mubr.bf16.mxu0 0
        %2033 = vmatmul.mubr.bf16.gmra.mrb[0].mxu0 %v1859
        %v2034 = vpop.f32.mrb[0].mxu0
        %v2035 = vadd.f32 0.0, %v2034
        %v2036 = vpop.f32.mrb[0].mxu0
        %v2037 = vpop.f32.mrb[0].mxu0
        %v2038 = vadd.f32 0.0, %v2037
        %v2039 = vpop.f32.mrb[0].mxu0
        %2040 = vdwg.mxu0
        %v2041 = vadd.f32 %v1714, %v1899
        %v2042 = vadd.f32 %v1715, %v1902
        %v2043 = vadd.f32 %v1716, %v1907
        %v2044 = vadd.f32 %v1717, %v1910
        %v2045 = vadd.f32 %v1718, %v1915
        %v2046 = vadd.f32 %v1719, %v1918
        %v2047 = vadd.f32 %v1720, %v1923
        %v2048 = vadd.f32 %v1721, %v1926
        %v2049 = vadd.f32 %v1722, %v1931
        %v2050 = vadd.f32 %v1723, %v1934
        %v2051 = vadd.f32 %v1724, %v1939
        %v2052 = vadd.f32 %v1725, %v1942
        %v2053 = vadd.f32 %v1726, %v1947
        %v2054 = vadd.f32 %v1727, %v1950
        %v2055 = vadd.f32 %v1728, %v1955
        %v2056 = vadd.f32 %v1729, %v1958
        %v2057 = vadd.f32 %v1730, %v1963
        %v2058 = vadd.f32 %v1731, %v1966
        %v2059 = vadd.f32 %v1732, %v1971
        %v2060 = vadd.f32 %v1733, %v1974
        %v2061 = vadd.f32 %v1734, %v1979
        %v2062 = vadd.f32 %v1735, %v1982
        %v2063 = vadd.f32 %v1736, %v1987
        %v2064 = vadd.f32 %v1737, %v1990
        %v2065 = vadd.f32 %v1738, %v1995
        %v2066 = vadd.f32 %v1739, %v1998
        %v2067 = vadd.f32 %v1740, %v2003
        %v2068 = vadd.f32 %v1741, %v2006
        %v2069 = vadd.f32 %v1742, %v2011
        %v2070 = vadd.f32 %v1743, %v2014
        %v2071 = vadd.f32 %v1744, %v2019
        %v2072 = vadd.f32 %v1745, %v2022
        %v2073 = vadd.f32 %v1746, %v2027
        %v2074 = vadd.f32 %v1747, %v2030
        %v2075 = vadd.f32 %v1748, %v2035
        %v2076 = vadd.f32 %v1749, %v2038
        %s2077 = sadd.s32 %s185, 36
        %s2078 = scalar_lea.vmem %s182, %s2077
        %v2079 = vld [vmem:[%s2078] sm:$0xff]
        %v2080 = vld [vmem:[%s2078 + $0x8] sm:$0xff]
        %v2081 = vld [vmem:[%s2078 + $0x10] sm:$0xff]
        %v2082 = vld [vmem:[%s2078 + $0x18] sm:$0xff]
        %v2083 = vld [vmem:[%s2078 + $0x20] sm:$0xff]
        %v2084 = vld [vmem:[%s2078 + $0x28] sm:$0xff]
        %v2085 = vld [vmem:[%s2078 + $0x30] sm:$0xff]
        %v2086 = vld [vmem:[%s2078 + $0x38] sm:$0xff]
        %v2087 = vld [vmem:[%s2078 + $0x40] sm:$0xff]
        %v2088 = vld [vmem:[%s2078 + $0x48] sm:$0xff]
        %v2089 = vld [vmem:[%s2078 + $0x50] sm:$0xff]
        %v2090 = vld [vmem:[%s2078 + $0x58] sm:$0xff]
        %v2091 = vld [vmem:[%s2078 + $0x60] sm:$0xff]
        %v2092 = vld [vmem:[%s2078 + $0x68] sm:$0xff]
        %v2093 = vld [vmem:[%s2078 + $0x70] sm:$0xff]
        %v2094 = vld [vmem:[%s2078 + $0x78] sm:$0xff]
        %v2095 = vld [vmem:[%s2078 + $0x80] sm:$0xff]
        %v2096 = vld [vmem:[%s2078 + $0x88] sm:$0xff]
        %v2097 = vld [vmem:[%s2078 + $0x90] sm:$0xff]
        %v2098 = vld [vmem:[%s2078 + $0x98] sm:$0xff]
        %v2099 = vld [vmem:[%s2078 + $0xa0] sm:$0xff]
        %v2100 = vld [vmem:[%s2078 + $0xa8] sm:$0xff]
        %v2101 = vld [vmem:[%s2078 + $0xb0] sm:$0xff]
        %v2102 = vld [vmem:[%s2078 + $0xb8] sm:$0xff]
        %v2103 = vld [vmem:[%s2078 + $0xc0] sm:$0xff]
        %v2104 = vld [vmem:[%s2078 + $0xc8] sm:$0xff]
        %v2105 = vld [vmem:[%s2078 + $0xd0] sm:$0xff]
        %v2106 = vld [vmem:[%s2078 + $0xd8] sm:$0xff]
        %v2107 = vld [vmem:[%s2078 + $0xe0] sm:$0xff]
        %v2108 = vld [vmem:[%s2078 + $0xe8] sm:$0xff]
        %v2109 = vld [vmem:[%s2078 + $0xf0] sm:$0xff]
        %v2110 = vld [vmem:[%s2078 + $0xf8] sm:$0xff]
        %v2111 = vld [vmem:[%s2078 + $0x100] sm:$0xff]
        %v2112 = vld [vmem:[%s2078 + $0x108] sm:$0xff]
        %v2113 = vld [vmem:[%s2078 + $0x110] sm:$0xff]
        %v2114 = vld [vmem:[%s2078 + $0x118] sm:$0xff]
        %v2115 = vpack.c.bf16 %v2080, %v2079
        %v2116 = vpack.c.bf16 %v2082, %v2081
        %v2117 = vpack.c.bf16 %v2084, %v2083
        %v2118 = vpack.c.bf16 %v2086, %v2085
        %v2119 = vpack.c.bf16 %v2088, %v2087
        %v2120 = vpack.c.bf16 %v2090, %v2089
        %v2121 = vpack.c.bf16 %v2092, %v2091
        %v2122 = vpack.c.bf16 %v2094, %v2093
        %v2123 = vpack.c.bf16 %v2096, %v2095
        %v2124 = vpack.c.bf16 %v2098, %v2097
        %v2125 = vpack.c.bf16 %v2100, %v2099
        %v2126 = vpack.c.bf16 %v2102, %v2101
        %v2127 = vpack.c.bf16 %v2104, %v2103
        %v2128 = vpack.c.bf16 %v2106, %v2105
        %v2129 = vpack.c.bf16 %v2108, %v2107
        %v2130 = vpack.c.bf16 %v2110, %v2109
        %v2131 = vpack.c.bf16 %v2112, %v2111
        %v2132 = vpack.c.bf16 %v2114, %v2113
        %v2133 = vld [vmem:[%s1 + $0x18] sm:$0xf]
        %v2135 = vsel %vm299, %v2115, 0
        %v2138 = vsel %vm299, %v2116, 0
        %v2141 = vsel %vm299, %v2117, 0
        %v2144 = vsel %vm299, %v2118, 0
        %v2147 = vsel %vm299, %v2119, 0
        %v2150 = vsel %vm299, %v2120, 0
        %v2153 = vsel %vm299, %v2121, 0
        %v2156 = vsel %vm299, %v2122, 0
        %v2159 = vsel %vm299, %v2123, 0
        %v2162 = vsel %vm299, %v2124, 0
        %v2165 = vsel %vm299, %v2125, 0
        %v2168 = vsel %vm299, %v2126, 0
        %v2171 = vsel %vm299, %v2127, 0
        %v2174 = vsel %vm299, %v2128, 0
        %v2177 = vsel %vm299, %v2129, 0
        %v2180 = vsel %vm299, %v2130, 0
        %v2183 = vsel %vm299, %v2131, 0
        %v2186 = vsel %vm299, %v2132, 0
        %v2189 = vsel %vm354, %v2133, 0
        %2191 = vmatprep.subr.bf16.mxu0 0
        %2192 = vmatpush1.bf16.msra.mxu0 %v2189
        %2193 = vmatprep.subr.bf16.mxu0 0
        %2194 = vmatpush1.bf16.msra.mxu0 0
        %2195 = vmatprep.subr.bf16.mxu0 0
        %2196 = vmatpush1.bf16.msra.mxu0 0
        %2197 = vmatprep.subr.bf16.mxu0 0
        %2198 = vmatpush1.bf16.msra.mxu0 0
        %2199 = vmatprep.subr.bf16.mxu0 0
        %2200 = vmatpush1.bf16.msra.mxu0 0
        %2201 = vmatprep.subr.bf16.mxu0 0
        %2202 = vmatpush1.bf16.msra.mxu0 0
        %2203 = vmatprep.subr.bf16.mxu0 0
        %2204 = vmatpush1.bf16.msra.mxu0 0
        %2205 = vmatprep.subr.bf16.mxu0 0
        %2206 = vmatpush1.bf16.msra.mxu0 0
        %2207 = vmatprep.subr.bf16.mxu0 0
        %2208 = vmatpush1.bf16.msra.mxu0 0
        %2209 = vmatprep.subr.bf16.mxu0 0
        %2210 = vmatpush1.bf16.msra.mxu0 0
        %2211 = vmatprep.subr.bf16.mxu0 0
        %2212 = vmatpush1.bf16.msra.mxu0 0
        %2213 = vmatprep.subr.bf16.mxu0 0
        %2214 = vmatpush1.bf16.msra.mxu0 0
        %2215 = vmatprep.subr.bf16.mxu0 0
        %2216 = vmatpush1.bf16.msra.mxu0 0
        %2217 = vmatprep.subr.bf16.mxu0 0
        %2218 = vmatpush1.bf16.msra.mxu0 0
        %2219 = vmatprep.subr.bf16.mxu0 0
        %2220 = vmatpush1.bf16.msra.mxu0 0
        %2221 = vmatprep.subr.bf16.mxu0 0
        %2222 = vmatpush1.bf16.msra.mxu0 0
        %2223 = vmatprep.mubr.bf16.mxu0 0
        %2224 = vmatmul.mubr.bf16.gmra.mrb[0].mxu0 %v2135
        %v2225 = vpop.f32.mrb[0].mxu0
        %v2226 = vadd.f32 0.0, %v2225
        %v2227 = vpop.f32.mrb[0].mxu0
        %v2228 = vpop.f32.mrb[0].mxu0
        %v2229 = vadd.f32 0.0, %v2228
        %v2230 = vpop.f32.mrb[0].mxu0
        %2231 = vmatprep.mubr.bf16.mxu0 0
        %2232 = vmatmul.mubr.bf16.gmra.mrb[0].mxu0 %v2138
        %v2233 = vpop.f32.mrb[0].mxu0
        %v2234 = vadd.f32 0.0, %v2233
        %v2235 = vpop.f32.mrb[0].mxu0
        %v2236 = vpop.f32.mrb[0].mxu0
        %v2237 = vadd.f32 0.0, %v2236
        %v2238 = vpop.f32.mrb[0].mxu0
        %2239 = vmatprep.mubr.bf16.mxu0 0
        %2240 = vmatmul.mubr.bf16.gmra.mrb[0].mxu0 %v2141
        %v2241 = vpop.f32.mrb[0].mxu0
        %v2242 = vadd.f32 0.0, %v2241
        %v2243 = vpop.f32.mrb[0].mxu0
        %v2244 = vpop.f32.mrb[0].mxu0
        %v2245 = vadd.f32 0.0, %v2244
        %v2246 = vpop.f32.mrb[0].mxu0
        %2247 = vmatprep.mubr.bf16.mxu0 0
        %2248 = vmatmul.mubr.bf16.gmra.mrb[0].mxu0 %v2144
        %v2249 = vpop.f32.mrb[0].mxu0
        %v2250 = vadd.f32 0.0, %v2249
        %v2251 = vpop.f32.mrb[0].mxu0
        %v2252 = vpop.f32.mrb[0].mxu0
        %v2253 = vadd.f32 0.0, %v2252
        %v2254 = vpop.f32.mrb[0].mxu0
        %2255 = vmatprep.mubr.bf16.mxu0 0
        %2256 = vmatmul.mubr.bf16.gmra.mrb[0].mxu0 %v2147
        %v2257 = vpop.f32.mrb[0].mxu0
        %v2258 = vadd.f32 0.0, %v2257
        %v2259 = vpop.f32.mrb[0].mxu0
        %v2260 = vpop.f32.mrb[0].mxu0
        %v2261 = vadd.f32 0.0, %v2260
        %v2262 = vpop.f32.mrb[0].mxu0
        %2263 = vmatprep.mubr.bf16.mxu0 0
        %2264 = vmatmul.mubr.bf16.gmra.mrb[0].mxu0 %v2150
        %v2265 = vpop.f32.mrb[0].mxu0
        %v2266 = vadd.f32 0.0, %v2265
        %v2267 = vpop.f32.mrb[0].mxu0
        %v2268 = vpop.f32.mrb[0].mxu0
        %v2269 = vadd.f32 0.0, %v2268
        %v2270 = vpop.f32.mrb[0].mxu0
        %2271 = vmatprep.mubr.bf16.mxu0 0
        %2272 = vmatmul.mubr.bf16.gmra.mrb[0].mxu0 %v2153
        %v2273 = vpop.f32.mrb[0].mxu0
        %v2274 = vadd.f32 0.0, %v2273
        %v2275 = vpop.f32.mrb[0].mxu0
        %v2276 = vpop.f32.mrb[0].mxu0
        %v2277 = vadd.f32 0.0, %v2276
        %v2278 = vpop.f32.mrb[0].mxu0
        %2279 = vmatprep.mubr.bf16.mxu0 0
        %2280 = vmatmul.mubr.bf16.gmra.mrb[0].mxu0 %v2156
        %v2281 = vpop.f32.mrb[0].mxu0
        %v2282 = vadd.f32 0.0, %v2281
        %v2283 = vpop.f32.mrb[0].mxu0
        %v2284 = vpop.f32.mrb[0].mxu0
        %v2285 = vadd.f32 0.0, %v2284
        %v2286 = vpop.f32.mrb[0].mxu0
        %2287 = vmatprep.mubr.bf16.mxu0 0
        %2288 = vmatmul.mubr.bf16.gmra.mrb[0].mxu0 %v2159
        %v2289 = vpop.f32.mrb[0].mxu0
        %v2290 = vadd.f32 0.0, %v2289
        %v2291 = vpop.f32.mrb[0].mxu0
        %v2292 = vpop.f32.mrb[0].mxu0
        %v2293 = vadd.f32 0.0, %v2292
        %v2294 = vpop.f32.mrb[0].mxu0
        %2295 = vmatprep.mubr.bf16.mxu0 0
        %2296 = vmatmul.mubr.bf16.gmra.mrb[0].mxu0 %v2162
        %v2297 = vpop.f32.mrb[0].mxu0
        %v2298 = vadd.f32 0.0, %v2297
        %v2299 = vpop.f32.mrb[0].mxu0
        %v2300 = vpop.f32.mrb[0].mxu0
        %v2301 = vadd.f32 0.0, %v2300
        %v2302 = vpop.f32.mrb[0].mxu0
        %2303 = vmatprep.mubr.bf16.mxu0 0
        %2304 = vmatmul.mubr.bf16.gmra.mrb[0].mxu0 %v2165
        %v2305 = vpop.f32.mrb[0].mxu0
        %v2306 = vadd.f32 0.0, %v2305
        %v2307 = vpop.f32.mrb[0].mxu0
        %v2308 = vpop.f32.mrb[0].mxu0
        %v2309 = vadd.f32 0.0, %v2308
        %v2310 = vpop.f32.mrb[0].mxu0
        %2311 = vmatprep.mubr.bf16.mxu0 0
        %2312 = vmatmul.mubr.bf16.gmra.mrb[0].mxu0 %v2168
        %v2313 = vpop.f32.mrb[0].mxu0
        %v2314 = vadd.f32 0.0, %v2313
        %v2315 = vpop.f32.mrb[0].mxu0
        %v2316 = vpop.f32.mrb[0].mxu0
        %v2317 = vadd.f32 0.0, %v2316
        %v2318 = vpop.f32.mrb[0].mxu0
        %2319 = vmatprep.mubr.bf16.mxu0 0
        %2320 = vmatmul.mubr.bf16.gmra.mrb[0].mxu0 %v2171
        %v2321 = vpop.f32.mrb[0].mxu0
        %v2322 = vadd.f32 0.0, %v2321
        %v2323 = vpop.f32.mrb[0].mxu0
        %v2324 = vpop.f32.mrb[0].mxu0
        %v2325 = vadd.f32 0.0, %v2324
        %v2326 = vpop.f32.mrb[0].mxu0
        %2327 = vmatprep.mubr.bf16.mxu0 0
        %2328 = vmatmul.mubr.bf16.gmra.mrb[0].mxu0 %v2174
        %v2329 = vpop.f32.mrb[0].mxu0
        %v2330 = vadd.f32 0.0, %v2329
        %v2331 = vpop.f32.mrb[0].mxu0
        %v2332 = vpop.f32.mrb[0].mxu0
        %v2333 = vadd.f32 0.0, %v2332
        %v2334 = vpop.f32.mrb[0].mxu0
        %2335 = vmatprep.mubr.bf16.mxu0 0
        %2336 = vmatmul.mubr.bf16.gmra.mrb[0].mxu0 %v2177
        %v2337 = vpop.f32.mrb[0].mxu0
        %v2338 = vadd.f32 0.0, %v2337
        %v2339 = vpop.f32.mrb[0].mxu0
        %v2340 = vpop.f32.mrb[0].mxu0
        %v2341 = vadd.f32 0.0, %v2340
        %v2342 = vpop.f32.mrb[0].mxu0
        %2343 = vmatprep.mubr.bf16.mxu0 0
        %2344 = vmatmul.mubr.bf16.gmra.mrb[0].mxu0 %v2180
        %v2345 = vpop.f32.mrb[0].mxu0
        %v2346 = vadd.f32 0.0, %v2345
        %v2347 = vpop.f32.mrb[0].mxu0
        %v2348 = vpop.f32.mrb[0].mxu0
        %v2349 = vadd.f32 0.0, %v2348
        %v2350 = vpop.f32.mrb[0].mxu0
        %2351 = vmatprep.mubr.bf16.mxu0 0
        %2352 = vmatmul.mubr.bf16.gmra.mrb[0].mxu0 %v2183
        %v2353 = vpop.f32.mrb[0].mxu0
        %v2354 = vadd.f32 0.0, %v2353
        %v2355 = vpop.f32.mrb[0].mxu0
        %v2356 = vpop.f32.mrb[0].mxu0
        %v2357 = vadd.f32 0.0, %v2356
        %v2358 = vpop.f32.mrb[0].mxu0
        %2359 = vmatprep.mubr.bf16.mxu0 0
        %2360 = vmatmul.mubr.bf16.gmra.mrb[0].mxu0 %v2186
        %v2361 = vpop.f32.mrb[0].mxu0
        %v2362 = vadd.f32 0.0, %v2361
        %v2363 = vpop.f32.mrb[0].mxu0
        %v2364 = vpop.f32.mrb[0].mxu0
        %v2365 = vadd.f32 0.0, %v2364
        %v2366 = vpop.f32.mrb[0].mxu0
        %2367 = vdwg.mxu0
        %v2368 = vadd.f32 %v2041, %v2226
        %v2369 = vadd.f32 %v2042, %v2229
        %v2370 = vadd.f32 %v2043, %v2234
        %v2371 = vadd.f32 %v2044, %v2237
        %v2372 = vadd.f32 %v2045, %v2242
        %v2373 = vadd.f32 %v2046, %v2245
        %v2374 = vadd.f32 %v2047, %v2250
        %v2375 = vadd.f32 %v2048, %v2253
        %v2376 = vadd.f32 %v2049, %v2258
        %v2377 = vadd.f32 %v2050, %v2261
        %v2378 = vadd.f32 %v2051, %v2266
        %v2379 = vadd.f32 %v2052, %v2269
        %v2380 = vadd.f32 %v2053, %v2274
        %v2381 = vadd.f32 %v2054, %v2277
        %v2382 = vadd.f32 %v2055, %v2282
        %v2383 = vadd.f32 %v2056, %v2285
        %v2384 = vadd.f32 %v2057, %v2290
        %v2385 = vadd.f32 %v2058, %v2293
        %v2386 = vadd.f32 %v2059, %v2298
        %v2387 = vadd.f32 %v2060, %v2301
        %v2388 = vadd.f32 %v2061, %v2306
        %v2389 = vadd.f32 %v2062, %v2309
        %v2390 = vadd.f32 %v2063, %v2314
        %v2391 = vadd.f32 %v2064, %v2317
        %v2392 = vadd.f32 %v2065, %v2322
        %v2393 = vadd.f32 %v2066, %v2325
        %v2394 = vadd.f32 %v2067, %v2330
        %v2395 = vadd.f32 %v2068, %v2333
        %v2396 = vadd.f32 %v2069, %v2338
        %v2397 = vadd.f32 %v2070, %v2341
        %v2398 = vadd.f32 %v2071, %v2346
        %v2399 = vadd.f32 %v2072, %v2349
        %v2400 = vadd.f32 %v2073, %v2354
        %v2401 = vadd.f32 %v2074, %v2357
        %v2402 = vadd.f32 %v2075, %v2362
        %v2403 = vadd.f32 %v2076, %v2365
        %s2404 = sadd.s32 %s185, 37
        %s2405 = scalar_lea.vmem %s182, %s2404
        %v2406 = vld [vmem:[%s2405] sm:$0xff]
        %v2407 = vld [vmem:[%s2405 + $0x8] sm:$0xff]
        %v2408 = vld [vmem:[%s2405 + $0x10] sm:$0xff]
        %v2409 = vld [vmem:[%s2405 + $0x18] sm:$0xff]
        %v2410 = vld [vmem:[%s2405 + $0x20] sm:$0xff]
        %v2411 = vld [vmem:[%s2405 + $0x28] sm:$0xff]
        %v2412 = vld [vmem:[%s2405 + $0x30] sm:$0xff]
        %v2413 = vld [vmem:[%s2405 + $0x38] sm:$0xff]
        %v2414 = vld [vmem:[%s2405 + $0x40] sm:$0xff]
        %v2415 = vld [vmem:[%s2405 + $0x48] sm:$0xff]
        %v2416 = vld [vmem:[%s2405 + $0x50] sm:$0xff]
        %v2417 = vld [vmem:[%s2405 + $0x58] sm:$0xff]
        %v2418 = vld [vmem:[%s2405 + $0x60] sm:$0xff]
        %v2419 = vld [vmem:[%s2405 + $0x68] sm:$0xff]
        %v2420 = vld [vmem:[%s2405 + $0x70] sm:$0xff]
        %v2421 = vld [vmem:[%s2405 + $0x78] sm:$0xff]
        %v2422 = vld [vmem:[%s2405 + $0x80] sm:$0xff]
        %v2423 = vld [vmem:[%s2405 + $0x88] sm:$0xff]
        %v2424 = vld [vmem:[%s2405 + $0x90] sm:$0xff]
        %v2425 = vld [vmem:[%s2405 + $0x98] sm:$0xff]
        %v2426 = vld [vmem:[%s2405 + $0xa0] sm:$0xff]
        %v2427 = vld [vmem:[%s2405 + $0xa8] sm:$0xff]
        %v2428 = vld [vmem:[%s2405 + $0xb0] sm:$0xff]
        %v2429 = vld [vmem:[%s2405 + $0xb8] sm:$0xff]
        %v2430 = vld [vmem:[%s2405 + $0xc0] sm:$0xff]
        %v2431 = vld [vmem:[%s2405 + $0xc8] sm:$0xff]
        %v2432 = vld [vmem:[%s2405 + $0xd0] sm:$0xff]
        %v2433 = vld [vmem:[%s2405 + $0xd8] sm:$0xff]
        %v2434 = vld [vmem:[%s2405 + $0xe0] sm:$0xff]
        %v2435 = vld [vmem:[%s2405 + $0xe8] sm:$0xff]
        %v2436 = vld [vmem:[%s2405 + $0xf0] sm:$0xff]
        %v2437 = vld [vmem:[%s2405 + $0xf8] sm:$0xff]
        %v2438 = vld [vmem:[%s2405 + $0x100] sm:$0xff]
        %v2439 = vld [vmem:[%s2405 + $0x108] sm:$0xff]
        %v2440 = vld [vmem:[%s2405 + $0x110] sm:$0xff]
        %v2441 = vld [vmem:[%s2405 + $0x118] sm:$0xff]
        %v2442 = vpack.c.bf16 %v2407, %v2406
        %v2443 = vpack.c.bf16 %v2409, %v2408
        %v2444 = vpack.c.bf16 %v2411, %v2410
        %v2445 = vpack.c.bf16 %v2413, %v2412
        %v2446 = vpack.c.bf16 %v2415, %v2414
        %v2447 = vpack.c.bf16 %v2417, %v2416
        %v2448 = vpack.c.bf16 %v2419, %v2418
        %v2449 = vpack.c.bf16 %v2421, %v2420
        %v2450 = vpack.c.bf16 %v2423, %v2422
        %v2451 = vpack.c.bf16 %v2425, %v2424
        %v2452 = vpack.c.bf16 %v2427, %v2426
        %v2453 = vpack.c.bf16 %v2429, %v2428
        %v2454 = vpack.c.bf16 %v2431, %v2430
        %v2455 = vpack.c.bf16 %v2433, %v2432
        %v2456 = vpack.c.bf16 %v2435, %v2434
        %v2457 = vpack.c.bf16 %v2437, %v2436
        %v2458 = vpack.c.bf16 %v2439, %v2438
        %v2459 = vpack.c.bf16 %v2441, %v2440
        %v2460 = vld [vmem:[%s1 + $0x1c] sm:$0xf]
        %v2462 = vsel %vm299, %v2442, 0
        %v2465 = vsel %vm299, %v2443, 0
        %v2468 = vsel %vm299, %v2444, 0
        %v2471 = vsel %vm299, %v2445, 0
        %v2474 = vsel %vm299, %v2446, 0
        %v2477 = vsel %vm299, %v2447, 0
        %v2480 = vsel %vm299, %v2448, 0
        %v2483 = vsel %vm299, %v2449, 0
        %v2486 = vsel %vm299, %v2450, 0
        %v2489 = vsel %vm299, %v2451, 0
        %v2492 = vsel %vm299, %v2452, 0
        %v2495 = vsel %vm299, %v2453, 0
        %v2498 = vsel %vm299, %v2454, 0
        %v2501 = vsel %vm299, %v2455, 0
        %v2504 = vsel %vm299, %v2456, 0
        %v2507 = vsel %vm299, %v2457, 0
        %v2510 = vsel %vm299, %v2458, 0
        %v2513 = vsel %vm299, %v2459, 0
        %v2516 = vsel %vm354, %v2460, 0
        %2518 = vmatprep.subr.bf16.mxu0 0
        %2519 = vmatpush1.bf16.msra.mxu0 %v2516
        %2520 = vmatprep.subr.bf16.mxu0 0
        %2521 = vmatpush1.bf16.msra.mxu0 0
        %2522 = vmatprep.subr.bf16.mxu0 0
        %2523 = vmatpush1.bf16.msra.mxu0 0
        %2524 = vmatprep.subr.bf16.mxu0 0
        %2525 = vmatpush1.bf16.msra.mxu0 0
        %2526 = vmatprep.subr.bf16.mxu0 0
        %2527 = vmatpush1.bf16.msra.mxu0 0
        %2528 = vmatprep.subr.bf16.mxu0 0
        %2529 = vmatpush1.bf16.msra.mxu0 0
        %2530 = vmatprep.subr.bf16.mxu0 0
        %2531 = vmatpush1.bf16.msra.mxu0 0
        %2532 = vmatprep.subr.bf16.mxu0 0
        %2533 = vmatpush1.bf16.msra.mxu0 0
        %2534 = vmatprep.subr.bf16.mxu0 0
        %2535 = vmatpush1.bf16.msra.mxu0 0
        %2536 = vmatprep.subr.bf16.mxu0 0
        %2537 = vmatpush1.bf16.msra.mxu0 0
        %2538 = vmatprep.subr.bf16.mxu0 0
        %2539 = vmatpush1.bf16.msra.mxu0 0
        %2540 = vmatprep.subr.bf16.mxu0 0
        %2541 = vmatpush1.bf16.msra.mxu0 0
        %2542 = vmatprep.subr.bf16.mxu0 0
        %2543 = vmatpush1.bf16.msra.mxu0 0
        %2544 = vmatprep.subr.bf16.mxu0 0
        %2545 = vmatpush1.bf16.msra.mxu0 0
        %2546 = vmatprep.subr.bf16.mxu0 0
        %2547 = vmatpush1.bf16.msra.mxu0 0
        %2548 = vmatprep.subr.bf16.mxu0 0
        %2549 = vmatpush1.bf16.msra.mxu0 0
        %2550 = vmatprep.mubr.bf16.mxu0 0
        %2551 = vmatmul.mubr.bf16.gmra.mrb[0].mxu0 %v2462
        %v2552 = vpop.f32.mrb[0].mxu0
        %v2553 = vadd.f32 0.0, %v2552
        %v2554 = vpop.f32.mrb[0].mxu0
        %v2555 = vpop.f32.mrb[0].mxu0
        %v2556 = vadd.f32 0.0, %v2555
        %v2557 = vpop.f32.mrb[0].mxu0
        %2558 = vmatprep.mubr.bf16.mxu0 0
        %2559 = vmatmul.mubr.bf16.gmra.mrb[0].mxu0 %v2465
        %v2560 = vpop.f32.mrb[0].mxu0
        %v2561 = vadd.f32 0.0, %v2560
        %v2562 = vpop.f32.mrb[0].mxu0
        %v2563 = vpop.f32.mrb[0].mxu0
        %v2564 = vadd.f32 0.0, %v2563
        %v2565 = vpop.f32.mrb[0].mxu0
        %2566 = vmatprep.mubr.bf16.mxu0 0
        %2567 = vmatmul.mubr.bf16.gmra.mrb[0].mxu0 %v2468
        %v2568 = vpop.f32.mrb[0].mxu0
        %v2569 = vadd.f32 0.0, %v2568
        %v2570 = vpop.f32.mrb[0].mxu0
        %v2571 = vpop.f32.mrb[0].mxu0
        %v2572 = vadd.f32 0.0, %v2571
        %v2573 = vpop.f32.mrb[0].mxu0
        %2574 = vmatprep.mubr.bf16.mxu0 0
        %2575 = vmatmul.mubr.bf16.gmra.mrb[0].mxu0 %v2471
        %v2576 = vpop.f32.mrb[0].mxu0
        %v2577 = vadd.f32 0.0, %v2576
        %v2578 = vpop.f32.mrb[0].mxu0
        %v2579 = vpop.f32.mrb[0].mxu0
        %v2580 = vadd.f32 0.0, %v2579
        %v2581 = vpop.f32.mrb[0].mxu0
        %2582 = vmatprep.mubr.bf16.mxu0 0
        %2583 = vmatmul.mubr.bf16.gmra.mrb[0].mxu0 %v2474
        %v2584 = vpop.f32.mrb[0].mxu0
        %v2585 = vadd.f32 0.0, %v2584
        %v2586 = vpop.f32.mrb[0].mxu0
        %v2587 = vpop.f32.mrb[0].mxu0
        %v2588 = vadd.f32 0.0, %v2587
        %v2589 = vpop.f32.mrb[0].mxu0
        %2590 = vmatprep.mubr.bf16.mxu0 0
        %2591 = vmatmul.mubr.bf16.gmra.mrb[0].mxu0 %v2477
        %v2592 = vpop.f32.mrb[0].mxu0
        %v2593 = vadd.f32 0.0, %v2592
        %v2594 = vpop.f32.mrb[0].mxu0
        %v2595 = vpop.f32.mrb[0].mxu0
        %v2596 = vadd.f32 0.0, %v2595
        %v2597 = vpop.f32.mrb[0].mxu0
        %2598 = vmatprep.mubr.bf16.mxu0 0
        %2599 = vmatmul.mubr.bf16.gmra.mrb[0].mxu0 %v2480
        %v2600 = vpop.f32.mrb[0].mxu0
        %v2601 = vadd.f32 0.0, %v2600
        %v2602 = vpop.f32.mrb[0].mxu0
        %v2603 = vpop.f32.mrb[0].mxu0
        %v2604 = vadd.f32 0.0, %v2603
        %v2605 = vpop.f32.mrb[0].mxu0
        %2606 = vmatprep.mubr.bf16.mxu0 0
        %2607 = vmatmul.mubr.bf16.gmra.mrb[0].mxu0 %v2483
        %v2608 = vpop.f32.mrb[0].mxu0
        %v2609 = vadd.f32 0.0, %v2608
        %v2610 = vpop.f32.mrb[0].mxu0
        %v2611 = vpop.f32.mrb[0].mxu0
        %v2612 = vadd.f32 0.0, %v2611
        %v2613 = vpop.f32.mrb[0].mxu0
        %2614 = vmatprep.mubr.bf16.mxu0 0
        %2615 = vmatmul.mubr.bf16.gmra.mrb[0].mxu0 %v2486
        %v2616 = vpop.f32.mrb[0].mxu0
        %v2617 = vadd.f32 0.0, %v2616
        %v2618 = vpop.f32.mrb[0].mxu0
        %v2619 = vpop.f32.mrb[0].mxu0
        %v2620 = vadd.f32 0.0, %v2619
        %v2621 = vpop.f32.mrb[0].mxu0
        %2622 = vmatprep.mubr.bf16.mxu0 0
        %2623 = vmatmul.mubr.bf16.gmra.mrb[0].mxu0 %v2489
        %v2624 = vpop.f32.mrb[0].mxu0
        %v2625 = vadd.f32 0.0, %v2624
        %v2626 = vpop.f32.mrb[0].mxu0
        %v2627 = vpop.f32.mrb[0].mxu0
        %v2628 = vadd.f32 0.0, %v2627
        %v2629 = vpop.f32.mrb[0].mxu0
        %2630 = vmatprep.mubr.bf16.mxu0 0
        %2631 = vmatmul.mubr.bf16.gmra.mrb[0].mxu0 %v2492
        %v2632 = vpop.f32.mrb[0].mxu0
        %v2633 = vadd.f32 0.0, %v2632
        %v2634 = vpop.f32.mrb[0].mxu0
        %v2635 = vpop.f32.mrb[0].mxu0
        %v2636 = vadd.f32 0.0, %v2635
        %v2637 = vpop.f32.mrb[0].mxu0
        %2638 = vmatprep.mubr.bf16.mxu0 0
        %2639 = vmatmul.mubr.bf16.gmra.mrb[0].mxu0 %v2495
        %v2640 = vpop.f32.mrb[0].mxu0
        %v2641 = vadd.f32 0.0, %v2640
        %v2642 = vpop.f32.mrb[0].mxu0
        %v2643 = vpop.f32.mrb[0].mxu0
        %v2644 = vadd.f32 0.0, %v2643
        %v2645 = vpop.f32.mrb[0].mxu0
        %2646 = vmatprep.mubr.bf16.mxu0 0
        %2647 = vmatmul.mubr.bf16.gmra.mrb[0].mxu0 %v2498
        %v2648 = vpop.f32.mrb[0].mxu0
        %v2649 = vadd.f32 0.0, %v2648
        %v2650 = vpop.f32.mrb[0].mxu0
        %v2651 = vpop.f32.mrb[0].mxu0
        %v2652 = vadd.f32 0.0, %v2651
        %v2653 = vpop.f32.mrb[0].mxu0
        %2654 = vmatprep.mubr.bf16.mxu0 0
        %2655 = vmatmul.mubr.bf16.gmra.mrb[0].mxu0 %v2501
        %v2656 = vpop.f32.mrb[0].mxu0
        %v2657 = vadd.f32 0.0, %v2656
        %v2658 = vpop.f32.mrb[0].mxu0
        %v2659 = vpop.f32.mrb[0].mxu0
        %v2660 = vadd.f32 0.0, %v2659
        %v2661 = vpop.f32.mrb[0].mxu0
        %2662 = vmatprep.mubr.bf16.mxu0 0
        %2663 = vmatmul.mubr.bf16.gmra.mrb[0].mxu0 %v2504
        %v2664 = vpop.f32.mrb[0].mxu0
        %v2665 = vadd.f32 0.0, %v2664
        %v2666 = vpop.f32.mrb[0].mxu0
        %v2667 = vpop.f32.mrb[0].mxu0
        %v2668 = vadd.f32 0.0, %v2667
        %v2669 = vpop.f32.mrb[0].mxu0
        %2670 = vmatprep.mubr.bf16.mxu0 0
        %2671 = vmatmul.mubr.bf16.gmra.mrb[0].mxu0 %v2507
        %v2672 = vpop.f32.mrb[0].mxu0
        %v2673 = vadd.f32 0.0, %v2672
        %v2674 = vpop.f32.mrb[0].mxu0
        %v2675 = vpop.f32.mrb[0].mxu0
        %v2676 = vadd.f32 0.0, %v2675
        %v2677 = vpop.f32.mrb[0].mxu0
        %2678 = vmatprep.mubr.bf16.mxu0 0
        %2679 = vmatmul.mubr.bf16.gmra.mrb[0].mxu0 %v2510
        %v2680 = vpop.f32.mrb[0].mxu0
        %v2681 = vadd.f32 0.0, %v2680
        %v2682 = vpop.f32.mrb[0].mxu0
        %v2683 = vpop.f32.mrb[0].mxu0
        %v2684 = vadd.f32 0.0, %v2683
        %v2685 = vpop.f32.mrb[0].mxu0
        %2686 = vmatprep.mubr.bf16.mxu0 0
        %2687 = vmatmul.mubr.bf16.gmra.mrb[0].mxu0 %v2513
        %v2688 = vpop.f32.mrb[0].mxu0
        %v2689 = vadd.f32 0.0, %v2688
        %v2690 = vpop.f32.mrb[0].mxu0
        %v2691 = vpop.f32.mrb[0].mxu0
        %v2692 = vadd.f32 0.0, %v2691
        %v2693 = vpop.f32.mrb[0].mxu0
        %2694 = vdwg.mxu0
        %v2695 = vadd.f32 %v2368, %v2553
        %v2696 = vadd.f32 %v2369, %v2556
        %v2697 = vadd.f32 %v2370, %v2561
        %v2698 = vadd.f32 %v2371, %v2564
        %v2699 = vadd.f32 %v2372, %v2569
        %v2700 = vadd.f32 %v2373, %v2572
        %v2701 = vadd.f32 %v2374, %v2577
        %v2702 = vadd.f32 %v2375, %v2580
        %v2703 = vadd.f32 %v2376, %v2585
        %v2704 = vadd.f32 %v2377, %v2588
        %v2705 = vadd.f32 %v2378, %v2593
        %v2706 = vadd.f32 %v2379, %v2596
        %v2707 = vadd.f32 %v2380, %v2601
        %v2708 = vadd.f32 %v2381, %v2604
        %v2709 = vadd.f32 %v2382, %v2609
        %v2710 = vadd.f32 %v2383, %v2612
        %v2711 = vadd.f32 %v2384, %v2617
        %v2712 = vadd.f32 %v2385, %v2620
        %v2713 = vadd.f32 %v2386, %v2625
        %v2714 = vadd.f32 %v2387, %v2628
        %v2715 = vadd.f32 %v2388, %v2633
        %v2716 = vadd.f32 %v2389, %v2636
        %v2717 = vadd.f32 %v2390, %v2641
        %v2718 = vadd.f32 %v2391, %v2644
        %v2719 = vadd.f32 %v2392, %v2649
        %v2720 = vadd.f32 %v2393, %v2652
        %v2721 = vadd.f32 %v2394, %v2657
        %v2722 = vadd.f32 %v2395, %v2660
        %v2723 = vadd.f32 %v2396, %v2665
        %v2724 = vadd.f32 %v2397, %v2668
        %v2725 = vadd.f32 %v2398, %v2673
        %v2726 = vadd.f32 %v2399, %v2676
        %v2727 = vadd.f32 %v2400, %v2681
        %v2728 = vadd.f32 %v2401, %v2684
        %v2729 = vadd.f32 %v2402, %v2689
        %v2730 = vadd.f32 %v2403, %v2692
        %s2731 = sadd.s32 %s185, 38
        %s2732 = scalar_lea.vmem %s182, %s2731
        %v2733 = vld [vmem:[%s2732] sm:$0xff]
        %v2734 = vld [vmem:[%s2732 + $0x8] sm:$0xff]
        %v2735 = vld [vmem:[%s2732 + $0x10] sm:$0xff]
        %v2736 = vld [vmem:[%s2732 + $0x18] sm:$0xff]
        %v2737 = vld [vmem:[%s2732 + $0x20] sm:$0xff]
        %v2738 = vld [vmem:[%s2732 + $0x28] sm:$0xff]
        %v2739 = vld [vmem:[%s2732 + $0x30] sm:$0xff]
        %v2740 = vld [vmem:[%s2732 + $0x38] sm:$0xff]
        %v2741 = vld [vmem:[%s2732 + $0x40] sm:$0xff]
        %v2742 = vld [vmem:[%s2732 + $0x48] sm:$0xff]
        %v2743 = vld [vmem:[%s2732 + $0x50] sm:$0xff]
        %v2744 = vld [vmem:[%s2732 + $0x58] sm:$0xff]
        %v2745 = vld [vmem:[%s2732 + $0x60] sm:$0xff]
        %v2746 = vld [vmem:[%s2732 + $0x68] sm:$0xff]
        %v2747 = vld [vmem:[%s2732 + $0x70] sm:$0xff]
        %v2748 = vld [vmem:[%s2732 + $0x78] sm:$0xff]
        %v2749 = vld [vmem:[%s2732 + $0x80] sm:$0xff]
        %v2750 = vld [vmem:[%s2732 + $0x88] sm:$0xff]
        %v2751 = vld [vmem:[%s2732 + $0x90] sm:$0xff]
        %v2752 = vld [vmem:[%s2732 + $0x98] sm:$0xff]
        %v2753 = vld [vmem:[%s2732 + $0xa0] sm:$0xff]
        %v2754 = vld [vmem:[%s2732 + $0xa8] sm:$0xff]
        %v2755 = vld [vmem:[%s2732 + $0xb0] sm:$0xff]
        %v2756 = vld [vmem:[%s2732 + $0xb8] sm:$0xff]
        %v2757 = vld [vmem:[%s2732 + $0xc0] sm:$0xff]
        %v2758 = vld [vmem:[%s2732 + $0xc8] sm:$0xff]
        %v2759 = vld [vmem:[%s2732 + $0xd0] sm:$0xff]
        %v2760 = vld [vmem:[%s2732 + $0xd8] sm:$0xff]
        %v2761 = vld [vmem:[%s2732 + $0xe0] sm:$0xff]
        %v2762 = vld [vmem:[%s2732 + $0xe8] sm:$0xff]
        %v2763 = vld [vmem:[%s2732 + $0xf0] sm:$0xff]
        %v2764 = vld [vmem:[%s2732 + $0xf8] sm:$0xff]
        %v2765 = vld [vmem:[%s2732 + $0x100] sm:$0xff]
        %v2766 = vld [vmem:[%s2732 + $0x108] sm:$0xff]
        %v2767 = vld [vmem:[%s2732 + $0x110] sm:$0xff]
        %v2768 = vld [vmem:[%s2732 + $0x118] sm:$0xff]
        %v2769 = vpack.c.bf16 %v2734, %v2733
        %v2770 = vpack.c.bf16 %v2736, %v2735
        %v2771 = vpack.c.bf16 %v2738, %v2737
        %v2772 = vpack.c.bf16 %v2740, %v2739
        %v2773 = vpack.c.bf16 %v2742, %v2741
        %v2774 = vpack.c.bf16 %v2744, %v2743
        %v2775 = vpack.c.bf16 %v2746, %v2745
        %v2776 = vpack.c.bf16 %v2748, %v2747
        %v2777 = vpack.c.bf16 %v2750, %v2749
        %v2778 = vpack.c.bf16 %v2752, %v2751
        %v2779 = vpack.c.bf16 %v2754, %v2753
        %v2780 = vpack.c.bf16 %v2756, %v2755
        %v2781 = vpack.c.bf16 %v2758, %v2757
        %v2782 = vpack.c.bf16 %v2760, %v2759
        %v2783 = vpack.c.bf16 %v2762, %v2761
        %v2784 = vpack.c.bf16 %v2764, %v2763
        %v2785 = vpack.c.bf16 %v2766, %v2765
        %v2786 = vpack.c.bf16 %v2768, %v2767
        %v2787 = vld [vmem:[%s1 + $0x20] sm:$0xf]
        %v2789 = vsel %vm299, %v2769, 0
        %v2792 = vsel %vm299, %v2770, 0
        %v2795 = vsel %vm299, %v2771, 0
        %v2798 = vsel %vm299, %v2772, 0
        %v2801 = vsel %vm299, %v2773, 0
        %v2804 = vsel %vm299, %v2774, 0
        %v2807 = vsel %vm299, %v2775, 0
        %v2810 = vsel %vm299, %v2776, 0
        %v2813 = vsel %vm299, %v2777, 0
        %v2816 = vsel %vm299, %v2778, 0
        %v2819 = vsel %vm299, %v2779, 0
        %v2822 = vsel %vm299, %v2780, 0
        %v2825 = vsel %vm299, %v2781, 0
        %v2828 = vsel %vm299, %v2782, 0
        %v2831 = vsel %vm299, %v2783, 0
        %v2834 = vsel %vm299, %v2784, 0
        %v2837 = vsel %vm299, %v2785, 0
        %v2840 = vsel %vm299, %v2786, 0
        %v2843 = vsel %vm354, %v2787, 0
        %2845 = vmatprep.subr.bf16.mxu0 0
        %2846 = vmatpush1.bf16.msra.mxu0 %v2843
        %2847 = vmatprep.subr.bf16.mxu0 0
        %2848 = vmatpush1.bf16.msra.mxu0 0
        %2849 = vmatprep.subr.bf16.mxu0 0
        %2850 = vmatpush1.bf16.msra.mxu0 0
        %2851 = vmatprep.subr.bf16.mxu0 0
        %2852 = vmatpush1.bf16.msra.mxu0 0
        %2853 = vmatprep.subr.bf16.mxu0 0
        %2854 = vmatpush1.bf16.msra.mxu0 0
        %2855 = vmatprep.subr.bf16.mxu0 0
        %2856 = vmatpush1.bf16.msra.mxu0 0
        %2857 = vmatprep.subr.bf16.mxu0 0
        %2858 = vmatpush1.bf16.msra.mxu0 0
        %2859 = vmatprep.subr.bf16.mxu0 0
        %2860 = vmatpush1.bf16.msra.mxu0 0
        %2861 = vmatprep.subr.bf16.mxu0 0
        %2862 = vmatpush1.bf16.msra.mxu0 0
        %2863 = vmatprep.subr.bf16.mxu0 0
        %2864 = vmatpush1.bf16.msra.mxu0 0
        %2865 = vmatprep.subr.bf16.mxu0 0
        %2866 = vmatpush1.bf16.msra.mxu0 0
        %2867 = vmatprep.subr.bf16.mxu0 0
        %2868 = vmatpush1.bf16.msra.mxu0 0
        %2869 = vmatprep.subr.bf16.mxu0 0
        %2870 = vmatpush1.bf16.msra.mxu0 0
        %2871 = vmatprep.subr.bf16.mxu0 0
        %2872 = vmatpush1.bf16.msra.mxu0 0
        %2873 = vmatprep.subr.bf16.mxu0 0
        %2874 = vmatpush1.bf16.msra.mxu0 0
        %2875 = vmatprep.subr.bf16.mxu0 0
        %2876 = vmatpush1.bf16.msra.mxu0 0
        %2877 = vmatprep.mubr.bf16.mxu0 0
        %2878 = vmatmul.mubr.bf16.gmra.mrb[0].mxu0 %v2789
        %v2879 = vpop.f32.mrb[0].mxu0
        %v2880 = vadd.f32 0.0, %v2879
        %v2881 = vpop.f32.mrb[0].mxu0
        %v2882 = vpop.f32.mrb[0].mxu0
        %v2883 = vadd.f32 0.0, %v2882
        %v2884 = vpop.f32.mrb[0].mxu0
        %2885 = vmatprep.mubr.bf16.mxu0 0
        %2886 = vmatmul.mubr.bf16.gmra.mrb[0].mxu0 %v2792
        %v2887 = vpop.f32.mrb[0].mxu0
        %v2888 = vadd.f32 0.0, %v2887
        %v2889 = vpop.f32.mrb[0].mxu0
        %v2890 = vpop.f32.mrb[0].mxu0
        %v2891 = vadd.f32 0.0, %v2890
        %v2892 = vpop.f32.mrb[0].mxu0
        %2893 = vmatprep.mubr.bf16.mxu0 0
        %2894 = vmatmul.mubr.bf16.gmra.mrb[0].mxu0 %v2795
        %v2895 = vpop.f32.mrb[0].mxu0
        %v2896 = vadd.f32 0.0, %v2895
        %v2897 = vpop.f32.mrb[0].mxu0
        %v2898 = vpop.f32.mrb[0].mxu0
        %v2899 = vadd.f32 0.0, %v2898
        %v2900 = vpop.f32.mrb[0].mxu0
        %2901 = vmatprep.mubr.bf16.mxu0 0
        %2902 = vmatmul.mubr.bf16.gmra.mrb[0].mxu0 %v2798
        %v2903 = vpop.f32.mrb[0].mxu0
        %v2904 = vadd.f32 0.0, %v2903
        %v2905 = vpop.f32.mrb[0].mxu0
        %v2906 = vpop.f32.mrb[0].mxu0
        %v2907 = vadd.f32 0.0, %v2906
        %v2908 = vpop.f32.mrb[0].mxu0
        %2909 = vmatprep.mubr.bf16.mxu0 0
        %2910 = vmatmul.mubr.bf16.gmra.mrb[0].mxu0 %v2801
        %v2911 = vpop.f32.mrb[0].mxu0
        %v2912 = vadd.f32 0.0, %v2911
        %v2913 = vpop.f32.mrb[0].mxu0
        %v2914 = vpop.f32.mrb[0].mxu0
        %v2915 = vadd.f32 0.0, %v2914
        %v2916 = vpop.f32.mrb[0].mxu0
        %2917 = vmatprep.mubr.bf16.mxu0 0
        %2918 = vmatmul.mubr.bf16.gmra.mrb[0].mxu0 %v2804
        %v2919 = vpop.f32.mrb[0].mxu0
        %v2920 = vadd.f32 0.0, %v2919
        %v2921 = vpop.f32.mrb[0].mxu0
        %v2922 = vpop.f32.mrb[0].mxu0
        %v2923 = vadd.f32 0.0, %v2922
        %v2924 = vpop.f32.mrb[0].mxu0
        %2925 = vmatprep.mubr.bf16.mxu0 0
        %2926 = vmatmul.mubr.bf16.gmra.mrb[0].mxu0 %v2807
        %v2927 = vpop.f32.mrb[0].mxu0
        %v2928 = vadd.f32 0.0, %v2927
        %v2929 = vpop.f32.mrb[0].mxu0
        %v2930 = vpop.f32.mrb[0].mxu0
        %v2931 = vadd.f32 0.0, %v2930
        %v2932 = vpop.f32.mrb[0].mxu0
        %2933 = vmatprep.mubr.bf16.mxu0 0
        %2934 = vmatmul.mubr.bf16.gmra.mrb[0].mxu0 %v2810
        %v2935 = vpop.f32.mrb[0].mxu0
        %v2936 = vadd.f32 0.0, %v2935
        %v2937 = vpop.f32.mrb[0].mxu0
        %v2938 = vpop.f32.mrb[0].mxu0
        %v2939 = vadd.f32 0.0, %v2938
        %v2940 = vpop.f32.mrb[0].mxu0
        %2941 = vmatprep.mubr.bf16.mxu0 0
        %2942 = vmatmul.mubr.bf16.gmra.mrb[0].mxu0 %v2813
        %v2943 = vpop.f32.mrb[0].mxu0
        %v2944 = vadd.f32 0.0, %v2943
        %v2945 = vpop.f32.mrb[0].mxu0
        %v2946 = vpop.f32.mrb[0].mxu0
        %v2947 = vadd.f32 0.0, %v2946
        %v2948 = vpop.f32.mrb[0].mxu0
        %2949 = vmatprep.mubr.bf16.mxu0 0
        %2950 = vmatmul.mubr.bf16.gmra.mrb[0].mxu0 %v2816
        %v2951 = vpop.f32.mrb[0].mxu0
        %v2952 = vadd.f32 0.0, %v2951
        %v2953 = vpop.f32.mrb[0].mxu0
        %v2954 = vpop.f32.mrb[0].mxu0
        %v2955 = vadd.f32 0.0, %v2954
        %v2956 = vpop.f32.mrb[0].mxu0
        %2957 = vmatprep.mubr.bf16.mxu0 0
        %2958 = vmatmul.mubr.bf16.gmra.mrb[0].mxu0 %v2819
        %v2959 = vpop.f32.mrb[0].mxu0
        %v2960 = vadd.f32 0.0, %v2959
        %v2961 = vpop.f32.mrb[0].mxu0
        %v2962 = vpop.f32.mrb[0].mxu0
        %v2963 = vadd.f32 0.0, %v2962
        %v2964 = vpop.f32.mrb[0].mxu0
        %2965 = vmatprep.mubr.bf16.mxu0 0
        %2966 = vmatmul.mubr.bf16.gmra.mrb[0].mxu0 %v2822
        %v2967 = vpop.f32.mrb[0].mxu0
        %v2968 = vadd.f32 0.0, %v2967
        %v2969 = vpop.f32.mrb[0].mxu0
        %v2970 = vpop.f32.mrb[0].mxu0
        %v2971 = vadd.f32 0.0, %v2970
        %v2972 = vpop.f32.mrb[0].mxu0
        %2973 = vmatprep.mubr.bf16.mxu0 0
        %2974 = vmatmul.mubr.bf16.gmra.mrb[0].mxu0 %v2825
        %v2975 = vpop.f32.mrb[0].mxu0
        %v2976 = vadd.f32 0.0, %v2975
        %v2977 = vpop.f32.mrb[0].mxu0
        %v2978 = vpop.f32.mrb[0].mxu0
        %v2979 = vadd.f32 0.0, %v2978
        %v2980 = vpop.f32.mrb[0].mxu0
        %2981 = vmatprep.mubr.bf16.mxu0 0
        %2982 = vmatmul.mubr.bf16.gmra.mrb[0].mxu0 %v2828
        %v2983 = vpop.f32.mrb[0].mxu0
        %v2984 = vadd.f32 0.0, %v2983
        %v2985 = vpop.f32.mrb[0].mxu0
        %v2986 = vpop.f32.mrb[0].mxu0
        %v2987 = vadd.f32 0.0, %v2986
        %v2988 = vpop.f32.mrb[0].mxu0
        %2989 = vmatprep.mubr.bf16.mxu0 0
        %2990 = vmatmul.mubr.bf16.gmra.mrb[0].mxu0 %v2831
        %v2991 = vpop.f32.mrb[0].mxu0
        %v2992 = vadd.f32 0.0, %v2991
        %v2993 = vpop.f32.mrb[0].mxu0
        %v2994 = vpop.f32.mrb[0].mxu0
        %v2995 = vadd.f32 0.0, %v2994
        %v2996 = vpop.f32.mrb[0].mxu0
        %2997 = vmatprep.mubr.bf16.mxu0 0
        %2998 = vmatmul.mubr.bf16.gmra.mrb[0].mxu0 %v2834
        %v2999 = vpop.f32.mrb[0].mxu0
        %v3000 = vadd.f32 0.0, %v2999
        %v3001 = vpop.f32.mrb[0].mxu0
        %v3002 = vpop.f32.mrb[0].mxu0
        %v3003 = vadd.f32 0.0, %v3002
        %v3004 = vpop.f32.mrb[0].mxu0
        %3005 = vmatprep.mubr.bf16.mxu0 0
        %3006 = vmatmul.mubr.bf16.gmra.mrb[0].mxu0 %v2837
        %v3007 = vpop.f32.mrb[0].mxu0
        %v3008 = vadd.f32 0.0, %v3007
        %v3009 = vpop.f32.mrb[0].mxu0
        %v3010 = vpop.f32.mrb[0].mxu0
        %v3011 = vadd.f32 0.0, %v3010
        %v3012 = vpop.f32.mrb[0].mxu0
        %3013 = vmatprep.mubr.bf16.mxu0 0
        %3014 = vmatmul.mubr.bf16.gmra.mrb[0].mxu0 %v2840
        %v3015 = vpop.f32.mrb[0].mxu0
        %v3016 = vadd.f32 0.0, %v3015
        %v3017 = vpop.f32.mrb[0].mxu0
        %v3018 = vpop.f32.mrb[0].mxu0
        %v3019 = vadd.f32 0.0, %v3018
        %v3020 = vpop.f32.mrb[0].mxu0
        %3021 = vdwg.mxu0
        %v3022 = vadd.f32 %v2695, %v2880
        %v3023 = vadd.f32 %v2696, %v2883
        %v3024 = vadd.f32 %v2697, %v2888
        %v3025 = vadd.f32 %v2698, %v2891
        %v3026 = vadd.f32 %v2699, %v2896
        %v3027 = vadd.f32 %v2700, %v2899
        %v3028 = vadd.f32 %v2701, %v2904
        %v3029 = vadd.f32 %v2702, %v2907
        %v3030 = vadd.f32 %v2703, %v2912
        %v3031 = vadd.f32 %v2704, %v2915
        %v3032 = vadd.f32 %v2705, %v2920
        %v3033 = vadd.f32 %v2706, %v2923
        %v3034 = vadd.f32 %v2707, %v2928
        %v3035 = vadd.f32 %v2708, %v2931
        %v3036 = vadd.f32 %v2709, %v2936
        %v3037 = vadd.f32 %v2710, %v2939
        %v3038 = vadd.f32 %v2711, %v2944
        %v3039 = vadd.f32 %v2712, %v2947
        %v3040 = vadd.f32 %v2713, %v2952
        %v3041 = vadd.f32 %v2714, %v2955
        %v3042 = vadd.f32 %v2715, %v2960
        %v3043 = vadd.f32 %v2716, %v2963
        %v3044 = vadd.f32 %v2717, %v2968
        %v3045 = vadd.f32 %v2718, %v2971
        %v3046 = vadd.f32 %v2719, %v2976
        %v3047 = vadd.f32 %v2720, %v2979
        %v3048 = vadd.f32 %v2721, %v2984
        %v3049 = vadd.f32 %v2722, %v2987
        %v3050 = vadd.f32 %v2723, %v2992
        %v3051 = vadd.f32 %v2724, %v2995
        %v3052 = vadd.f32 %v2725, %v3000
        %v3053 = vadd.f32 %v2726, %v3003
        %v3054 = vadd.f32 %v2727, %v3008
        %v3055 = vadd.f32 %v2728, %v3011
        %v3056 = vadd.f32 %v2729, %v3016
        %v3057 = vadd.f32 %v2730, %v3019
        %v3058 = vld [vmem:[%s2] sm:$0x1]
        %v3060 = vlaneseq
        %v3061 = vshrl.u32 %v3060, 7
        %v3062 = vsub.s32 0, %v3061
        %v3063 = vrot.slane %v3058, %v3062
        %v3065 = vadd.f32 %v3022, %v3063
        %v3066 = vadd.f32 %v3023, %v3063
        %v3067 = vadd.f32 %v3024, %v3063
        %v3068 = vadd.f32 %v3025, %v3063
        %v3069 = vadd.f32 %v3026, %v3063
        %v3070 = vadd.f32 %v3027, %v3063
        %v3071 = vadd.f32 %v3028, %v3063
        %v3072 = vadd.f32 %v3029, %v3063
        %v3073 = vadd.f32 %v3030, %v3063
        %v3074 = vadd.f32 %v3031, %v3063
        %v3075 = vadd.f32 %v3032, %v3063
        %v3076 = vadd.f32 %v3033, %v3063
        %v3077 = vadd.f32 %v3034, %v3063
        %v3078 = vadd.f32 %v3035, %v3063
        %v3079 = vadd.f32 %v3036, %v3063
        %v3080 = vadd.f32 %v3037, %v3063
        %v3081 = vadd.f32 %v3038, %v3063
        %v3082 = vadd.f32 %v3039, %v3063
        %v3083 = vadd.f32 %v3040, %v3063
        %v3084 = vadd.f32 %v3041, %v3063
        %v3085 = vadd.f32 %v3042, %v3063
        %v3086 = vadd.f32 %v3043, %v3063
        %v3087 = vadd.f32 %v3044, %v3063
        %v3088 = vadd.f32 %v3045, %v3063
        %v3089 = vadd.f32 %v3046, %v3063
        %v3090 = vadd.f32 %v3047, %v3063
        %v3091 = vadd.f32 %v3048, %v3063
        %v3092 = vadd.f32 %v3049, %v3063
        %v3093 = vadd.f32 %v3050, %v3063
        %v3094 = vadd.f32 %v3051, %v3063
        %v3095 = vadd.f32 %v3052, %v3063
        %v3096 = vadd.f32 %v3053, %v3063
        %v3097 = vadd.f32 %v3054, %v3063
        %v3098 = vadd.f32 %v3055, %v3063
        %v3099 = vadd.f32 %v3056, %v3063
        %v3100 = vadd.f32 %v3057, %v3063
        %vm3101 = vcmp.gt.f32.partialorder %v3065, 0.0
        %vm3102 = vcmp.gt.f32.partialorder %v3066, 0.0
        %vm3103 = vcmp.gt.f32.partialorder %v3067, 0.0
        %vm3104 = vcmp.gt.f32.partialorder %v3068, 0.0
        %vm3105 = vcmp.gt.f32.partialorder %v3069, 0.0
        %vm3106 = vcmp.gt.f32.partialorder %v3070, 0.0
        %vm3107 = vcmp.gt.f32.partialorder %v3071, 0.0
        %vm3108 = vcmp.gt.f32.partialorder %v3072, 0.0
        %vm3109 = vcmp.gt.f32.partialorder %v3073, 0.0
        %vm3110 = vcmp.gt.f32.partialorder %v3074, 0.0
        %vm3111 = vcmp.gt.f32.partialorder %v3075, 0.0
        %vm3112 = vcmp.gt.f32.partialorder %v3076, 0.0
        %vm3113 = vcmp.gt.f32.partialorder %v3077, 0.0
        %vm3114 = vcmp.gt.f32.partialorder %v3078, 0.0
        %vm3115 = vcmp.gt.f32.partialorder %v3079, 0.0
        %vm3116 = vcmp.gt.f32.partialorder %v3080, 0.0
        %vm3117 = vcmp.gt.f32.partialorder %v3081, 0.0
        %vm3118 = vcmp.gt.f32.partialorder %v3082, 0.0
        %vm3119 = vcmp.gt.f32.partialorder %v3083, 0.0
        %vm3120 = vcmp.gt.f32.partialorder %v3084, 0.0
        %vm3121 = vcmp.gt.f32.partialorder %v3085, 0.0
        %vm3122 = vcmp.gt.f32.partialorder %v3086, 0.0
        %vm3123 = vcmp.gt.f32.partialorder %v3087, 0.0
        %vm3124 = vcmp.gt.f32.partialorder %v3088, 0.0
        %vm3125 = vcmp.gt.f32.partialorder %v3089, 0.0
        %vm3126 = vcmp.gt.f32.partialorder %v3090, 0.0
        %vm3127 = vcmp.gt.f32.partialorder %v3091, 0.0
        %vm3128 = vcmp.gt.f32.partialorder %v3092, 0.0
        %vm3129 = vcmp.gt.f32.partialorder %v3093, 0.0
        %vm3130 = vcmp.gt.f32.partialorder %v3094, 0.0
        %vm3131 = vcmp.gt.f32.partialorder %v3095, 0.0
        %vm3132 = vcmp.gt.f32.partialorder %v3096, 0.0
        %vm3133 = vcmp.gt.f32.partialorder %v3097, 0.0
        %vm3134 = vcmp.gt.f32.partialorder %v3098, 0.0
        %vm3135 = vcmp.gt.f32.partialorder %v3099, 0.0
        %vm3136 = vcmp.gt.f32.partialorder %v3100, 0.0
        %v3137 = vmul.f32 %v3065, 0.1
        %v3138 = vmul.f32 %v3066, 0.1
        %v3139 = vmul.f32 %v3067, 0.1
        %v3140 = vmul.f32 %v3068, 0.1
        %v3141 = vmul.f32 %v3069, 0.1
        %v3142 = vmul.f32 %v3070, 0.1
        %v3143 = vmul.f32 %v3071, 0.1
        %v3144 = vmul.f32 %v3072, 0.1
        %v3145 = vmul.f32 %v3073, 0.1
        %v3146 = vmul.f32 %v3074, 0.1
        %v3147 = vmul.f32 %v3075, 0.1
        %v3148 = vmul.f32 %v3076, 0.1
        %v3149 = vmul.f32 %v3077, 0.1
        %v3150 = vmul.f32 %v3078, 0.1
        %v3151 = vmul.f32 %v3079, 0.1
        %v3152 = vmul.f32 %v3080, 0.1
        %v3153 = vmul.f32 %v3081, 0.1
        %v3154 = vmul.f32 %v3082, 0.1
        %v3155 = vmul.f32 %v3083, 0.1
        %v3156 = vmul.f32 %v3084, 0.1
        %v3157 = vmul.f32 %v3085, 0.1
        %v3158 = vmul.f32 %v3086, 0.1
        %v3159 = vmul.f32 %v3087, 0.1
        %v3160 = vmul.f32 %v3088, 0.1
        %v3161 = vmul.f32 %v3089, 0.1
        %v3162 = vmul.f32 %v3090, 0.1
        %v3163 = vmul.f32 %v3091, 0.1
        %v3164 = vmul.f32 %v3092, 0.1
        %v3165 = vmul.f32 %v3093, 0.1
        %v3166 = vmul.f32 %v3094, 0.1
        %v3167 = vmul.f32 %v3095, 0.1
        %v3168 = vmul.f32 %v3096, 0.1
        %v3169 = vmul.f32 %v3097, 0.1
        %v3170 = vmul.f32 %v3098, 0.1
        %v3171 = vmul.f32 %v3099, 0.1
        %v3172 = vmul.f32 %v3100, 0.1
        %v3173 = vsel %vm3101, %v3065, %v3137
        %v3174 = vsel %vm3102, %v3066, %v3138
        %v3175 = vsel %vm3103, %v3067, %v3139
        %v3176 = vsel %vm3104, %v3068, %v3140
        %v3177 = vsel %vm3105, %v3069, %v3141
        %v3178 = vsel %vm3106, %v3070, %v3142
        %v3179 = vsel %vm3107, %v3071, %v3143
        %v3180 = vsel %vm3108, %v3072, %v3144
        %v3181 = vsel %vm3109, %v3073, %v3145
        %v3182 = vsel %vm3110, %v3074, %v3146
        %v3183 = vsel %vm3111, %v3075, %v3147
        %v3184 = vsel %vm3112, %v3076, %v3148
        %v3185 = vsel %vm3113, %v3077, %v3149
        %v3186 = vsel %vm3114, %v3078, %v3150
        %v3187 = vsel %vm3115, %v3079, %v3151
        %v3188 = vsel %vm3116, %v3080, %v3152
        %v3189 = vsel %vm3117, %v3081, %v3153
        %v3190 = vsel %vm3118, %v3082, %v3154
        %v3191 = vsel %vm3119, %v3083, %v3155
        %v3192 = vsel %vm3120, %v3084, %v3156
        %v3193 = vsel %vm3121, %v3085, %v3157
        %v3194 = vsel %vm3122, %v3086, %v3158
        %v3195 = vsel %vm3123, %v3087, %v3159
        %v3196 = vsel %vm3124, %v3088, %v3160
        %v3197 = vsel %vm3125, %v3089, %v3161
        %v3198 = vsel %vm3126, %v3090, %v3162
        %v3199 = vsel %vm3127, %v3091, %v3163
        %v3200 = vsel %vm3128, %v3092, %v3164
        %v3201 = vsel %vm3129, %v3093, %v3165
        %v3202 = vsel %vm3130, %v3094, %v3166
        %v3203 = vsel %vm3131, %v3095, %v3167
        %v3204 = vsel %vm3132, %v3096, %v3168
        %v3205 = vsel %vm3133, %v3097, %v3169
        %v3206 = vsel %vm3134, %v3098, %v3170
        %v3207 = vsel %vm3135, %v3099, %v3171
        %v3208 = vsel %vm3136, %v3100, %v3172
        %3209 = vst [vmem:[%s177] sm:$0xff] %v3173
        %3210 = vst [vmem:[%s177 + $0x8] sm:$0xff] %v3174
        %3211 = vst [vmem:[%s177 + $0x10] sm:$0xff] %v3175
        %3212 = vst [vmem:[%s177 + $0x18] sm:$0xff] %v3176
        %3213 = vst [vmem:[%s177 + $0x20] sm:$0xff] %v3177
        %3214 = vst [vmem:[%s177 + $0x28] sm:$0xff] %v3178
        %3215 = vst [vmem:[%s177 + $0x30] sm:$0xff] %v3179
        %3216 = vst [vmem:[%s177 + $0x38] sm:$0xff] %v3180
        %3217 = vst [vmem:[%s177 + $0x40] sm:$0xff] %v3181
        %3218 = vst [vmem:[%s177 + $0x48] sm:$0xff] %v3182
        %3219 = vst [vmem:[%s177 + $0x50] sm:$0xff] %v3183
        %3220 = vst [vmem:[%s177 + $0x58] sm:$0xff] %v3184
        %3221 = vst [vmem:[%s177 + $0x60] sm:$0xff] %v3185
        %3222 = vst [vmem:[%s177 + $0x68] sm:$0xff] %v3186
        %3223 = vst [vmem:[%s177 + $0x70] sm:$0xff] %v3187
        %3224 = vst [vmem:[%s177 + $0x78] sm:$0xff] %v3188
        %3225 = vst [vmem:[%s177 + $0x80] sm:$0xff] %v3189
        %3226 = vst [vmem:[%s177 + $0x88] sm:$0xff] %v3190
        %3227 = vst [vmem:[%s177 + $0x90] sm:$0xff] %v3191
        %3228 = vst [vmem:[%s177 + $0x98] sm:$0xff] %v3192
        %3229 = vst [vmem:[%s177 + $0xa0] sm:$0xff] %v3193
        %3230 = vst [vmem:[%s177 + $0xa8] sm:$0xff] %v3194
        %3231 = vst [vmem:[%s177 + $0xb0] sm:$0xff] %v3195
        %3232 = vst [vmem:[%s177 + $0xb8] sm:$0xff] %v3196
        %3233 = vst [vmem:[%s177 + $0xc0] sm:$0xff] %v3197
        %3234 = vst [vmem:[%s177 + $0xc8] sm:$0xff] %v3198
        %3235 = vst [vmem:[%s177 + $0xd0] sm:$0xff] %v3199
        %3236 = vst [vmem:[%s177 + $0xd8] sm:$0xff] %v3200
        %3237 = vst [vmem:[%s177 + $0xe0] sm:$0xff] %v3201
        %3238 = vst [vmem:[%s177 + $0xe8] sm:$0xff] %v3202
        %3239 = vst [vmem:[%s177 + $0xf0] sm:$0xff] %v3203
        %3240 = vst [vmem:[%s177 + $0xf8] sm:$0xff] %v3204
        %3241 = vst [vmem:[%s177 + $0x100] sm:$0xff] %v3205
        %3242 = vst [vmem:[%s177 + $0x108] sm:$0xff] %v3206
        %3243 = vst [vmem:[%s177 + $0x110] sm:$0xff] %v3207
        %3244 = vst [vmem:[%s177 + $0x118] sm:$0xff] %v3208
        %s3245 = sand.u32 %s107, 1
        %s3246 = scalar_lea.sflag [#allocation3], %s3245
        %s3247 = sand.u32 %s107, 1
        %s3248 = smul.addr %s3247, 288
        %s3249 = scalar_lea.vmem [#allocation2], %s3248
        // Predicated region
        $region33: #{tpu_custom_call.1} parent=31 // pred_check
          %p3250 = pneg %p117
        $region34: #{tpu_custom_call.1} parent=31 // pred_check_branch
          %3252 = sbr.rel (%p3250) target = $region36
        $region35: #{tpu_custom_call.1} parent=31 // pred_region
          %s3253 = smul.u32 36, %s22
          %s3255 = ssub.s32 4608, 4608
          %3256 = vsyncadd %s3246, %s3255
          %s3257 = smul.addr %s21, 36
          %s3258 = sadd.s32 %s3253, %s3257
          %s3259 = smul.addr %s3258, 128
          %s3260 = scalar_lea.hbm %s3, %s3259
          %s3261 = sshll.u32 %s3249, 4
          %s3262 = int_to_ptr.vmem [resolvable:$true] %s3261
          %3267 = dma.vmem_to_hbm [thread:$0]  %s3262, 4608, %s3260, %s3246, 128, 128, 8
        $region36: #{tpu_custom_call.1} parent=31 // pred_fallthru
          _
      $region32: #{tpu_custom_call.1} parent=5 // pred_fallthru
        _
      %p3268 = scmp.le.s32.totalorder 2, %s12
      // Predicated region
      $region37: #{tpu_custom_call.1} parent=5 // pred_check
        %p3269 = pneg %p3268
      $region38: #{tpu_custom_call.1} parent=5 // pred_check_branch
        %3271 = sbr.rel (%p3269) target = $region40
      $region39: #{tpu_custom_call.1} parent=5 // pred_region
        %s3272 = ssub.s32 %s12, 2
        // Predicated region
        $region41: #{tpu_custom_call.1} parent=39 // pred_check
          %p3273 = pneg %p123
        $region42: #{tpu_custom_call.1} parent=39 // pred_check_branch
          %3275 = sbr.rel (%p3273) target = $region44
        $region43: #{tpu_custom_call.1} parent=39 // pred_region
          %s3276 = sand.u32 %s108, 1
          %s3277 = scalar_lea.sflag [#allocation3], %s3276
          %s3278 = sand.u32 %s108, 1
          %s3279 = smul.addr %s3278, 288
          %s3280 = scalar_lea.vmem [#allocation2], %s3279
          %3281 = dma.done %s3277, 4608
        $region44: #{tpu_custom_call.1} parent=39 // pred_fallthru
          _
      $region40: #{tpu_custom_call.1} parent=5 // pred_fallthru
        _
    $region6: #{tpu_custom_call.1} parent=1 // loop_footer
      %s16 = sadd.s32 1, %s12
    $region7: #{tpu_custom_call.1} parent=1 // loop_footer_branch
      %11 = sbr.rel target = $region3
    $region8: #{tpu_custom_call.1} parent=1 // loop_exit
      _
    %3282 = vsyncpa [#allocation3], 1
    %s3283 = scalar_lea.sflag [#allocation3], 1
    %3284 = vsyncpa %s3283, 1

</llo_original>
